<compile_context>
chip_gen: v7x
topology: tpu7x:2x2x1
jax: 0.10.0
libtpu: 0.0.40
codegen_flags: <defaults>
</compile_context>

<pallas_src>
import functools

import jax
import jax.numpy as jnp
from jax.experimental import pallas as pl
from jax.experimental.pallas import tpu as pltpu


# Ample for these blocks; stays under v7x's 64 MiB physical VMEM (v5e/v6e: 128 MiB,
# could be raised further if spatial tiles grow at real resolutions).
_VMEM_LIMIT = 48 * 1024 * 1024


# -----------------------------------------------------------------------------
# Kernel 1: fused in-VMEM im2col + conv3x3 (9 MXU dots) + bias + ReLU + global
#           average pool.  Grid = (B,) -- one whole image per step ("parallel").
# -----------------------------------------------------------------------------
def _conv_pool_kernel(H, W, x_ref, wc_ref, bc_ref, pooled_ref):
    # x_ref     : (1, H*W + 2*(W+1), Cin_pad) bf16  flattened image, zero halo rows
    # wc_ref    : (9, Cin_pad, Cout)           bf16  conv taps (BN folded into bias)
    # bc_ref    : (1, Cout)                    f32   conv bias
    # pooled_ref: (1, 1, Cout)                 f32   per-image pooled features
    HW = H * W
    halo = W + 1
    cin = x_ref.shape[2]
    cout = wc_ref.shape[2]

    # Column index of every output pixel (flat index is h*W + w), used to mask the
    # taps that would wrap across a row boundary (the W-direction SAME padding).
    col = jax.lax.broadcasted_iota(jnp.int32, (HW, cin), 0) % W

    acc = jnp.zeros((HW, cout), jnp.float32)
    for t in range(9):                       # unrolled at trace time
        dh = t // 3 - 1
        dw = t % 3 - 1
        s = dh * W + dw                      # flat pixel shift of this tap
        # Static sublane slice of the halo-padded image: rows above/below the image
        # land in the zero halo, so the H-direction SAME padding is already correct.
        tap = x_ref[0, pl.ds(halo + s, HW), :]               # (HW, Cin_pad) bf16
        if dw != 0:
            valid = (col + dw >= 0) & (col + dw < W)
            tap = jnp.where(valid, tap, jnp.zeros_like(tap))
        acc = acc + jnp.dot(tap, wc_ref[t],                  # MXU, f32 accumulation
                            preferred_element_type=jnp.float32)

    y = jnp.maximum(acc + bc_ref[...], 0.0)                  # bias + ReLU, f32 (VPU)

    # AdaptiveAvgPool2d((1,1)): VPU partial sums into an (8, Cout) tile, then one
    # 8->1 cross-sublane XLU reduce per image.  Only real pixels contribute (the
    # halo rows never enter y), and the mean uses the true H*W.
    if HW % 8 == 0:
        part = y.reshape(HW // 8, 8, cout).sum(axis=0)       # VPU adds
        pooled = jnp.sum(part, axis=0, keepdims=True)        # single XLU reduce
    else:
        pooled = jnp.sum(y, axis=0, keepdims=True)
    pooled_ref[...] = (pooled * (1.0 / HW)).reshape(1, 1, cout)


def conv_pool_forward(xp, wc, bc, *, H, W):
    B, HWp, cin_pad = xp.shape
    assert HWp == H * W + 2 * (W + 1)
    cout = wc.shape[2]

    kernel = functools.partial(_conv_pool_kernel, H, W)
    return pl.pallas_call(
        kernel,
        out_shape=jax.ShapeDtypeStruct((B, 1, cout), jnp.float32),
        grid_spec=pltpu.PrefetchScalarGridSpec(
            num_scalar_prefetch=0,
            grid=(B,),
            in_specs=[
                pl.BlockSpec((1, HWp, cin_pad), lambda b: (b, 0, 0)),
                # Grid-invariant weights/bias: single-buffered (constant index_map),
                # halving their resident VMEM (matters at real Cout on v7x's 64 MiB).
                pl.BlockSpec((9, cin_pad, cout), lambda b: (0, 0, 0),
                             pipeline_mode=pl.Buffered(1)),
                pl.BlockSpec((1, cout), lambda b: (0, 0),
                             pipeline_mode=pl.Buffered(1)),
            ],
            out_specs=pl.BlockSpec((1, 1, cout), lambda b: (b, 0, 0)),
        ),
        compiler_params=pltpu.CompilerParams(
            # Batch axis is "parallel" so both TensorCores are fed on v7x (B >= 2).
            dimension_semantics=("parallel",),
            vmem_limit_bytes=_VMEM_LIMIT,
        ),
    )(xp, wc, bc)                                            # (B, 1, Cout) f32


# -----------------------------------------------------------------------------
# Kernel 2: embed Linear as ONE batched GEMM (B, Cout) @ (Cout, E_pad) + bias.
# -----------------------------------------------------------------------------
def _embed_kernel(p_ref, we_ref, be_ref, o_ref):
    p = p_ref[:, 0, :].astype(jnp.bfloat16)                  # (B, Cout)
    out = jnp.dot(p, we_ref[...], preferred_element_type=jnp.float32) + be_ref[...]
    o_ref[...] = out.astype(o_ref.dtype)


def embed_forward(pooled3, we_pad, be_pad):
    B, _, cout = pooled3.shape
    e_pad = we_pad.shape[1]
    return pl.pallas_call(
        _embed_kernel,
        out_shape=jax.ShapeDtypeStruct((B, e_pad), jnp.float32),
        grid_spec=pltpu.PrefetchScalarGridSpec(
            num_scalar_prefetch=0,
            grid=(1,),
            in_specs=[
                pl.BlockSpec((B, 1, cout), lambda i: (0, 0, 0)),
                pl.BlockSpec((cout, e_pad), lambda i: (0, 0)),
                pl.BlockSpec((1, e_pad), lambda i: (0, 0)),
            ],
            out_specs=pl.BlockSpec((B, e_pad), lambda i: (0, 0)),
        ),
        compiler_params=pltpu.CompilerParams(
            dimension_semantics=("arbitrary",),
            vmem_limit_bytes=_VMEM_LIMIT,
        ),
    )(pooled3, we_pad, be_pad)                               # (B, E_pad) f32, lane-dense


# -----------------------------------------------------------------------------
# EncoderCNN wrapper
# -----------------------------------------------------------------------------
class EncoderCNNPallas:
    def __init__(self, key, in_channels, feat_channels, embed_size):
        k1, k2, k3, k4 = jax.random.split(key, 4)
        self.in_channels = in_channels
        self.cin_pad = max(8, ((in_channels + 7) // 8) * 8)  # clean K for the MXU dots

        # Frozen synthetic "backbone" parameters (deterministic; stands in for ResNet-50).
        conv_w = 0.1 * jax.random.normal(
            k1, (3, 3, in_channels, feat_channels), jnp.float32)
        conv_b = 0.1 * jax.random.normal(k2, (feat_channels,), jnp.float32)
        wc = jnp.zeros((9, self.cin_pad, feat_channels), jnp.float32)
        wc = wc.at[:, :in_channels, :].set(conv_w.reshape(9, in_channels, feat_channels))
        self.conv_w_taps = wc.astype(jnp.bfloat16)           # (9, Cin_pad, Cout) bf16
        self.conv_b = conv_b.reshape(1, feat_channels)       # f32

        # Trainable embed: mirrors nn.Linear(resnet.fc.in_features, embed_size).
        # Weight pre-transposed to (Cout, E_pad) bf16; E lane-padded to a 128 multiple.
        embed_w = 0.1 * jax.random.normal(k3, (embed_size, feat_channels), jnp.float32)
        embed_b = 0.1 * jax.random.normal(k4, (embed_size,), jnp.float32)
        self.embed_size = embed_size
        self.e_pad = ((embed_size + 127) // 128) * 128
        self.embed_w_pad = jnp.zeros((feat_channels, self.e_pad), jnp.bfloat16
                                     ).at[:, :embed_size].set(embed_w.T.astype(jnp.bfloat16))
        self.embed_b_pad = jnp.zeros((1, self.e_pad), jnp.float32
                                     ).at[0, :embed_size].set(embed_b)

        # f32 copies for the pure-JAX reference tolerance check.
        self._conv_w_f32, self._conv_b_f32 = conv_w, conv_b
        self._embed_w_f32, self._embed_b_f32 = embed_w, embed_b

    def __call__(self, images_nchw):
        # images: (B, C, H, W) -- PyTorch layout
        B, C, H, W = images_nchw.shape
        assert C == self.in_channels
        HW = H * W
        halo = W + 1
        # Single preprocessing pass: NCHW -> pixel-major (B, H*W, Cin), bf16, plus a
        # zero halo of W+1 rows on each end (SAME padding along H) and channel pad.
        # Everything else (taps, conv, bias+ReLU, pool, embed) runs inside Pallas.
        x = jnp.transpose(images_nchw, (0, 2, 3, 1)).astype(jnp.bfloat16).reshape(B, HW, C)
        xp = jnp.pad(x, ((0, 0), (halo, halo), (0, self.cin_pad - C)))
        pooled = conv_pool_forward(xp, self.conv_w_taps, self.conv_b, H=H, W=W)
        out = embed_forward(pooled, self.embed_w_pad, self.embed_b_pad)
        # Backbone is frozen (requires_grad_(False)); forward values are unaffected.
        return out[:, :self.embed_size]                      # (B, embed_size)


def _reference_forward(images_nchw, conv_w, conv_b, embed_w, embed_b):
    """Pure-JAX f32 reference of the same synthetic encoder (tolerance check)."""
    x = jnp.transpose(images_nchw, (0, 2, 3, 1))             # (B,H,W,Cin) f32
    B, H, W, _ = x.shape
    xp = jnp.pad(x, ((0, 0), (1, 1), (1, 1), (0, 0)))
    acc = jnp.zeros((B, H, W, conv_w.shape[-1]), jnp.float32)
    for kh in range(3):
        for kw in range(3):
            acc = acc + jnp.einsum("bhwc,co->bhwo",
                                   xp[:, kh:kh + H, kw:kw + W, :], conv_w[kh, kw])
    y = jnp.maximum(acc + conv_b, 0.0)
    pooled = y.mean(axis=(1, 2))                             # AdaptiveAvgPool2d((1,1)) + flatten
    return pooled @ embed_w.T + embed_b                      # nn.Linear


if __name__ == "__main__":
    key = jax.random.PRNGKey(0)
    k_img, k_par = jax.random.split(key)

    B, C_in, H, W = 2, 4, 16, 16          # small NCHW images
    FEAT_C = 128                          # stands in for resnet.fc.in_features (=2048)
    EMBED = 32

    images = jax.random.normal(k_img, (B, C_in, H, W), jnp.float32)

    encoder = EncoderCNNPallas(k_par, C_in, FEAT_C, EMBED)
    out = encoder(images)
    out = jax.block_until_ready(out)

    assert out.shape == (B, EMBED), out.shape
    assert out.dtype == jnp.float32
    assert bool(jnp.all(jnp.isfinite(out)))

    # bf16 backbone/embed weights vs f32 reference: loose tolerance check.
    ref = _reference_forward(images, encoder._conv_w_f32, encoder._conv_b_f32,
                             encoder._embed_w_f32, encoder._embed_b_f32)
    max_err = float(jnp.max(jnp.abs(out - ref)))
    assert jnp.allclose(out, ref, rtol=5e-2, atol=5e-2), f"max abs err {max_err}"

    print("KERNEL_OK")
</pallas_src>

<mosaic_0001>
module attributes {stable_mosaic.version = 11 : i64} {
  func.func @_conv_pool_kernel(%arg0: i32, %arg1: memref<1x290x8xbf16, #tpu.memory_space<vmem>>, %arg2: memref<9x8x128xbf16, #tpu.memory_space<vmem>>, %arg3: memref<1x128xf32, #tpu.memory_space<vmem>>, %arg4: memref<1x1x128xf32, #tpu.memory_space<vmem>>) attributes {dimension_semantics = [#tpu.dimension_semantics<parallel>], iteration_bounds = array<i64: 2>, scalar_prefetch = 0 : i64, scratch_operands = 0 : i64, tpu.core_type = #tpu.core_type<tc>, window_params = [{transform_indices = @transform_0, window_bounds = array<i64: 1, 290, 8>}, {pipeline_mode = #tpu.pipeline_mode<synchronous>, transform_indices = @transform_1, window_bounds = array<i64: 9, 8, 128>}, {pipeline_mode = #tpu.pipeline_mode<synchronous>, transform_indices = @transform_2, window_bounds = array<i64: 1, 128>}, {transform_indices = @transform_3, window_bounds = array<i64: 1, 1, 128>}]} {
    %0 = tpu.iota {dimensions = array<i32: 0>} : vector<256x8xi32>
    %c16_i32 = arith.constant 16 : i32
    %c0_i32 = arith.constant 0 : i32
    %1 = arith.cmpi eq, %c16_i32, %c0_i32 : i32
    %c1_i32 = arith.constant 1 : i32
    %2 = arith.select %1, %c1_i32, %c16_i32 : i32
    %3 = vector.broadcast %2 : i32 to vector<256x8xi32>
    %4 = arith.remsi %0, %3 : vector<256x8xi32>
    %c0_i32_0 = arith.constant 0 : i32
    %5 = vector.broadcast %c0_i32_0 : i32 to vector<256x8xi32>
    %6 = arith.cmpi ne, %4, %5 : vector<256x8xi32>
    %c0_i32_1 = arith.constant 0 : i32
    %7 = vector.broadcast %c0_i32_1 : i32 to vector<256x8xi32>
    %8 = arith.cmpi slt, %4, %7 : vector<256x8xi32>
    %c0_i32_2 = arith.constant 0 : i32
    %9 = arith.cmpi slt, %2, %c0_i32_2 : i32
    %10 = vector.broadcast %9 : i1 to vector<256x8xi1>
    %11 = vector.broadcast %10 : vector<256x8xi1> to vector<256x8xi1>
    %12 = arith.xori %8, %11 : vector<256x8xi1>
    %13 = arith.andi %12, %6 : vector<256x8xi1>
    %14 = vector.broadcast %2 : i32 to vector<256x8xi32>
    %15 = arith.addi %4, %14 : vector<256x8xi32>
    %16 = arith.select %13, %15, %4 : vector<256x8xi1>, vector<256x8xi32>
    %cst = arith.constant 0.000000e+00 : f32
    %17 = vector.broadcast %cst : f32 to vector<256x128xf32>
    %c0 = arith.constant 0 : index
    %c0_3 = arith.constant 0 : index
    %c0_4 = arith.constant 0 : index
    %18 = vector.load %arg1[%c0, %c0_3, %c0_4] : memref<1x290x8xbf16, #tpu.memory_space<vmem>>, vector<1x256x8xbf16>
    %19 = vector.shape_cast %18 : vector<1x256x8xbf16> to vector<256x8xbf16>
    %c-1_i32 = arith.constant -1 : i32
    %20 = vector.broadcast %c-1_i32 : i32 to vector<256x8xi32>
    %21 = arith.addi %16, %20 : vector<256x8xi32>
    %c0_i32_5 = arith.constant 0 : i32
    %22 = vector.broadcast %c0_i32_5 : i32 to vector<256x8xi32>
    %23 = arith.cmpi sge, %21, %22 : vector<256x8xi32>
    %c-1_i32_6 = arith.constant -1 : i32
    %24 = vector.broadcast %c-1_i32_6 : i32 to vector<256x8xi32>
    %25 = arith.addi %16, %24 : vector<256x8xi32>
    %c16_i32_7 = arith.constant 16 : i32
    %26 = vector.broadcast %c16_i32_7 : i32 to vector<256x8xi32>
    %27 = arith.cmpi slt, %25, %26 : vector<256x8xi32>
    %28 = arith.andi %23, %27 : vector<256x8xi1>
    %cst_8 = arith.constant 0.000000e+00 : bf16
    %29 = vector.broadcast %cst_8 : bf16 to vector<256x8xbf16>
    %30 = arith.select %28, %19, %29 : vector<256x8xi1>, vector<256x8xbf16>
    %c0_9 = arith.constant 0 : index
    %c0_10 = arith.constant 0 : index
    %c0_11 = arith.constant 0 : index
    %31 = vector.load %arg2[%c0_9, %c0_10, %c0_11] : memref<9x8x128xbf16, #tpu.memory_space<vmem>>, vector<1x8x128xbf16>
    %32 = vector.shape_cast %31 : vector<1x8x128xbf16> to vector<8x128xbf16>
    %cst_12 = arith.constant dense<0.000000e+00> : vector<256x128xf32>
    %33 = tpu.matmul %30, %32, %cst_12 {dimension_numbers = #tpu.dot_dimension_numbers<[1], [0], [0], [1], [0, 0, 1, 1], [], []>} : vector<256x8xbf16>, vector<8x128xbf16>, vector<256x128xf32> -> vector<256x128xf32>
    %34 = arith.addf %17, %33 : vector<256x128xf32>
    %c0_13 = arith.constant 0 : index
    %c1 = arith.constant 1 : index
    %c0_14 = arith.constant 0 : index
    %35 = vector.load %arg1[%c0_13, %c1, %c0_14] : memref<1x290x8xbf16, #tpu.memory_space<vmem>>, vector<1x256x8xbf16>
    %36 = vector.shape_cast %35 : vector<1x256x8xbf16> to vector<256x8xbf16>
    %c1_15 = arith.constant 1 : index
    %c0_16 = arith.constant 0 : index
    %c0_17 = arith.constant 0 : index
    %37 = vector.load %arg2[%c1_15, %c0_16, %c0_17] : memref<9x8x128xbf16, #tpu.memory_space<vmem>>, vector<1x8x128xbf16>
    %38 = vector.shape_cast %37 : vector<1x8x128xbf16> to vector<8x128xbf16>
    %cst_18 = arith.constant dense<0.000000e+00> : vector<256x128xf32>
    %39 = tpu.matmul %36, %38, %cst_18 {dimension_numbers = #tpu.dot_dimension_numbers<[1], [0], [0], [1], [0, 0, 1, 1], [], []>} : vector<256x8xbf16>, vector<8x128xbf16>, vector<256x128xf32> -> vector<256x128xf32>
    %40 = arith.addf %34, %39 : vector<256x128xf32>
    %c0_19 = arith.constant 0 : index
    %c2 = arith.constant 2 : index
    %c0_20 = arith.constant 0 : index
    %41 = vector.load %arg1[%c0_19, %c2, %c0_20] : memref<1x290x8xbf16, #tpu.memory_space<vmem>>, vector<1x256x8xbf16>
    %42 = vector.shape_cast %41 : vector<1x256x8xbf16> to vector<256x8xbf16>
    %c1_i32_21 = arith.constant 1 : i32
    %43 = vector.broadcast %c1_i32_21 : i32 to vector<256x8xi32>
    %44 = arith.addi %16, %43 : vector<256x8xi32>
    %c0_i32_22 = arith.constant 0 : i32
    %45 = vector.broadcast %c0_i32_22 : i32 to vector<256x8xi32>
    %46 = arith.cmpi sge, %44, %45 : vector<256x8xi32>
    %c1_i32_23 = arith.constant 1 : i32
    %47 = vector.broadcast %c1_i32_23 : i32 to vector<256x8xi32>
    %48 = arith.addi %16, %47 : vector<256x8xi32>
    %c16_i32_24 = arith.constant 16 : i32
    %49 = vector.broadcast %c16_i32_24 : i32 to vector<256x8xi32>
    %50 = arith.cmpi slt, %48, %49 : vector<256x8xi32>
    %51 = arith.andi %46, %50 : vector<256x8xi1>
    %cst_25 = arith.constant 0.000000e+00 : bf16
    %52 = vector.broadcast %cst_25 : bf16 to vector<256x8xbf16>
    %53 = arith.select %51, %42, %52 : vector<256x8xi1>, vector<256x8xbf16>
    %c2_26 = arith.constant 2 : index
    %c0_27 = arith.constant 0 : index
    %c0_28 = arith.constant 0 : index
    %54 = vector.load %arg2[%c2_26, %c0_27, %c0_28] : memref<9x8x128xbf16, #tpu.memory_space<vmem>>, vector<1x8x128xbf16>
    %55 = vector.shape_cast %54 : vector<1x8x128xbf16> to vector<8x128xbf16>
    %cst_29 = arith.constant dense<0.000000e+00> : vector<256x128xf32>
    %56 = tpu.matmul %53, %55, %cst_29 {dimension_numbers = #tpu.dot_dimension_numbers<[1], [0], [0], [1], [0, 0, 1, 1], [], []>} : vector<256x8xbf16>, vector<8x128xbf16>, vector<256x128xf32> -> vector<256x128xf32>
    %57 = arith.addf %40, %56 : vector<256x128xf32>
    %c0_30 = arith.constant 0 : index
    %c16 = arith.constant 16 : index
    %c0_31 = arith.constant 0 : index
    %58 = vector.load %arg1[%c0_30, %c16, %c0_31] : memref<1x290x8xbf16, #tpu.memory_space<vmem>>, vector<1x256x8xbf16>
    %59 = vector.shape_cast %58 : vector<1x256x8xbf16> to vector<256x8xbf16>
    %c-1_i32_32 = arith.constant -1 : i32
    %60 = vector.broadcast %c-1_i32_32 : i32 to vector<256x8xi32>
    %61 = arith.addi %16, %60 : vector<256x8xi32>
    %c0_i32_33 = arith.constant 0 : i32
    %62 = vector.broadcast %c0_i32_33 : i32 to vector<256x8xi32>
    %63 = arith.cmpi sge, %61, %62 : vector<256x8xi32>
    %c-1_i32_34 = arith.constant -1 : i32
    %64 = vector.broadcast %c-1_i32_34 : i32 to vector<256x8xi32>
    %65 = arith.addi %16, %64 : vector<256x8xi32>
    %c16_i32_35 = arith.constant 16 : i32
    %66 = vector.broadcast %c16_i32_35 : i32 to vector<256x8xi32>
    %67 = arith.cmpi slt, %65, %66 : vector<256x8xi32>
    %68 = arith.andi %63, %67 : vector<256x8xi1>
    %cst_36 = arith.constant 0.000000e+00 : bf16
    %69 = vector.broadcast %cst_36 : bf16 to vector<256x8xbf16>
    %70 = arith.select %68, %59, %69 : vector<256x8xi1>, vector<256x8xbf16>
    %c3 = arith.constant 3 : index
    %c0_37 = arith.constant 0 : index
    %c0_38 = arith.constant 0 : index
    %71 = vector.load %arg2[%c3, %c0_37, %c0_38] : memref<9x8x128xbf16, #tpu.memory_space<vmem>>, vector<1x8x128xbf16>
    %72 = vector.shape_cast %71 : vector<1x8x128xbf16> to vector<8x128xbf16>
    %cst_39 = arith.constant dense<0.000000e+00> : vector<256x128xf32>
    %73 = tpu.matmul %70, %72, %cst_39 {dimension_numbers = #tpu.dot_dimension_numbers<[1], [0], [0], [1], [0, 0, 1, 1], [], []>} : vector<256x8xbf16>, vector<8x128xbf16>, vector<256x128xf32> -> vector<256x128xf32>
    %74 = arith.addf %57, %73 : vector<256x128xf32>
    %c0_40 = arith.constant 0 : index
    %c17 = arith.constant 17 : index
    %c0_41 = arith.constant 0 : index
    %75 = vector.load %arg1[%c0_40, %c17, %c0_41] : memref<1x290x8xbf16, #tpu.memory_space<vmem>>, vector<1x256x8xbf16>
    %76 = vector.shape_cast %75 : vector<1x256x8xbf16> to vector<256x8xbf16>
    %c4 = arith.constant 4 : index
    %c0_42 = arith.constant 0 : index
    %c0_43 = arith.constant 0 : index
    %77 = vector.load %arg2[%c4, %c0_42, %c0_43] : memref<9x8x128xbf16, #tpu.memory_space<vmem>>, vector<1x8x128xbf16>
    %78 = vector.shape_cast %77 : vector<1x8x128xbf16> to vector<8x128xbf16>
    %cst_44 = arith.constant dense<0.000000e+00> : vector<256x128xf32>
    %79 = tpu.matmul %76, %78, %cst_44 {dimension_numbers = #tpu.dot_dimension_numbers<[1], [0], [0], [1], [0, 0, 1, 1], [], []>} : vector<256x8xbf16>, vector<8x128xbf16>, vector<256x128xf32> -> vector<256x128xf32>
    %80 = arith.addf %74, %79 : vector<256x128xf32>
    %c0_45 = arith.constant 0 : index
    %c18 = arith.constant 18 : index
    %c0_46 = arith.constant 0 : index
    %81 = vector.load %arg1[%c0_45, %c18, %c0_46] : memref<1x290x8xbf16, #tpu.memory_space<vmem>>, vector<1x256x8xbf16>
    %82 = vector.shape_cast %81 : vector<1x256x8xbf16> to vector<256x8xbf16>
    %c1_i32_47 = arith.constant 1 : i32
    %83 = vector.broadcast %c1_i32_47 : i32 to vector<256x8xi32>
    %84 = arith.addi %16, %83 : vector<256x8xi32>
    %c0_i32_48 = arith.constant 0 : i32
    %85 = vector.broadcast %c0_i32_48 : i32 to vector<256x8xi32>
    %86 = arith.cmpi sge, %84, %85 : vector<256x8xi32>
    %c1_i32_49 = arith.constant 1 : i32
    %87 = vector.broadcast %c1_i32_49 : i32 to vector<256x8xi32>
    %88 = arith.addi %16, %87 : vector<256x8xi32>
    %c16_i32_50 = arith.constant 16 : i32
    %89 = vector.broadcast %c16_i32_50 : i32 to vector<256x8xi32>
    %90 = arith.cmpi slt, %88, %89 : vector<256x8xi32>
    %91 = arith.andi %86, %90 : vector<256x8xi1>
    %cst_51 = arith.constant 0.000000e+00 : bf16
    %92 = vector.broadcast %cst_51 : bf16 to vector<256x8xbf16>
    %93 = arith.select %91, %82, %92 : vector<256x8xi1>, vector<256x8xbf16>
    %c5 = arith.constant 5 : index
    %c0_52 = arith.constant 0 : index
    %c0_53 = arith.constant 0 : index
    %94 = vector.load %arg2[%c5, %c0_52, %c0_53] : memref<9x8x128xbf16, #tpu.memory_space<vmem>>, vector<1x8x128xbf16>
    %95 = vector.shape_cast %94 : vector<1x8x128xbf16> to vector<8x128xbf16>
    %cst_54 = arith.constant dense<0.000000e+00> : vector<256x128xf32>
    %96 = tpu.matmul %93, %95, %cst_54 {dimension_numbers = #tpu.dot_dimension_numbers<[1], [0], [0], [1], [0, 0, 1, 1], [], []>} : vector<256x8xbf16>, vector<8x128xbf16>, vector<256x128xf32> -> vector<256x128xf32>
    %97 = arith.addf %80, %96 : vector<256x128xf32>
    %c0_55 = arith.constant 0 : index
    %c32 = arith.constant 32 : index
    %c0_56 = arith.constant 0 : index
    %98 = vector.load %arg1[%c0_55, %c32, %c0_56] : memref<1x290x8xbf16, #tpu.memory_space<vmem>>, vector<1x256x8xbf16>
    %99 = vector.shape_cast %98 : vector<1x256x8xbf16> to vector<256x8xbf16>
    %c-1_i32_57 = arith.constant -1 : i32
    %100 = vector.broadcast %c-1_i32_57 : i32 to vector<256x8xi32>
    %101 = arith.addi %16, %100 : vector<256x8xi32>
    %c0_i32_58 = arith.constant 0 : i32
    %102 = vector.broadcast %c0_i32_58 : i32 to vector<256x8xi32>
    %103 = arith.cmpi sge, %101, %102 : vector<256x8xi32>
    %c-1_i32_59 = arith.constant -1 : i32
    %104 = vector.broadcast %c-1_i32_59 : i32 to vector<256x8xi32>
    %105 = arith.addi %16, %104 : vector<256x8xi32>
    %c16_i32_60 = arith.constant 16 : i32
    %106 = vector.broadcast %c16_i32_60 : i32 to vector<256x8xi32>
    %107 = arith.cmpi slt, %105, %106 : vector<256x8xi32>
    %108 = arith.andi %103, %107 : vector<256x8xi1>
    %cst_61 = arith.constant 0.000000e+00 : bf16
    %109 = vector.broadcast %cst_61 : bf16 to vector<256x8xbf16>
    %110 = arith.select %108, %99, %109 : vector<256x8xi1>, vector<256x8xbf16>
    %c6 = arith.constant 6 : index
    %c0_62 = arith.constant 0 : index
    %c0_63 = arith.constant 0 : index
    %111 = vector.load %arg2[%c6, %c0_62, %c0_63] : memref<9x8x128xbf16, #tpu.memory_space<vmem>>, vector<1x8x128xbf16>
    %112 = vector.shape_cast %111 : vector<1x8x128xbf16> to vector<8x128xbf16>
    %cst_64 = arith.constant dense<0.000000e+00> : vector<256x128xf32>
    %113 = tpu.matmul %110, %112, %cst_64 {dimension_numbers = #tpu.dot_dimension_numbers<[1], [0], [0], [1], [0, 0, 1, 1], [], []>} : vector<256x8xbf16>, vector<8x128xbf16>, vector<256x128xf32> -> vector<256x128xf32>
    %114 = arith.addf %97, %113 : vector<256x128xf32>
    %c0_65 = arith.constant 0 : index
    %c33 = arith.constant 33 : index
    %c0_66 = arith.constant 0 : index
    %115 = vector.load %arg1[%c0_65, %c33, %c0_66] : memref<1x290x8xbf16, #tpu.memory_space<vmem>>, vector<1x256x8xbf16>
    %116 = vector.shape_cast %115 : vector<1x256x8xbf16> to vector<256x8xbf16>
    %c7 = arith.constant 7 : index
    %c0_67 = arith.constant 0 : index
    %c0_68 = arith.constant 0 : index
    %117 = vector.load %arg2[%c7, %c0_67, %c0_68] : memref<9x8x128xbf16, #tpu.memory_space<vmem>>, vector<1x8x128xbf16>
    %118 = vector.shape_cast %117 : vector<1x8x128xbf16> to vector<8x128xbf16>
    %cst_69 = arith.constant dense<0.000000e+00> : vector<256x128xf32>
    %119 = tpu.matmul %116, %118, %cst_69 {dimension_numbers = #tpu.dot_dimension_numbers<[1], [0], [0], [1], [0, 0, 1, 1], [], []>} : vector<256x8xbf16>, vector<8x128xbf16>, vector<256x128xf32> -> vector<256x128xf32>
    %120 = arith.addf %114, %119 : vector<256x128xf32>
    %c0_70 = arith.constant 0 : index
    %c34 = arith.constant 34 : index
    %c0_71 = arith.constant 0 : index
    %121 = vector.load %arg1[%c0_70, %c34, %c0_71] : memref<1x290x8xbf16, #tpu.memory_space<vmem>>, vector<1x256x8xbf16>
    %122 = vector.shape_cast %121 : vector<1x256x8xbf16> to vector<256x8xbf16>
    %c1_i32_72 = arith.constant 1 : i32
    %123 = vector.broadcast %c1_i32_72 : i32 to vector<256x8xi32>
    %124 = arith.addi %16, %123 : vector<256x8xi32>
    %c0_i32_73 = arith.constant 0 : i32
    %125 = vector.broadcast %c0_i32_73 : i32 to vector<256x8xi32>
    %126 = arith.cmpi sge, %124, %125 : vector<256x8xi32>
    %c1_i32_74 = arith.constant 1 : i32
    %127 = vector.broadcast %c1_i32_74 : i32 to vector<256x8xi32>
    %128 = arith.addi %16, %127 : vector<256x8xi32>
    %c16_i32_75 = arith.constant 16 : i32
    %129 = vector.broadcast %c16_i32_75 : i32 to vector<256x8xi32>
    %130 = arith.cmpi slt, %128, %129 : vector<256x8xi32>
    %131 = arith.andi %126, %130 : vector<256x8xi1>
    %cst_76 = arith.constant 0.000000e+00 : bf16
    %132 = vector.broadcast %cst_76 : bf16 to vector<256x8xbf16>
    %133 = arith.select %131, %122, %132 : vector<256x8xi1>, vector<256x8xbf16>
    %c8 = arith.constant 8 : index
    %c0_77 = arith.constant 0 : index
    %c0_78 = arith.constant 0 : index
    %134 = vector.load %arg2[%c8, %c0_77, %c0_78] : memref<9x8x128xbf16, #tpu.memory_space<vmem>>, vector<1x8x128xbf16>
    %135 = vector.shape_cast %134 : vector<1x8x128xbf16> to vector<8x128xbf16>
    %cst_79 = arith.constant dense<0.000000e+00> : vector<256x128xf32>
    %136 = tpu.matmul %133, %135, %cst_79 {dimension_numbers = #tpu.dot_dimension_numbers<[1], [0], [0], [1], [0, 0, 1, 1], [], []>} : vector<256x8xbf16>, vector<8x128xbf16>, vector<256x128xf32> -> vector<256x128xf32>
    %137 = arith.addf %120, %136 : vector<256x128xf32>
    %c0_80 = arith.constant 0 : index
    %c0_81 = arith.constant 0 : index
    %138 = vector.load %arg3[%c0_80, %c0_81] : memref<1x128xf32, #tpu.memory_space<vmem>>, vector<1x128xf32>
    %139 = vector.broadcast %138 : vector<1x128xf32> to vector<256x128xf32>
    %140 = arith.addf %137, %139 : vector<256x128xf32>
    %cst_82 = arith.constant 0.000000e+00 : f32
    %141 = vector.broadcast %cst_82 : f32 to vector<256x128xf32>
    %142 = arith.maximumf %140, %141 : vector<256x128xf32>
    %143 = vector.shape_cast %142 : vector<256x128xf32> to vector<32x8x128xf32>
    %cst_83 = arith.constant dense<0.000000e+00> : vector<8x128xf32>
    %144 = vector.multi_reduction <add>, %143, %cst_83 [0] : vector<32x8x128xf32> to vector<8x128xf32>
    %cst_84 = arith.constant dense<0.000000e+00> : vector<128xf32>
    %145 = vector.multi_reduction <add>, %144, %cst_84 [0] : vector<8x128xf32> to vector<128xf32>
    %146 = vector.shape_cast %145 : vector<128xf32> to vector<1x128xf32>
    %cst_85 = arith.constant 3.906250e-03 : f32
    %147 = vector.broadcast %cst_85 : f32 to vector<1x128xf32>
    %148 = arith.mulf %146, %147 : vector<1x128xf32>
    %149 = vector.shape_cast %148 : vector<1x128xf32> to vector<1x1x128xf32>
    %c0_86 = arith.constant 0 : index
    %c0_87 = arith.constant 0 : index
    %c0_88 = arith.constant 0 : index
    %150 = vector.load %arg4[%c0_86, %c0_87, %c0_88] : memref<1x1x128xf32, #tpu.memory_space<vmem>>, vector<1x1x128xf32>
    tpu.vector_store %arg4[%c0_86, %c0_87, %c0_88], %149 {strides = array<i32>} : memref<1x1x128xf32, #tpu.memory_space<vmem>>, vector<1x1x128xf32>,
    return
  }
  func.func @transform_0(%arg0: i32) -> (i32, i32, i32) {
    %c0_i32 = arith.constant 0 : i32
    %c0_i32_0 = arith.constant 0 : i32
    %c0_i32_1 = arith.constant 0 : i32
    return %arg0, %c0_i32, %c0_i32_0 : i32, i32, i32
  }
  func.func @transform_1(%arg0: i32) -> (i32, i32, i32) {
    %c0_i32 = arith.constant 0 : i32
    %c0_i32_0 = arith.constant 0 : i32
    %c0_i32_1 = arith.constant 0 : i32
    %c0_i32_2 = arith.constant 0 : i32
    return %c0_i32, %c0_i32_0, %c0_i32_1 : i32, i32, i32
  }
  func.func @transform_2(%arg0: i32) -> (i32, i32) {
    %c0_i32 = arith.constant 0 : i32
    %c0_i32_0 = arith.constant 0 : i32
    %c0_i32_1 = arith.constant 0 : i32
    return %c0_i32, %c0_i32_0 : i32, i32
  }
  func.func @transform_3(%arg0: i32) -> (i32, i32, i32) {
    %c0_i32 = arith.constant 0 : i32
    %c0_i32_0 = arith.constant 0 : i32
    %c0_i32_1 = arith.constant 0 : i32
    return %arg0, %c0_i32, %c0_i32_0 : i32, i32, i32
  }
}

</mosaic_0001>

<llo_original>
// kernel: tpu_custom_call.1
$region0: #{tpu_custom_call.1}
  #allocation0 [shape = 'u32[]', space=smem, size = 0x4, offset = 0x4, fixed_abs, tag = 'smem constant byte address 0x4 - core index']
  #allocation1 [shape = 'u32[144,128]{1,0:T(1,128)}', space=vmem, size = 0x12000, scoped, tag = 'internal scratch']
  %s0 = inlined_call_operand.vmem [shape: bf16[2,290,8], index: 0, kind: input, shape index: {}]
  %s1 = inlined_call_operand.vmem [shape: bf16[9,8,128], index: 1, kind: input, shape index: {}]
  %s2 = inlined_call_operand.vmem [shape: f32[1,128], index: 2, kind: input, shape index: {}]
  %s3 = inlined_call_operand.hbm [shape: f32[2,1,128], index: 3, kind: output, shape index: {}]
  %s4 = sld [smem:[#allocation0]]
  $region45: #{tpu_custom_call.1} parent=0
    _
  %s6 = ssub.s32 1, %s4
  %s7 = scalar_select 0, %s6, %s4
  $region1: #{tpu_custom_call.1} parent=0
    #allocation2 [shape = 'u8[1024]{0}', space=vmem, size = 0x400, scoped, tag = 'output window, operand 0']
    #allocation3 [shape = 's32[2]{0}', space=sflag, size = 0x8, scoped, tag = 'scoped memory for tpu_custom_call.1']
    %8 = vsyncpa [#allocation3], 0
    %s9 = scalar_lea.sflag [#allocation3], 1
    %10 = vsyncpa %s9, 0
    loop: start=0, step=1, limit=4
    $region2: #{tpu_custom_call.1} parent=1 // loop_pre_header
      _
    $region3: #{tpu_custom_call.1} parent=1 // loop_header
      %s12 = sphi 0, %s16
      %p13 = scmp.ge.s32.totalorder %s12, 4
      %s22 = sphi 0, %s24
      %s25 = sphi 0, %s22
      %s26 = sphi 0, %s25
      %s42 = sphi 0, %s26
      %s46 = sphi 0, %s46
      %s48 = sphi 0, %s46
      %s49 = sphi 0, %s48
      %s63 = sphi 0, %s49
      %s67 = sphi 0, %s67
      %s69 = sphi 0, %s67
      %s70 = sphi 0, %s69
      %s84 = sphi 0, %s70
      %s90 = sphi 0, %s92
      %s93 = sphi 0, %s90
      %s94 = sphi 0, %s93
      %s110 = sphi 0, %s94
    $region4: #{tpu_custom_call.1} parent=1 // loop_header_branch
      %15 = sbr.rel (%p13) target = $region8
    $region5: #{tpu_custom_call.1} parent=1 // loop_body
      %s17 = ssub.s32 %s12, 1
      %s18 = ssub.s32 %s12, 2
      %s19 = sadd.s32 %s12, 1
      %s20 = ssub.s32 %s12, %s19
      %p21 = scmp.eq.s32.totalorder %s20, 0
      %s23 = sadd.s32 %s22, 1
      %s24 = scalar_select %p21, %s22, %s23
      %p27 = pneg %p21
      %p28 = scmp.eq.s32.totalorder %s12, 1
      %p29 = por %p27, %p28
      %p30 = scmp.ne.s32.totalorder %s22, %s25
      %p31 = scmp.eq.s32.totalorder %s12, 0
      %p32 = por %p30, %p31
      %p33 = scmp.ne.s32.totalorder %s22, %s25
      %p34 = scmp.eq.s32.totalorder %s17, 1
      %p35 = por %p33, %p34
      %p36 = scmp.ne.s32.totalorder %s25, %s26
      %p37 = scmp.eq.s32.totalorder %s17, 0
      %p38 = por %p36, %p37
      %p39 = scmp.ne.s32.totalorder %s25, %s26
      %p40 = scmp.eq.s32.totalorder %s18, 1
      %p41 = por %p39, %p40
      %p43 = scmp.ne.s32.totalorder %s26, %s42
      %p44 = scmp.eq.s32.totalorder %s18, 0
      %p45 = por %p43, %p44
      %s47 = sadd.s32 %s46, 1
      %p50 = scmp.eq.s32.totalorder %s12, 1
      %p51 = scmp.ne.s32.totalorder %s46, %s48
      %p52 = scmp.eq.s32.totalorder %s12, 0
      %p53 = por %p51, %p52
      %p54 = scmp.ne.s32.totalorder %s46, %s48
      %p55 = scmp.eq.s32.totalorder %s17, 1
      %p56 = por %p54, %p55
      %p57 = scmp.ne.s32.totalorder %s48, %s49
      %p58 = scmp.eq.s32.totalorder %s17, 0
      %p59 = por %p57, %p58
      %p60 = scmp.ne.s32.totalorder %s48, %s49
      %p61 = scmp.eq.s32.totalorder %s18, 1
      %p62 = por %p60, %p61
      %p64 = scmp.ne.s32.totalorder %s49, %s63
      %p65 = scmp.eq.s32.totalorder %s18, 0
      %p66 = por %p64, %p65
      %s68 = sadd.s32 %s67, 1
      %p71 = scmp.eq.s32.totalorder %s12, 1
      %p72 = scmp.ne.s32.totalorder %s67, %s69
      %p73 = scmp.eq.s32.totalorder %s12, 0
      %p74 = por %p72, %p73
      %p75 = scmp.ne.s32.totalorder %s67, %s69
      %p76 = scmp.eq.s32.totalorder %s17, 1
      %p77 = por %p75, %p76
      %p78 = scmp.ne.s32.totalorder %s69, %s70
      %p79 = scmp.eq.s32.totalorder %s17, 0
      %p80 = por %p78, %p79
      %p81 = scmp.ne.s32.totalorder %s69, %s70
      %p82 = scmp.eq.s32.totalorder %s18, 1
      %p83 = por %p81, %p82
      %p85 = scmp.ne.s32.totalorder %s70, %s84
      %p86 = scmp.eq.s32.totalorder %s18, 0
      %p87 = por %p85, %p86
      %s88 = ssub.s32 %s12, %s19
      %p89 = scmp.eq.s32.totalorder %s88, 0
      %s91 = sadd.s32 %s90, 1
      %s92 = scalar_select %p89, %s90, %s91
      %p95 = pneg %p89
      %p96 = scmp.eq.s32.totalorder %s12, 1
      %p97 = por %p95, %p96
      %p98 = scmp.ne.s32.totalorder %s90, %s93
      %p99 = scmp.eq.s32.totalorder %s12, 0
      %p100 = por %p98, %p99
      %p101 = scmp.ne.s32.totalorder %s90, %s93
      %p102 = scmp.eq.s32.totalorder %s17, 1
      %p103 = por %p101, %p102
      %p104 = scmp.ne.s32.totalorder %s93, %s94
      %p105 = scmp.eq.s32.totalorder %s17, 0
      %p106 = por %p104, %p105
      %p107 = scmp.ne.s32.totalorder %s93, %s94
      %p108 = scmp.eq.s32.totalorder %s18, 1
      %p109 = por %p107, %p108
      %p111 = scmp.ne.s32.totalorder %s94, %s110
      %p112 = scmp.eq.s32.totalorder %s18, 0
      %p113 = por %p111, %p112
      %p114 = scmp.le.s32.totalorder 1, %s12
      %p115 = scmp.lt.s32.totalorder %s12, 3
      %p116 = pnand %p114, %p115
      %p117 = pneg %p116
      // Predicated region
      $region9: #{tpu_custom_call.1} parent=5 // pred_check
        _
      $region10: #{tpu_custom_call.1} parent=5 // pred_check_branch
        %119 = sbr.rel (%p116) target = $region12
      $region11: #{tpu_custom_call.1} parent=5 // pred_region
        %s120 = ssub.s32 %s12, 1
        // Predicated region
        $region13: #{tpu_custom_call.1} parent=11 // pred_check
          %p121 = pneg %p59
        $region14: #{tpu_custom_call.1} parent=11 // pred_check_branch
          %123 = sbr.rel (%p121) target = $region16
        $region15: #{tpu_custom_call.1} parent=11 // pred_region
          _
        $region16: #{tpu_custom_call.1} parent=11 // pred_fallthru
          _
        // Predicated region
        $region17: #{tpu_custom_call.1} parent=11 // pred_check
          %p124 = pneg %p80
        $region18: #{tpu_custom_call.1} parent=11 // pred_check_branch
          %126 = sbr.rel (%p124) target = $region20
        $region19: #{tpu_custom_call.1} parent=11 // pred_region
          _
        $region20: #{tpu_custom_call.1} parent=11 // pred_fallthru
          _
      $region12: #{tpu_custom_call.1} parent=5 // pred_fallthru
        _
      %p127 = scmp.lt.s32.totalorder %s12, 2
      // Predicated region
      $region21: #{tpu_custom_call.1} parent=5 // pred_check
        %p128 = pneg %p127
      $region22: #{tpu_custom_call.1} parent=5 // pred_check_branch
        %130 = sbr.rel (%p128) target = $region24
      $region23: #{tpu_custom_call.1} parent=5 // pred_region
        // Predicated region
        $region25: #{tpu_custom_call.1} parent=23 // pred_check
          %p131 = pneg %p32
        $region26: #{tpu_custom_call.1} parent=23 // pred_check_branch
          %133 = sbr.rel (%p131) target = $region28
        $region27: #{tpu_custom_call.1} parent=23 // pred_region
          %p134 = scmp.lt.s32.totalorder %s12, 1
          %s135 = scalar_select %p134, %s12, 1
          %s136 = smul.addr %s135, 37
          %s137 = smul.addr %s136, 4
          %s138 = scalar_lea.vmem %s0, %s137
        $region28: #{tpu_custom_call.1} parent=23 // pred_fallthru
          _
      $region24: #{tpu_custom_call.1} parent=5 // pred_fallthru
        _
      %p139 = scmp.le.s32.totalorder 1, %s12
      %p140 = scmp.lt.s32.totalorder %s12, 3
      %p141 = pnand %p139, %p140
      %p142 = pneg %p141
      // Predicated region
      $region29: #{tpu_custom_call.1} parent=5 // pred_check
        _
      $region30: #{tpu_custom_call.1} parent=5 // pred_check_branch
        %144 = sbr.rel (%p141) target = $region32
      $region31: #{tpu_custom_call.1} parent=5 // pred_region
        %s145 = ssub.s32 %s12, 1
        %p146 = scmp.lt.s32.totalorder %s17, 1
        %s147 = scalar_select %p146, %s17, 1
        %s148 = smul.addr %s147, 37
        %s149 = smul.addr %s148, 4
        %s150 = scalar_lea.vmem %s0, %s149
        %p151 = pneg %p38
        %p152 = pneg %p35
        %p153 = pneg %p59
        %p154 = pneg %p56
        %p155 = pneg %p80
        %p156 = pneg %p77
        %p157 = pneg %p106
        %p158 = pneg %p103
        %s159 = sand.u32 %s93, 1
        %s160 = scalar_lea.sflag [#allocation3], %s159
        %s161 = sand.u32 %s93, 1
        %s162 = scalar_lea.vmem [#allocation2], %s161
        %p163 = scmp.lt.s32.totalorder %s17, 1
        %s164 = scalar_select %p163, %s17, 1
        %s165 = smul.addr %s164, 37
        %s166 = smul.addr %s165, 4
        %s167 = scalar_lea.vmem %s0, %s166
        %v171 = vlaneseq
        %v172 = vshrl.u32 %v171, 7
        %v173 = vadd.s32 %v172, 8
        %v174 = vadd.s32 %v172, 16
        %v175 = vadd.s32 %v172, 24
        %v176 = vadd.s32 %v172, 32
        %v177 = vadd.s32 %v172, 40
        %v178 = vadd.s32 %v172, 48
        %v179 = vadd.s32 %v172, 56
        %v180 = vadd.s32 %v172, 64
        %v181 = vadd.s32 %v172, 72
        %v182 = vadd.s32 %v172, 80
        %v183 = vadd.s32 %v172, 88
        %v184 = vadd.s32 %v172, 96
        %v185 = vadd.s32 %v172, 104
        %v186 = vadd.s32 %v172, 112
        %v187 = vadd.s32 %v172, 120
        %v188 = vadd.s32 %v172, 128
        %v189 = vadd.s32 %v172, 136
        %v190 = vadd.s32 %v172, 144
        %v191 = vadd.s32 %v172, 152
        %v192 = vadd.s32 %v172, 160
        %v193 = vadd.s32 %v172, 168
        %v194 = vadd.s32 %v172, 176
        %v195 = vadd.s32 %v172, 184
        %v196 = vadd.s32 %v172, 192
        %v197 = vadd.s32 %v172, 200
        %v198 = vadd.s32 %v172, 208
        %v199 = vadd.s32 %v172, 216
        %v200 = vadd.s32 %v172, 224
        %v201 = vadd.s32 %v172, 232
        %v202 = vadd.s32 %v172, 240
        %v203 = vadd.s32 %v172, 248
        %vm204 = vcmp.lt.s32.totalorder %v172, 0
        %v205 = vsub.s32 0, %v172
        %v206 = vsel %vm204, %v205, %v172
        %v207 = vshrl.u32 %v206, 4
        %v208 = vand.u32 %v206, 15
        %v209 = vsub.s32 0, %v208
        %v210 = vsel %vm204, %v209, %v208
        %vm211 = vcmp.lt.s32.totalorder %v173, 0
        %v212 = vsub.s32 0, %v173
        %v213 = vsel %vm211, %v212, %v173
        %v214 = vshrl.u32 %v213, 4
        %v215 = vand.u32 %v213, 15
        %v216 = vsub.s32 0, %v215
        %v217 = vsel %vm211, %v216, %v215
        %vm218 = vcmp.lt.s32.totalorder %v174, 0
        %v219 = vsub.s32 0, %v174
        %v220 = vsel %vm218, %v219, %v174
        %v221 = vshrl.u32 %v220, 4
        %v222 = vand.u32 %v220, 15
        %v223 = vsub.s32 0, %v222
        %v224 = vsel %vm218, %v223, %v222
        %vm225 = vcmp.lt.s32.totalorder %v175, 0
        %v226 = vsub.s32 0, %v175
        %v227 = vsel %vm225, %v226, %v175
        %v228 = vshrl.u32 %v227, 4
        %v229 = vand.u32 %v227, 15
        %v230 = vsub.s32 0, %v229
        %v231 = vsel %vm225, %v230, %v229
        %vm232 = vcmp.lt.s32.totalorder %v176, 0
        %v233 = vsub.s32 0, %v176
        %v234 = vsel %vm232, %v233, %v176
        %v235 = vshrl.u32 %v234, 4
        %v236 = vand.u32 %v234, 15
        %v237 = vsub.s32 0, %v236
        %v238 = vsel %vm232, %v237, %v236
        %vm239 = vcmp.lt.s32.totalorder %v177, 0
        %v240 = vsub.s32 0, %v177
        %v241 = vsel %vm239, %v240, %v177
        %v242 = vshrl.u32 %v241, 4
        %v243 = vand.u32 %v241, 15
        %v244 = vsub.s32 0, %v243
        %v245 = vsel %vm239, %v244, %v243
        %vm246 = vcmp.lt.s32.totalorder %v178, 0
        %v247 = vsub.s32 0, %v178
        %v248 = vsel %vm246, %v247, %v178
        %v249 = vshrl.u32 %v248, 4
        %v250 = vand.u32 %v248, 15
        %v251 = vsub.s32 0, %v250
        %v252 = vsel %vm246, %v251, %v250
        %vm253 = vcmp.lt.s32.totalorder %v179, 0
        %v254 = vsub.s32 0, %v179
        %v255 = vsel %vm253, %v254, %v179
        %v256 = vshrl.u32 %v255, 4
        %v257 = vand.u32 %v255, 15
        %v258 = vsub.s32 0, %v257
        %v259 = vsel %vm253, %v258, %v257
        %vm260 = vcmp.lt.s32.totalorder %v180, 0
        %v261 = vsub.s32 0, %v180
        %v262 = vsel %vm260, %v261, %v180
        %v263 = vshrl.u32 %v262, 4
        %v264 = vand.u32 %v262, 15
        %v265 = vsub.s32 0, %v264
        %v266 = vsel %vm260, %v265, %v264
        %vm267 = vcmp.lt.s32.totalorder %v181, 0
        %v268 = vsub.s32 0, %v181
        %v269 = vsel %vm267, %v268, %v181
        %v270 = vshrl.u32 %v269, 4
        %v271 = vand.u32 %v269, 15
        %v272 = vsub.s32 0, %v271
        %v273 = vsel %vm267, %v272, %v271
        %vm274 = vcmp.lt.s32.totalorder %v182, 0
        %v275 = vsub.s32 0, %v182
        %v276 = vsel %vm274, %v275, %v182
        %v277 = vshrl.u32 %v276, 4
        %v278 = vand.u32 %v276, 15
        %v279 = vsub.s32 0, %v278
        %v280 = vsel %vm274, %v279, %v278
        %vm281 = vcmp.lt.s32.totalorder %v183, 0
        %v282 = vsub.s32 0, %v183
        %v283 = vsel %vm281, %v282, %v183
        %v284 = vshrl.u32 %v283, 4
        %v285 = vand.u32 %v283, 15
        %v286 = vsub.s32 0, %v285
        %v287 = vsel %vm281, %v286, %v285
        %vm288 = vcmp.lt.s32.totalorder %v184, 0
        %v289 = vsub.s32 0, %v184
        %v290 = vsel %vm288, %v289, %v184
        %v291 = vshrl.u32 %v290, 4
        %v292 = vand.u32 %v290, 15
        %v293 = vsub.s32 0, %v292
        %v294 = vsel %vm288, %v293, %v292
        %vm295 = vcmp.lt.s32.totalorder %v185, 0
        %v296 = vsub.s32 0, %v185
        %v297 = vsel %vm295, %v296, %v185
        %v298 = vshrl.u32 %v297, 4
        %v299 = vand.u32 %v297, 15
        %v300 = vsub.s32 0, %v299
        %v301 = vsel %vm295, %v300, %v299
        %vm302 = vcmp.lt.s32.totalorder %v186, 0
        %v303 = vsub.s32 0, %v186
        %v304 = vsel %vm302, %v303, %v186
        %v305 = vshrl.u32 %v304, 4
        %v306 = vand.u32 %v304, 15
        %v307 = vsub.s32 0, %v306
        %v308 = vsel %vm302, %v307, %v306
        %vm309 = vcmp.lt.s32.totalorder %v187, 0
        %v310 = vsub.s32 0, %v187
        %v311 = vsel %vm309, %v310, %v187
        %v312 = vshrl.u32 %v311, 4
        %v313 = vand.u32 %v311, 15
        %v314 = vsub.s32 0, %v313
        %v315 = vsel %vm309, %v314, %v313
        %vm316 = vcmp.lt.s32.totalorder %v188, 0
        %v317 = vsub.s32 0, %v188
        %v318 = vsel %vm316, %v317, %v188
        %v319 = vshrl.u32 %v318, 4
        %v320 = vand.u32 %v318, 15
        %v321 = vsub.s32 0, %v320
        %v322 = vsel %vm316, %v321, %v320
        %vm323 = vcmp.lt.s32.totalorder %v189, 0
        %v324 = vsub.s32 0, %v189
        %v325 = vsel %vm323, %v324, %v189
        %v326 = vshrl.u32 %v325, 4
        %v327 = vand.u32 %v325, 15
        %v328 = vsub.s32 0, %v327
        %v329 = vsel %vm323, %v328, %v327
        %vm330 = vcmp.lt.s32.totalorder %v190, 0
        %v331 = vsub.s32 0, %v190
        %v332 = vsel %vm330, %v331, %v190
        %v333 = vshrl.u32 %v332, 4
        %v334 = vand.u32 %v332, 15
        %v335 = vsub.s32 0, %v334
        %v336 = vsel %vm330, %v335, %v334
        %vm337 = vcmp.lt.s32.totalorder %v191, 0
        %v338 = vsub.s32 0, %v191
        %v339 = vsel %vm337, %v338, %v191
        %v340 = vshrl.u32 %v339, 4
        %v341 = vand.u32 %v339, 15
        %v342 = vsub.s32 0, %v341
        %v343 = vsel %vm337, %v342, %v341
        %vm344 = vcmp.lt.s32.totalorder %v192, 0
        %v345 = vsub.s32 0, %v192
        %v346 = vsel %vm344, %v345, %v192
        %v347 = vshrl.u32 %v346, 4
        %v348 = vand.u32 %v346, 15
        %v349 = vsub.s32 0, %v348
        %v350 = vsel %vm344, %v349, %v348
        %vm351 = vcmp.lt.s32.totalorder %v193, 0
        %v352 = vsub.s32 0, %v193
        %v353 = vsel %vm351, %v352, %v193
        %v354 = vshrl.u32 %v353, 4
        %v355 = vand.u32 %v353, 15
        %v356 = vsub.s32 0, %v355
        %v357 = vsel %vm351, %v356, %v355
        %vm358 = vcmp.lt.s32.totalorder %v194, 0
        %v359 = vsub.s32 0, %v194
        %v360 = vsel %vm358, %v359, %v194
        %v361 = vshrl.u32 %v360, 4
        %v362 = vand.u32 %v360, 15
        %v363 = vsub.s32 0, %v362
        %v364 = vsel %vm358, %v363, %v362
        %vm365 = vcmp.lt.s32.totalorder %v195, 0
        %v366 = vsub.s32 0, %v195
        %v367 = vsel %vm365, %v366, %v195
        %v368 = vshrl.u32 %v367, 4
        %v369 = vand.u32 %v367, 15
        %v370 = vsub.s32 0, %v369
        %v371 = vsel %vm365, %v370, %v369
        %vm372 = vcmp.lt.s32.totalorder %v196, 0
        %v373 = vsub.s32 0, %v196
        %v374 = vsel %vm372, %v373, %v196
        %v375 = vshrl.u32 %v374, 4
        %v376 = vand.u32 %v374, 15
        %v377 = vsub.s32 0, %v376
        %v378 = vsel %vm372, %v377, %v376
        %vm379 = vcmp.lt.s32.totalorder %v197, 0
        %v380 = vsub.s32 0, %v197
        %v381 = vsel %vm379, %v380, %v197
        %v382 = vshrl.u32 %v381, 4
        %v383 = vand.u32 %v381, 15
        %v384 = vsub.s32 0, %v383
        %v385 = vsel %vm379, %v384, %v383
        %vm386 = vcmp.lt.s32.totalorder %v198, 0
        %v387 = vsub.s32 0, %v198
        %v388 = vsel %vm386, %v387, %v198
        %v389 = vshrl.u32 %v388, 4
        %v390 = vand.u32 %v388, 15
        %v391 = vsub.s32 0, %v390
        %v392 = vsel %vm386, %v391, %v390
        %vm393 = vcmp.lt.s32.totalorder %v199, 0
        %v394 = vsub.s32 0, %v199
        %v395 = vsel %vm393, %v394, %v199
        %v396 = vshrl.u32 %v395, 4
        %v397 = vand.u32 %v395, 15
        %v398 = vsub.s32 0, %v397
        %v399 = vsel %vm393, %v398, %v397
        %vm400 = vcmp.lt.s32.totalorder %v200, 0
        %v401 = vsub.s32 0, %v200
        %v402 = vsel %vm400, %v401, %v200
        %v403 = vshrl.u32 %v402, 4
        %v404 = vand.u32 %v402, 15
        %v405 = vsub.s32 0, %v404
        %v406 = vsel %vm400, %v405, %v404
        %vm407 = vcmp.lt.s32.totalorder %v201, 0
        %v408 = vsub.s32 0, %v201
        %v409 = vsel %vm407, %v408, %v201
        %v410 = vshrl.u32 %v409, 4
        %v411 = vand.u32 %v409, 15
        %v412 = vsub.s32 0, %v411
        %v413 = vsel %vm407, %v412, %v411
        %vm414 = vcmp.lt.s32.totalorder %v202, 0
        %v415 = vsub.s32 0, %v202
        %v416 = vsel %vm414, %v415, %v202
        %v417 = vshrl.u32 %v416, 4
        %v418 = vand.u32 %v416, 15
        %v419 = vsub.s32 0, %v418
        %v420 = vsel %vm414, %v419, %v418
        %vm421 = vcmp.lt.s32.totalorder %v203, 0
        %v422 = vsub.s32 0, %v203
        %v423 = vsel %vm421, %v422, %v203
        %v424 = vshrl.u32 %v423, 4
        %v425 = vand.u32 %v423, 15
        %v426 = vsub.s32 0, %v425
        %v427 = vsel %vm421, %v426, %v425
        %vm428 = vcmp.ne.s32.totalorder %v210, 0
        %vm429 = vcmp.ne.s32.totalorder %v217, 0
        %vm430 = vcmp.ne.s32.totalorder %v224, 0
        %vm431 = vcmp.ne.s32.totalorder %v231, 0
        %vm432 = vcmp.ne.s32.totalorder %v238, 0
        %vm433 = vcmp.ne.s32.totalorder %v245, 0
        %vm434 = vcmp.ne.s32.totalorder %v252, 0
        %vm435 = vcmp.ne.s32.totalorder %v259, 0
        %vm436 = vcmp.ne.s32.totalorder %v266, 0
        %vm437 = vcmp.ne.s32.totalorder %v273, 0
        %vm438 = vcmp.ne.s32.totalorder %v280, 0
        %vm439 = vcmp.ne.s32.totalorder %v287, 0
        %vm440 = vcmp.ne.s32.totalorder %v294, 0
        %vm441 = vcmp.ne.s32.totalorder %v301, 0
        %vm442 = vcmp.ne.s32.totalorder %v308, 0
        %vm443 = vcmp.ne.s32.totalorder %v315, 0
        %vm444 = vcmp.ne.s32.totalorder %v322, 0
        %vm445 = vcmp.ne.s32.totalorder %v329, 0
        %vm446 = vcmp.ne.s32.totalorder %v336, 0
        %vm447 = vcmp.ne.s32.totalorder %v343, 0
        %vm448 = vcmp.ne.s32.totalorder %v350, 0
        %vm449 = vcmp.ne.s32.totalorder %v357, 0
        %vm450 = vcmp.ne.s32.totalorder %v364, 0
        %vm451 = vcmp.ne.s32.totalorder %v371, 0
        %vm452 = vcmp.ne.s32.totalorder %v378, 0
        %vm453 = vcmp.ne.s32.totalorder %v385, 0
        %vm454 = vcmp.ne.s32.totalorder %v392, 0
        %vm455 = vcmp.ne.s32.totalorder %v399, 0
        %vm456 = vcmp.ne.s32.totalorder %v406, 0
        %vm457 = vcmp.ne.s32.totalorder %v413, 0
        %vm458 = vcmp.ne.s32.totalorder %v420, 0
        %vm459 = vcmp.ne.s32.totalorder %v427, 0
        %vm460 = vcmp.lt.s32.totalorder %v210, 0
        %vm461 = vcmp.lt.s32.totalorder %v217, 0
        %vm462 = vcmp.lt.s32.totalorder %v224, 0
        %vm463 = vcmp.lt.s32.totalorder %v231, 0
        %vm464 = vcmp.lt.s32.totalorder %v238, 0
        %vm465 = vcmp.lt.s32.totalorder %v245, 0
        %vm466 = vcmp.lt.s32.totalorder %v252, 0
        %vm467 = vcmp.lt.s32.totalorder %v259, 0
        %vm468 = vcmp.lt.s32.totalorder %v266, 0
        %vm469 = vcmp.lt.s32.totalorder %v273, 0
        %vm470 = vcmp.lt.s32.totalorder %v280, 0
        %vm471 = vcmp.lt.s32.totalorder %v287, 0
        %vm472 = vcmp.lt.s32.totalorder %v294, 0
        %vm473 = vcmp.lt.s32.totalorder %v301, 0
        %vm474 = vcmp.lt.s32.totalorder %v308, 0
        %vm475 = vcmp.lt.s32.totalorder %v315, 0
        %vm476 = vcmp.lt.s32.totalorder %v322, 0
        %vm477 = vcmp.lt.s32.totalorder %v329, 0
        %vm478 = vcmp.lt.s32.totalorder %v336, 0
        %vm479 = vcmp.lt.s32.totalorder %v343, 0
        %vm480 = vcmp.lt.s32.totalorder %v350, 0
        %vm481 = vcmp.lt.s32.totalorder %v357, 0
        %vm482 = vcmp.lt.s32.totalorder %v364, 0
        %vm483 = vcmp.lt.s32.totalorder %v371, 0
        %vm484 = vcmp.lt.s32.totalorder %v378, 0
        %vm485 = vcmp.lt.s32.totalorder %v385, 0
        %vm486 = vcmp.lt.s32.totalorder %v392, 0
        %vm487 = vcmp.lt.s32.totalorder %v399, 0
        %vm488 = vcmp.lt.s32.totalorder %v406, 0
        %vm489 = vcmp.lt.s32.totalorder %v413, 0
        %vm490 = vcmp.lt.s32.totalorder %v420, 0
        %vm491 = vcmp.lt.s32.totalorder %v427, 0
        %vm492 = vmand %vm460, %vm428
        %vm493 = vmand %vm461, %vm429
        %vm494 = vmand %vm462, %vm430
        %vm495 = vmand %vm463, %vm431
        %vm496 = vmand %vm464, %vm432
        %vm497 = vmand %vm465, %vm433
        %vm498 = vmand %vm466, %vm434
        %vm499 = vmand %vm467, %vm435
        %vm500 = vmand %vm468, %vm436
        %vm501 = vmand %vm469, %vm437
        %vm502 = vmand %vm470, %vm438
        %vm503 = vmand %vm471, %vm439
        %vm504 = vmand %vm472, %vm440
        %vm505 = vmand %vm473, %vm441
        %vm506 = vmand %vm474, %vm442
        %vm507 = vmand %vm475, %vm443
        %vm508 = vmand %vm476, %vm444
        %vm509 = vmand %vm477, %vm445
        %vm510 = vmand %vm478, %vm446
        %vm511 = vmand %vm479, %vm447
        %vm512 = vmand %vm480, %vm448
        %vm513 = vmand %vm481, %vm449
        %vm514 = vmand %vm482, %vm450
        %vm515 = vmand %vm483, %vm451
        %vm516 = vmand %vm484, %vm452
        %vm517 = vmand %vm485, %vm453
        %vm518 = vmand %vm486, %vm454
        %vm519 = vmand %vm487, %vm455
        %vm520 = vmand %vm488, %vm456
        %vm521 = vmand %vm489, %vm457
        %vm522 = vmand %vm490, %vm458
        %vm523 = vmand %vm491, %vm459
        %v524 = vadd.s32 %v210, 16
        %v525 = vadd.s32 %v217, 16
        %v526 = vadd.s32 %v224, 16
        %v527 = vadd.s32 %v231, 16
        %v528 = vadd.s32 %v238, 16
        %v529 = vadd.s32 %v245, 16
        %v530 = vadd.s32 %v252, 16
        %v531 = vadd.s32 %v259, 16
        %v532 = vadd.s32 %v266, 16
        %v533 = vadd.s32 %v273, 16
        %v534 = vadd.s32 %v280, 16
        %v535 = vadd.s32 %v287, 16
        %v536 = vadd.s32 %v294, 16
        %v537 = vadd.s32 %v301, 16
        %v538 = vadd.s32 %v308, 16
        %v539 = vadd.s32 %v315, 16
        %v540 = vadd.s32 %v322, 16
        %v541 = vadd.s32 %v329, 16
        %v542 = vadd.s32 %v336, 16
        %v543 = vadd.s32 %v343, 16
        %v544 = vadd.s32 %v350, 16
        %v545 = vadd.s32 %v357, 16
        %v546 = vadd.s32 %v364, 16
        %v547 = vadd.s32 %v371, 16
        %v548 = vadd.s32 %v378, 16
        %v549 = vadd.s32 %v385, 16
        %v550 = vadd.s32 %v392, 16
        %v551 = vadd.s32 %v399, 16
        %v552 = vadd.s32 %v406, 16
        %v553 = vadd.s32 %v413, 16
        %v554 = vadd.s32 %v420, 16
        %v555 = vadd.s32 %v427, 16
        %v556 = vsel %vm492, %v524, %v210
        %v557 = vsel %vm493, %v525, %v217
        %v558 = vsel %vm494, %v526, %v224
        %v559 = vsel %vm495, %v527, %v231
        %v560 = vsel %vm496, %v528, %v238
        %v561 = vsel %vm497, %v529, %v245
        %v562 = vsel %vm498, %v530, %v252
        %v563 = vsel %vm499, %v531, %v259
        %v564 = vsel %vm500, %v532, %v266
        %v565 = vsel %vm501, %v533, %v273
        %v566 = vsel %vm502, %v534, %v280
        %v567 = vsel %vm503, %v535, %v287
        %v568 = vsel %vm504, %v536, %v294
        %v569 = vsel %vm505, %v537, %v301
        %v570 = vsel %vm506, %v538, %v308
        %v571 = vsel %vm507, %v539, %v315
        %v572 = vsel %vm508, %v540, %v322
        %v573 = vsel %vm509, %v541, %v329
        %v574 = vsel %vm510, %v542, %v336
        %v575 = vsel %vm511, %v543, %v343
        %v576 = vsel %vm512, %v544, %v350
        %v577 = vsel %vm513, %v545, %v357
        %v578 = vsel %vm514, %v546, %v364
        %v579 = vsel %vm515, %v547, %v371
        %v580 = vsel %vm516, %v548, %v378
        %v581 = vsel %vm517, %v549, %v385
        %v582 = vsel %vm518, %v550, %v392
        %v583 = vsel %vm519, %v551, %v399
        %v584 = vsel %vm520, %v552, %v406
        %v585 = vsel %vm521, %v553, %v413
        %v586 = vsel %vm522, %v554, %v420
        %v587 = vsel %vm523, %v555, %v427
        %v588 = vld [vmem:[%s167] sm:$0xf]
        %v589 = vld [vmem:[%s167 + $0x4] sm:$0xf]
        %v590 = vld [vmem:[%s167 + $0x8] sm:$0xf]
        %v591 = vld [vmem:[%s167 + $0xc] sm:$0xf]
        %v592 = vld [vmem:[%s167 + $0x10] sm:$0xf]
        %v593 = vld [vmem:[%s167 + $0x14] sm:$0xf]
        %v594 = vld [vmem:[%s167 + $0x18] sm:$0xf]
        %v595 = vld [vmem:[%s167 + $0x1c] sm:$0xf]
        %v596 = vld [vmem:[%s167 + $0x20] sm:$0xf]
        %v597 = vld [vmem:[%s167 + $0x24] sm:$0xf]
        %v598 = vld [vmem:[%s167 + $0x28] sm:$0xf]
        %v599 = vld [vmem:[%s167 + $0x2c] sm:$0xf]
        %v600 = vld [vmem:[%s167 + $0x30] sm:$0xf]
        %v601 = vld [vmem:[%s167 + $0x34] sm:$0xf]
        %v602 = vld [vmem:[%s167 + $0x38] sm:$0xf]
        %v603 = vld [vmem:[%s167 + $0x3c] sm:$0xf]
        %v604 = vld [vmem:[%s167 + $0x40] sm:$0xf]
        %v605 = vld [vmem:[%s167 + $0x44] sm:$0xf]
        %v606 = vld [vmem:[%s167 + $0x48] sm:$0xf]
        %v607 = vld [vmem:[%s167 + $0x4c] sm:$0xf]
        %v608 = vld [vmem:[%s167 + $0x50] sm:$0xf]
        %v609 = vld [vmem:[%s167 + $0x54] sm:$0xf]
        %v610 = vld [vmem:[%s167 + $0x58] sm:$0xf]
        %v611 = vld [vmem:[%s167 + $0x5c] sm:$0xf]
        %v612 = vld [vmem:[%s167 + $0x60] sm:$0xf]
        %v613 = vld [vmem:[%s167 + $0x64] sm:$0xf]
        %v614 = vld [vmem:[%s167 + $0x68] sm:$0xf]
        %v615 = vld [vmem:[%s167 + $0x6c] sm:$0xf]
        %v616 = vld [vmem:[%s167 + $0x70] sm:$0xf]
        %v617 = vld [vmem:[%s167 + $0x74] sm:$0xf]
        %v618 = vld [vmem:[%s167 + $0x78] sm:$0xf]
        %v619 = vld [vmem:[%s167 + $0x7c] sm:$0xf]
        %v620 = vadd.s32 %v556, 4294967295
        %v621 = vadd.s32 %v557, 4294967295
        %v622 = vadd.s32 %v558, 4294967295
        %v623 = vadd.s32 %v559, 4294967295
        %v624 = vadd.s32 %v560, 4294967295
        %v625 = vadd.s32 %v561, 4294967295
        %v626 = vadd.s32 %v562, 4294967295
        %v627 = vadd.s32 %v563, 4294967295
        %v628 = vadd.s32 %v564, 4294967295
        %v629 = vadd.s32 %v565, 4294967295
        %v630 = vadd.s32 %v566, 4294967295
        %v631 = vadd.s32 %v567, 4294967295
        %v632 = vadd.s32 %v568, 4294967295
        %v633 = vadd.s32 %v569, 4294967295
        %v634 = vadd.s32 %v570, 4294967295
        %v635 = vadd.s32 %v571, 4294967295
        %v636 = vadd.s32 %v572, 4294967295
        %v637 = vadd.s32 %v573, 4294967295
        %v638 = vadd.s32 %v574, 4294967295
        %v639 = vadd.s32 %v575, 4294967295
        %v640 = vadd.s32 %v576, 4294967295
        %v641 = vadd.s32 %v577, 4294967295
        %v642 = vadd.s32 %v578, 4294967295
        %v643 = vadd.s32 %v579, 4294967295
        %v644 = vadd.s32 %v580, 4294967295
        %v645 = vadd.s32 %v581, 4294967295
        %v646 = vadd.s32 %v582, 4294967295
        %v647 = vadd.s32 %v583, 4294967295
        %v648 = vadd.s32 %v584, 4294967295
        %v649 = vadd.s32 %v585, 4294967295
        %v650 = vadd.s32 %v586, 4294967295
        %v651 = vadd.s32 %v587, 4294967295
        %vm652 = vcmp.ge.s32.totalorder %v620, 0
        %vm653 = vcmp.ge.s32.totalorder %v621, 0
        %vm654 = vcmp.ge.s32.totalorder %v622, 0
        %vm655 = vcmp.ge.s32.totalorder %v623, 0
        %vm656 = vcmp.ge.s32.totalorder %v624, 0
        %vm657 = vcmp.ge.s32.totalorder %v625, 0
        %vm658 = vcmp.ge.s32.totalorder %v626, 0
        %vm659 = vcmp.ge.s32.totalorder %v627, 0
        %vm660 = vcmp.ge.s32.totalorder %v628, 0
        %vm661 = vcmp.ge.s32.totalorder %v629, 0
        %vm662 = vcmp.ge.s32.totalorder %v630, 0
        %vm663 = vcmp.ge.s32.totalorder %v631, 0
        %vm664 = vcmp.ge.s32.totalorder %v632, 0
        %vm665 = vcmp.ge.s32.totalorder %v633, 0
        %vm666 = vcmp.ge.s32.totalorder %v634, 0
        %vm667 = vcmp.ge.s32.totalorder %v635, 0
        %vm668 = vcmp.ge.s32.totalorder %v636, 0
        %vm669 = vcmp.ge.s32.totalorder %v637, 0
        %vm670 = vcmp.ge.s32.totalorder %v638, 0
        %vm671 = vcmp.ge.s32.totalorder %v639, 0
        %vm672 = vcmp.ge.s32.totalorder %v640, 0
        %vm673 = vcmp.ge.s32.totalorder %v641, 0
        %vm674 = vcmp.ge.s32.totalorder %v642, 0
        %vm675 = vcmp.ge.s32.totalorder %v643, 0
        %vm676 = vcmp.ge.s32.totalorder %v644, 0
        %vm677 = vcmp.ge.s32.totalorder %v645, 0
        %vm678 = vcmp.ge.s32.totalorder %v646, 0
        %vm679 = vcmp.ge.s32.totalorder %v647, 0
        %vm680 = vcmp.ge.s32.totalorder %v648, 0
        %vm681 = vcmp.ge.s32.totalorder %v649, 0
        %vm682 = vcmp.ge.s32.totalorder %v650, 0
        %vm683 = vcmp.ge.s32.totalorder %v651, 0
        %vm684 = vcmp.lt.s32.totalorder %v620, 16
        %vm685 = vcmp.lt.s32.totalorder %v621, 16
        %vm686 = vcmp.lt.s32.totalorder %v622, 16
        %vm687 = vcmp.lt.s32.totalorder %v623, 16
        %vm688 = vcmp.lt.s32.totalorder %v624, 16
        %vm689 = vcmp.lt.s32.totalorder %v625, 16
        %vm690 = vcmp.lt.s32.totalorder %v626, 16
        %vm691 = vcmp.lt.s32.totalorder %v627, 16
        %vm692 = vcmp.lt.s32.totalorder %v628, 16
        %vm693 = vcmp.lt.s32.totalorder %v629, 16
        %vm694 = vcmp.lt.s32.totalorder %v630, 16
        %vm695 = vcmp.lt.s32.totalorder %v631, 16
        %vm696 = vcmp.lt.s32.totalorder %v632, 16
        %vm697 = vcmp.lt.s32.totalorder %v633, 16
        %vm698 = vcmp.lt.s32.totalorder %v634, 16
        %vm699 = vcmp.lt.s32.totalorder %v635, 16
        %vm700 = vcmp.lt.s32.totalorder %v636, 16
        %vm701 = vcmp.lt.s32.totalorder %v637, 16
        %vm702 = vcmp.lt.s32.totalorder %v638, 16
        %vm703 = vcmp.lt.s32.totalorder %v639, 16
        %vm704 = vcmp.lt.s32.totalorder %v640, 16
        %vm705 = vcmp.lt.s32.totalorder %v641, 16
        %vm706 = vcmp.lt.s32.totalorder %v642, 16
        %vm707 = vcmp.lt.s32.totalorder %v643, 16
        %vm708 = vcmp.lt.s32.totalorder %v644, 16
        %vm709 = vcmp.lt.s32.totalorder %v645, 16
        %vm710 = vcmp.lt.s32.totalorder %v646, 16
        %vm711 = vcmp.lt.s32.totalorder %v647, 16
        %vm712 = vcmp.lt.s32.totalorder %v648, 16
        %vm713 = vcmp.lt.s32.totalorder %v649, 16
        %vm714 = vcmp.lt.s32.totalorder %v650, 16
        %vm715 = vcmp.lt.s32.totalorder %v651, 16
        %vm716 = vmand %vm652, %vm684
        %vm717 = vmand %vm653, %vm685
        %vm718 = vmand %vm654, %vm686
        %vm719 = vmand %vm655, %vm687
        %vm720 = vmand %vm656, %vm688
        %vm721 = vmand %vm657, %vm689
        %vm722 = vmand %vm658, %vm690
        %vm723 = vmand %vm659, %vm691
        %vm724 = vmand %vm660, %vm692
        %vm725 = vmand %vm661, %vm693
        %vm726 = vmand %vm662, %vm694
        %vm727 = vmand %vm663, %vm695
        %vm728 = vmand %vm664, %vm696
        %vm729 = vmand %vm665, %vm697
        %vm730 = vmand %vm666, %vm698
        %vm731 = vmand %vm667, %vm699
        %vm732 = vmand %vm668, %vm700
        %vm733 = vmand %vm669, %vm701
        %vm734 = vmand %vm670, %vm702
        %vm735 = vmand %vm671, %vm703
        %vm736 = vmand %vm672, %vm704
        %vm737 = vmand %vm673, %vm705
        %vm738 = vmand %vm674, %vm706
        %vm739 = vmand %vm675, %vm707
        %vm740 = vmand %vm676, %vm708
        %vm741 = vmand %vm677, %vm709
        %vm742 = vmand %vm678, %vm710
        %vm743 = vmand %vm679, %vm711
        %vm744 = vmand %vm680, %vm712
        %vm745 = vmand %vm681, %vm713
        %vm746 = vmand %vm682, %vm714
        %vm747 = vmand %vm683, %vm715
        %vm748 = vmpackc.low %vm716, %vm716
        %vm749 = vmpackc.low %vm717, %vm717
        %vm750 = vmpackc.low %vm718, %vm718
        %vm751 = vmpackc.low %vm719, %vm719
        %vm752 = vmpackc.low %vm720, %vm720
        %vm753 = vmpackc.low %vm721, %vm721
        %vm754 = vmpackc.low %vm722, %vm722
        %vm755 = vmpackc.low %vm723, %vm723
        %vm756 = vmpackc.low %vm724, %vm724
        %vm757 = vmpackc.low %vm725, %vm725
        %vm758 = vmpackc.low %vm726, %vm726
        %vm759 = vmpackc.low %vm727, %vm727
        %vm760 = vmpackc.low %vm728, %vm728
        %vm761 = vmpackc.low %vm729, %vm729
        %vm762 = vmpackc.low %vm730, %vm730
        %vm763 = vmpackc.low %vm731, %vm731
        %vm764 = vmpackc.low %vm732, %vm732
        %vm765 = vmpackc.low %vm733, %vm733
        %vm766 = vmpackc.low %vm734, %vm734
        %vm767 = vmpackc.low %vm735, %vm735
        %vm768 = vmpackc.low %vm736, %vm736
        %vm769 = vmpackc.low %vm737, %vm737
        %vm770 = vmpackc.low %vm738, %vm738
        %vm771 = vmpackc.low %vm739, %vm739
        %vm772 = vmpackc.low %vm740, %vm740
        %vm773 = vmpackc.low %vm741, %vm741
        %vm774 = vmpackc.low %vm742, %vm742
        %vm775 = vmpackc.low %vm743, %vm743
        %vm776 = vmpackc.low %vm744, %vm744
        %vm777 = vmpackc.low %vm745, %vm745
        %vm778 = vmpackc.low %vm746, %vm746
        %vm779 = vmpackc.low %vm747, %vm747
        %v780 = vsel %vm748, %v588, 0
        %v781 = vsel %vm749, %v589, 0
        %v782 = vsel %vm750, %v590, 0
        %v783 = vsel %vm751, %v591, 0
        %v784 = vsel %vm752, %v592, 0
        %v785 = vsel %vm753, %v593, 0
        %v786 = vsel %vm754, %v594, 0
        %v787 = vsel %vm755, %v595, 0
        %v788 = vsel %vm756, %v596, 0
        %v789 = vsel %vm757, %v597, 0
        %v790 = vsel %vm758, %v598, 0
        %v791 = vsel %vm759, %v599, 0
        %v792 = vsel %vm760, %v600, 0
        %v793 = vsel %vm761, %v601, 0
        %v794 = vsel %vm762, %v602, 0
        %v795 = vsel %vm763, %v603, 0
        %v796 = vsel %vm764, %v604, 0
        %v797 = vsel %vm765, %v605, 0
        %v798 = vsel %vm766, %v606, 0
        %v799 = vsel %vm767, %v607, 0
        %v800 = vsel %vm768, %v608, 0
        %v801 = vsel %vm769, %v609, 0
        %v802 = vsel %vm770, %v610, 0
        %v803 = vsel %vm771, %v611, 0
        %v804 = vsel %vm772, %v612, 0
        %v805 = vsel %vm773, %v613, 0
        %v806 = vsel %vm774, %v614, 0
        %v807 = vsel %vm775, %v615, 0
        %v808 = vsel %vm776, %v616, 0
        %v809 = vsel %vm777, %v617, 0
        %v810 = vsel %vm778, %v618, 0
        %v811 = vsel %vm779, %v619, 0
        %v812 = vld [vmem:[%s1] sm:$0xf]
        %v813 = vld [vmem:[%s167 + $0x80] sm:$0x1]
        %s814 = scalar_lea.vmem %s1, 4
        %v815 = vld [vmem:[%s814] sm:$0xf]
        %v849 = vunpack.c.l.b16 %v588
        %v850 = vunpack.c.l.b16 %v589
        %v851 = vunpack.c.l.b16 %v590
        %v852 = vunpack.c.l.b16 %v591
        %v853 = vunpack.c.l.b16 %v592
        %v854 = vunpack.c.l.b16 %v593
        %v855 = vunpack.c.l.b16 %v594
        %v856 = vunpack.c.l.b16 %v595
        %v857 = vunpack.c.l.b16 %v596
        %v858 = vunpack.c.l.b16 %v597
        %v859 = vunpack.c.l.b16 %v598
        %v860 = vunpack.c.l.b16 %v599
        %v861 = vunpack.c.l.b16 %v600
        %v862 = vunpack.c.l.b16 %v601
        %v863 = vunpack.c.l.b16 %v602
        %v864 = vunpack.c.l.b16 %v603
        %v865 = vunpack.c.l.b16 %v604
        %v866 = vunpack.c.l.b16 %v605
        %v867 = vunpack.c.l.b16 %v606
        %v868 = vunpack.c.l.b16 %v607
        %v869 = vunpack.c.l.b16 %v608
        %v870 = vunpack.c.l.b16 %v609
        %v871 = vunpack.c.l.b16 %v610
        %v872 = vunpack.c.l.b16 %v611
        %v873 = vunpack.c.l.b16 %v612
        %v874 = vunpack.c.l.b16 %v613
        %v875 = vunpack.c.l.b16 %v614
        %v876 = vunpack.c.l.b16 %v615
        %v877 = vunpack.c.l.b16 %v616
        %v878 = vunpack.c.l.b16 %v617
        %v879 = vunpack.c.l.b16 %v618
        %v880 = vunpack.c.l.b16 %v619
        %v881 = vunpack.c.l.b16 %v813
        %v882 = vpack.c.b16 %v850, %v849
        %v883 = vpack.c.b16 %v852, %v851
        %v884 = vpack.c.b16 %v854, %v853
        %v885 = vpack.c.b16 %v856, %v855
        %v886 = vpack.c.b16 %v858, %v857
        %v887 = vpack.c.b16 %v860, %v859
        %v888 = vpack.c.b16 %v862, %v861
        %v889 = vpack.c.b16 %v864, %v863
        %v890 = vpack.c.b16 %v866, %v865
        %v891 = vpack.c.b16 %v868, %v867
        %v892 = vpack.c.b16 %v870, %v869
        %v893 = vpack.c.b16 %v872, %v871
        %v894 = vpack.c.b16 %v874, %v873
        %v895 = vpack.c.b16 %v876, %v875
        %v896 = vpack.c.b16 %v878, %v877
        %v897 = vpack.c.b16 %v880, %v879
        %v898 = vpack.c.b16 %v881, %v881
        %vm899 = vsmask.f32 7424
        %v901 = vshrl.u32 %v882, 16
        %v903 = vshll.u32 %v882, 16
        %v905 = vrot.slane %v903, 1
        %v906 = vor.u32 %v901, %v905
        %v908 = vshll.u32 %v883, 16
        %v910 = vrot.slane %v908, 1
        %v911 = vsel %vm899, %v906, %v910
        %v912 = vshrl.u32 %v883, 16
        %v914 = vor.u32 %v912, %v910
        %v916 = vshll.u32 %v884, 16
        %v918 = vrot.slane %v916, 1
        %v919 = vsel %vm899, %v914, %v918
        %v920 = vshrl.u32 %v884, 16
        %v922 = vor.u32 %v920, %v918
        %v924 = vshll.u32 %v885, 16
        %v926 = vrot.slane %v924, 1
        %v927 = vsel %vm899, %v922, %v926
        %v928 = vshrl.u32 %v885, 16
        %v930 = vor.u32 %v928, %v926
        %v932 = vshll.u32 %v886, 16
        %v934 = vrot.slane %v932, 1
        %v935 = vsel %vm899, %v930, %v934
        %v936 = vshrl.u32 %v886, 16
        %v938 = vor.u32 %v936, %v934
        %v940 = vshll.u32 %v887, 16
        %v942 = vrot.slane %v940, 1
        %v943 = vsel %vm899, %v938, %v942
        %v944 = vshrl.u32 %v887, 16
        %v946 = vor.u32 %v944, %v942
        %v948 = vshll.u32 %v888, 16
        %v950 = vrot.slane %v948, 1
        %v951 = vsel %vm899, %v946, %v950
        %v952 = vshrl.u32 %v888, 16
        %v954 = vor.u32 %v952, %v950
        %v956 = vshll.u32 %v889, 16
        %v958 = vrot.slane %v956, 1
        %v959 = vsel %vm899, %v954, %v958
        %v960 = vshrl.u32 %v889, 16
        %v962 = vor.u32 %v960, %v958
        %v964 = vshll.u32 %v890, 16
        %v966 = vrot.slane %v964, 1
        %v967 = vsel %vm899, %v962, %v966
        %v968 = vshrl.u32 %v890, 16
        %v970 = vor.u32 %v968, %v966
        %v972 = vshll.u32 %v891, 16
        %v974 = vrot.slane %v972, 1
        %v975 = vsel %vm899, %v970, %v974
        %v976 = vshrl.u32 %v891, 16
        %v978 = vor.u32 %v976, %v974
        %v980 = vshll.u32 %v892, 16
        %v982 = vrot.slane %v980, 1
        %v983 = vsel %vm899, %v978, %v982
        %v984 = vshrl.u32 %v892, 16
        %v986 = vor.u32 %v984, %v982
        %v988 = vshll.u32 %v893, 16
        %v990 = vrot.slane %v988, 1
        %v991 = vsel %vm899, %v986, %v990
        %v992 = vshrl.u32 %v893, 16
        %v994 = vor.u32 %v992, %v990
        %v996 = vshll.u32 %v894, 16
        %v998 = vrot.slane %v996, 1
        %v999 = vsel %vm899, %v994, %v998
        %v1000 = vshrl.u32 %v894, 16
        %v1002 = vor.u32 %v1000, %v998
        %v1004 = vshll.u32 %v895, 16
        %v1006 = vrot.slane %v1004, 1
        %v1007 = vsel %vm899, %v1002, %v1006
        %v1008 = vshrl.u32 %v895, 16
        %v1010 = vor.u32 %v1008, %v1006
        %v1012 = vshll.u32 %v896, 16
        %v1014 = vrot.slane %v1012, 1
        %v1015 = vsel %vm899, %v1010, %v1014
        %v1016 = vshrl.u32 %v896, 16
        %v1018 = vor.u32 %v1016, %v1014
        %v1020 = vshll.u32 %v897, 16
        %v1022 = vrot.slane %v1020, 1
        %v1023 = vsel %vm899, %v1018, %v1022
        %v1024 = vshrl.u32 %v897, 16
        %v1026 = vor.u32 %v1024, %v1022
        %v1028 = vshll.u32 %v898, 16
        %v1030 = vrot.slane %v1028, 1
        %v1031 = vsel %vm899, %v1026, %v1030
        %vm1032 = vcmask 64512
        %v1034 = vsel %vm1032, %v911, 0
        %v1037 = vsel %vm1032, %v919, 0
        %v1040 = vsel %vm1032, %v927, 0
        %v1043 = vsel %vm1032, %v935, 0
        %v1046 = vsel %vm1032, %v943, 0
        %v1049 = vsel %vm1032, %v951, 0
        %v1052 = vsel %vm1032, %v959, 0
        %v1055 = vsel %vm1032, %v967, 0
        %v1058 = vsel %vm1032, %v975, 0
        %v1061 = vsel %vm1032, %v983, 0
        %v1064 = vsel %vm1032, %v991, 0
        %v1067 = vsel %vm1032, %v999, 0
        %v1070 = vsel %vm1032, %v1007, 0
        %v1073 = vsel %vm1032, %v1015, 0
        %v1076 = vsel %vm1032, %v1023, 0
        %v1079 = vsel %vm1032, %v1031, 0
        %vm1081 = vcmask 1043456
        %v1083 = vsel %vm1081, %v815, 0
        %1085 = vmatprep.subr.bf16.mxu0 0
        %1086 = vmatpush1.bf16.msra.mxu0 %v1083
        %1087 = vmatprep.subr.bf16.mxu0 0
        %1088 = vmatpush1.bf16.msra.mxu0 0
        %1089 = vmatprep.subr.bf16.mxu0 0
        %1090 = vmatpush1.bf16.msra.mxu0 0
        %1091 = vmatprep.subr.bf16.mxu0 0
        %1092 = vmatpush1.bf16.msra.mxu0 0
        %1093 = vmatprep.subr.bf16.mxu0 0
        %1094 = vmatpush1.bf16.msra.mxu0 0
        %1095 = vmatprep.subr.bf16.mxu0 0
        %1096 = vmatpush1.bf16.msra.mxu0 0
        %1097 = vmatprep.subr.bf16.mxu0 0
        %1098 = vmatpush1.bf16.msra.mxu0 0
        %1099 = vmatprep.subr.bf16.mxu0 0
        %1100 = vmatpush1.bf16.msra.mxu0 0
        %1101 = vmatprep.subr.bf16.mxu0 0
        %1102 = vmatpush1.bf16.msra.mxu0 0
        %1103 = vmatprep.subr.bf16.mxu0 0
        %1104 = vmatpush1.bf16.msra.mxu0 0
        %1105 = vmatprep.subr.bf16.mxu0 0
        %1106 = vmatpush1.bf16.msra.mxu0 0
        %1107 = vmatprep.subr.bf16.mxu0 0
        %1108 = vmatpush1.bf16.msra.mxu0 0
        %1109 = vmatprep.subr.bf16.mxu0 0
        %1110 = vmatpush1.bf16.msra.mxu0 0
        %1111 = vmatprep.subr.bf16.mxu0 0
        %1112 = vmatpush1.bf16.msra.mxu0 0
        %1113 = vmatprep.subr.bf16.mxu0 0
        %1114 = vmatpush1.bf16.msra.mxu0 0
        %1115 = vmatprep.subr.bf16.mxu0 0
        %1116 = vmatpush1.bf16.msra.mxu0 0
        %1117 = vmatprep.mubr.bf16.mxu0 0
        %1118 = vmatmul.mubr.bf16.gmra.mrb[0].mxu0 %v1034
        %v1119 = vpop.f32.mrb[0].mxu0
        %v1120 = vadd.f32 0.0, %v1119
        %v1121 = vpop.f32.mrb[0].mxu0
        %v1122 = vpop.f32.mrb[0].mxu0
        %v1123 = vadd.f32 0.0, %v1122
        %v1124 = vpop.f32.mrb[0].mxu0
        %1125 = vmatprep.mubr.bf16.mxu0 0
        %1126 = vmatmul.mubr.bf16.gmra.mrb[0].mxu0 %v1037
        %v1127 = vpop.f32.mrb[0].mxu0
        %v1128 = vadd.f32 0.0, %v1127
        %v1129 = vpop.f32.mrb[0].mxu0
        %v1130 = vpop.f32.mrb[0].mxu0
        %v1131 = vadd.f32 0.0, %v1130
        %v1132 = vpop.f32.mrb[0].mxu0
        %1133 = vmatprep.mubr.bf16.mxu0 0
        %1134 = vmatmul.mubr.bf16.gmra.mrb[0].mxu0 %v1040
        %v1135 = vpop.f32.mrb[0].mxu0
        %v1136 = vadd.f32 0.0, %v1135
        %v1137 = vpop.f32.mrb[0].mxu0
        %v1138 = vpop.f32.mrb[0].mxu0
        %v1139 = vadd.f32 0.0, %v1138
        %v1140 = vpop.f32.mrb[0].mxu0
        %1141 = vmatprep.mubr.bf16.mxu0 0
        %1142 = vmatmul.mubr.bf16.gmra.mrb[0].mxu0 %v1043
        %v1143 = vpop.f32.mrb[0].mxu0
        %v1144 = vadd.f32 0.0, %v1143
        %v1145 = vpop.f32.mrb[0].mxu0
        %v1146 = vpop.f32.mrb[0].mxu0
        %v1147 = vadd.f32 0.0, %v1146
        %v1148 = vpop.f32.mrb[0].mxu0
        %1149 = vmatprep.mubr.bf16.mxu0 0
        %1150 = vmatmul.mubr.bf16.gmra.mrb[0].mxu0 %v1046
        %v1151 = vpop.f32.mrb[0].mxu0
        %v1152 = vadd.f32 0.0, %v1151
        %v1153 = vpop.f32.mrb[0].mxu0
        %v1154 = vpop.f32.mrb[0].mxu0
        %v1155 = vadd.f32 0.0, %v1154
        %v1156 = vpop.f32.mrb[0].mxu0
        %1157 = vmatprep.mubr.bf16.mxu0 0
        %1158 = vmatmul.mubr.bf16.gmra.mrb[0].mxu0 %v1049
        %v1159 = vpop.f32.mrb[0].mxu0
        %v1160 = vadd.f32 0.0, %v1159
        %v1161 = vpop.f32.mrb[0].mxu0
        %v1162 = vpop.f32.mrb[0].mxu0
        %v1163 = vadd.f32 0.0, %v1162
        %v1164 = vpop.f32.mrb[0].mxu0
        %1165 = vmatprep.mubr.bf16.mxu0 0
        %1166 = vmatmul.mubr.bf16.gmra.mrb[0].mxu0 %v1052
        %v1167 = vpop.f32.mrb[0].mxu0
        %v1168 = vadd.f32 0.0, %v1167
        %v1169 = vpop.f32.mrb[0].mxu0
        %v1170 = vpop.f32.mrb[0].mxu0
        %v1171 = vadd.f32 0.0, %v1170
        %v1172 = vpop.f32.mrb[0].mxu0
        %1173 = vmatprep.mubr.bf16.mxu0 0
        %1174 = vmatmul.mubr.bf16.gmra.mrb[0].mxu0 %v1055
        %v1175 = vpop.f32.mrb[0].mxu0
        %v1176 = vadd.f32 0.0, %v1175
        %v1177 = vpop.f32.mrb[0].mxu0
        %v1178 = vpop.f32.mrb[0].mxu0
        %v1179 = vadd.f32 0.0, %v1178
        %v1180 = vpop.f32.mrb[0].mxu0
        %1181 = vmatprep.mubr.bf16.mxu0 0
        %1182 = vmatmul.mubr.bf16.gmra.mrb[0].mxu0 %v1058
        %v1183 = vpop.f32.mrb[0].mxu0
        %v1184 = vadd.f32 0.0, %v1183
        %v1185 = vpop.f32.mrb[0].mxu0
        %v1186 = vpop.f32.mrb[0].mxu0
        %v1187 = vadd.f32 0.0, %v1186
        %v1188 = vpop.f32.mrb[0].mxu0
        %1189 = vmatprep.mubr.bf16.mxu0 0
        %1190 = vmatmul.mubr.bf16.gmra.mrb[0].mxu0 %v1061
        %v1191 = vpop.f32.mrb[0].mxu0
        %v1192 = vadd.f32 0.0, %v1191
        %v1193 = vpop.f32.mrb[0].mxu0
        %v1194 = vpop.f32.mrb[0].mxu0
        %v1195 = vadd.f32 0.0, %v1194
        %v1196 = vpop.f32.mrb[0].mxu0
        %1197 = vmatprep.mubr.bf16.mxu0 0
        %1198 = vmatmul.mubr.bf16.gmra.mrb[0].mxu0 %v1064
        %v1199 = vpop.f32.mrb[0].mxu0
        %v1200 = vadd.f32 0.0, %v1199
        %v1201 = vpop.f32.mrb[0].mxu0
        %v1202 = vpop.f32.mrb[0].mxu0
        %v1203 = vadd.f32 0.0, %v1202
        %v1204 = vpop.f32.mrb[0].mxu0
        %1205 = vmatprep.mubr.bf16.mxu0 0
        %1206 = vmatmul.mubr.bf16.gmra.mrb[0].mxu0 %v1067
        %v1207 = vpop.f32.mrb[0].mxu0
        %v1208 = vadd.f32 0.0, %v1207
        %v1209 = vpop.f32.mrb[0].mxu0
        %v1210 = vpop.f32.mrb[0].mxu0
        %v1211 = vadd.f32 0.0, %v1210
        %v1212 = vpop.f32.mrb[0].mxu0
        %1213 = vmatprep.mubr.bf16.mxu0 0
        %1214 = vmatmul.mubr.bf16.gmra.mrb[0].mxu0 %v1070
        %v1215 = vpop.f32.mrb[0].mxu0
        %v1216 = vadd.f32 0.0, %v1215
        %v1217 = vpop.f32.mrb[0].mxu0
        %v1218 = vpop.f32.mrb[0].mxu0
        %v1219 = vadd.f32 0.0, %v1218
        %v1220 = vpop.f32.mrb[0].mxu0
        %1221 = vmatprep.mubr.bf16.mxu0 0
        %1222 = vmatmul.mubr.bf16.gmra.mrb[0].mxu0 %v1073
        %v1223 = vpop.f32.mrb[0].mxu0
        %v1224 = vadd.f32 0.0, %v1223
        %v1225 = vpop.f32.mrb[0].mxu0
        %v1226 = vpop.f32.mrb[0].mxu0
        %v1227 = vadd.f32 0.0, %v1226
        %v1228 = vpop.f32.mrb[0].mxu0
        %1229 = vmatprep.mubr.bf16.mxu0 0
        %1230 = vmatmul.mubr.bf16.gmra.mrb[0].mxu0 %v1076
        %v1231 = vpop.f32.mrb[0].mxu0
        %v1232 = vadd.f32 0.0, %v1231
        %v1233 = vpop.f32.mrb[0].mxu0
        %v1234 = vpop.f32.mrb[0].mxu0
        %v1235 = vadd.f32 0.0, %v1234
        %v1236 = vpop.f32.mrb[0].mxu0
        %1237 = vmatprep.mubr.bf16.mxu0 0
        %1238 = vmatmul.mubr.bf16.gmra.mrb[0].mxu0 %v1079
        %v1239 = vpop.f32.mrb[0].mxu0
        %v1240 = vadd.f32 0.0, %v1239
        %v1241 = vpop.f32.mrb[0].mxu0
        %v1242 = vpop.f32.mrb[0].mxu0
        %v1243 = vadd.f32 0.0, %v1242
        %v1244 = vpop.f32.mrb[0].mxu0
        %1245 = vdwg.mxu0
        %v1278 = vunpack.c.l.b16 %v780
        %v1279 = vunpack.c.l.b16 %v781
        %v1280 = vunpack.c.l.b16 %v782
        %v1281 = vunpack.c.l.b16 %v783
        %v1282 = vunpack.c.l.b16 %v784
        %v1283 = vunpack.c.l.b16 %v785
        %v1284 = vunpack.c.l.b16 %v786
        %v1285 = vunpack.c.l.b16 %v787
        %v1286 = vunpack.c.l.b16 %v788
        %v1287 = vunpack.c.l.b16 %v789
        %v1288 = vunpack.c.l.b16 %v790
        %v1289 = vunpack.c.l.b16 %v791
        %v1290 = vunpack.c.l.b16 %v792
        %v1291 = vunpack.c.l.b16 %v793
        %v1292 = vunpack.c.l.b16 %v794
        %v1293 = vunpack.c.l.b16 %v795
        %v1294 = vunpack.c.l.b16 %v796
        %v1295 = vunpack.c.l.b16 %v797
        %v1296 = vunpack.c.l.b16 %v798
        %v1297 = vunpack.c.l.b16 %v799
        %v1298 = vunpack.c.l.b16 %v800
        %v1299 = vunpack.c.l.b16 %v801
        %v1300 = vunpack.c.l.b16 %v802
        %v1301 = vunpack.c.l.b16 %v803
        %v1302 = vunpack.c.l.b16 %v804
        %v1303 = vunpack.c.l.b16 %v805
        %v1304 = vunpack.c.l.b16 %v806
        %v1305 = vunpack.c.l.b16 %v807
        %v1306 = vunpack.c.l.b16 %v808
        %v1307 = vunpack.c.l.b16 %v809
        %v1308 = vunpack.c.l.b16 %v810
        %v1309 = vunpack.c.l.b16 %v811
        %v1310 = vpack.c.b16 %v1279, %v1278
        %v1311 = vpack.c.b16 %v1281, %v1280
        %v1312 = vpack.c.b16 %v1283, %v1282
        %v1313 = vpack.c.b16 %v1285, %v1284
        %v1314 = vpack.c.b16 %v1287, %v1286
        %v1315 = vpack.c.b16 %v1289, %v1288
        %v1316 = vpack.c.b16 %v1291, %v1290
        %v1317 = vpack.c.b16 %v1293, %v1292
        %v1318 = vpack.c.b16 %v1295, %v1294
        %v1319 = vpack.c.b16 %v1297, %v1296
        %v1320 = vpack.c.b16 %v1299, %v1298
        %v1321 = vpack.c.b16 %v1301, %v1300
        %v1322 = vpack.c.b16 %v1303, %v1302
        %v1323 = vpack.c.b16 %v1305, %v1304
        %v1324 = vpack.c.b16 %v1307, %v1306
        %v1325 = vpack.c.b16 %v1309, %v1308
        %v1327 = vsel %vm1032, %v1310, 0
        %v1330 = vsel %vm1032, %v1311, 0
        %v1333 = vsel %vm1032, %v1312, 0
        %v1336 = vsel %vm1032, %v1313, 0
        %v1339 = vsel %vm1032, %v1314, 0
        %v1342 = vsel %vm1032, %v1315, 0
        %v1345 = vsel %vm1032, %v1316, 0
        %v1348 = vsel %vm1032, %v1317, 0
        %v1351 = vsel %vm1032, %v1318, 0
        %v1354 = vsel %vm1032, %v1319, 0
        %v1357 = vsel %vm1032, %v1320, 0
        %v1360 = vsel %vm1032, %v1321, 0
        %v1363 = vsel %vm1032, %v1322, 0
        %v1366 = vsel %vm1032, %v1323, 0
        %v1369 = vsel %vm1032, %v1324, 0
        %v1372 = vsel %vm1032, %v1325, 0
        %v1375 = vsel %vm1081, %v812, 0
        %1377 = vmatprep.subr.bf16.mxu0 0
        %1378 = vmatpush1.bf16.msra.mxu0 %v1375
        %1379 = vmatprep.subr.bf16.mxu0 0
        %1380 = vmatpush1.bf16.msra.mxu0 0
        %1381 = vmatprep.subr.bf16.mxu0 0
        %1382 = vmatpush1.bf16.msra.mxu0 0
        %1383 = vmatprep.subr.bf16.mxu0 0
        %1384 = vmatpush1.bf16.msra.mxu0 0
        %1385 = vmatprep.subr.bf16.mxu0 0
        %1386 = vmatpush1.bf16.msra.mxu0 0
        %1387 = vmatprep.subr.bf16.mxu0 0
        %1388 = vmatpush1.bf16.msra.mxu0 0
        %1389 = vmatprep.subr.bf16.mxu0 0
        %1390 = vmatpush1.bf16.msra.mxu0 0
        %1391 = vmatprep.subr.bf16.mxu0 0
        %1392 = vmatpush1.bf16.msra.mxu0 0
        %1393 = vmatprep.subr.bf16.mxu0 0
        %1394 = vmatpush1.bf16.msra.mxu0 0
        %1395 = vmatprep.subr.bf16.mxu0 0
        %1396 = vmatpush1.bf16.msra.mxu0 0
        %1397 = vmatprep.subr.bf16.mxu0 0
        %1398 = vmatpush1.bf16.msra.mxu0 0
        %1399 = vmatprep.subr.bf16.mxu0 0
        %1400 = vmatpush1.bf16.msra.mxu0 0
        %1401 = vmatprep.subr.bf16.mxu0 0
        %1402 = vmatpush1.bf16.msra.mxu0 0
        %1403 = vmatprep.subr.bf16.mxu0 0
        %1404 = vmatpush1.bf16.msra.mxu0 0
        %1405 = vmatprep.subr.bf16.mxu0 0
        %1406 = vmatpush1.bf16.msra.mxu0 0
        %1407 = vmatprep.subr.bf16.mxu0 0
        %1408 = vmatpush1.bf16.msra.mxu0 0
        %1409 = vmatprep.mubr.bf16.mxu0 0
        %1410 = vmatmul.mubr.bf16.gmra.mrb[0].mxu0 %v1327
        %v1411 = vpop.f32.mrb[0].mxu0
        %v1412 = vadd.f32 %v1120, %v1411
        %v1413 = vpop.f32.mrb[0].mxu0
        %v1414 = vpop.f32.mrb[0].mxu0
        %v1415 = vadd.f32 %v1123, %v1414
        %v1416 = vpop.f32.mrb[0].mxu0
        %1417 = vmatprep.mubr.bf16.mxu0 0
        %1418 = vmatmul.mubr.bf16.gmra.mrb[0].mxu0 %v1330
        %v1419 = vpop.f32.mrb[0].mxu0
        %v1420 = vadd.f32 %v1128, %v1419
        %v1421 = vpop.f32.mrb[0].mxu0
        %v1422 = vpop.f32.mrb[0].mxu0
        %v1423 = vadd.f32 %v1131, %v1422
        %v1424 = vpop.f32.mrb[0].mxu0
        %1425 = vmatprep.mubr.bf16.mxu0 0
        %1426 = vmatmul.mubr.bf16.gmra.mrb[0].mxu0 %v1333
        %v1427 = vpop.f32.mrb[0].mxu0
        %v1428 = vadd.f32 %v1136, %v1427
        %v1429 = vpop.f32.mrb[0].mxu0
        %v1430 = vpop.f32.mrb[0].mxu0
        %v1431 = vadd.f32 %v1139, %v1430
        %v1432 = vpop.f32.mrb[0].mxu0
        %1433 = vmatprep.mubr.bf16.mxu0 0
        %1434 = vmatmul.mubr.bf16.gmra.mrb[0].mxu0 %v1336
        %v1435 = vpop.f32.mrb[0].mxu0
        %v1436 = vadd.f32 %v1144, %v1435
        %v1437 = vpop.f32.mrb[0].mxu0
        %v1438 = vpop.f32.mrb[0].mxu0
        %v1439 = vadd.f32 %v1147, %v1438
        %v1440 = vpop.f32.mrb[0].mxu0
        %1441 = vmatprep.mubr.bf16.mxu0 0
        %1442 = vmatmul.mubr.bf16.gmra.mrb[0].mxu0 %v1339
        %v1443 = vpop.f32.mrb[0].mxu0
        %v1444 = vadd.f32 %v1152, %v1443
        %v1445 = vpop.f32.mrb[0].mxu0
        %v1446 = vpop.f32.mrb[0].mxu0
        %v1447 = vadd.f32 %v1155, %v1446
        %v1448 = vpop.f32.mrb[0].mxu0
        %1449 = vmatprep.mubr.bf16.mxu0 0
        %1450 = vmatmul.mubr.bf16.gmra.mrb[0].mxu0 %v1342
        %v1451 = vpop.f32.mrb[0].mxu0
        %v1452 = vadd.f32 %v1160, %v1451
        %v1453 = vpop.f32.mrb[0].mxu0
        %v1454 = vpop.f32.mrb[0].mxu0
        %v1455 = vadd.f32 %v1163, %v1454
        %v1456 = vpop.f32.mrb[0].mxu0
        %1457 = vmatprep.mubr.bf16.mxu0 0
        %1458 = vmatmul.mubr.bf16.gmra.mrb[0].mxu0 %v1345
        %v1459 = vpop.f32.mrb[0].mxu0
        %v1460 = vadd.f32 %v1168, %v1459
        %v1461 = vpop.f32.mrb[0].mxu0
        %v1462 = vpop.f32.mrb[0].mxu0
        %v1463 = vadd.f32 %v1171, %v1462
        %v1464 = vpop.f32.mrb[0].mxu0
        %1465 = vmatprep.mubr.bf16.mxu0 0
        %1466 = vmatmul.mubr.bf16.gmra.mrb[0].mxu0 %v1348
        %v1467 = vpop.f32.mrb[0].mxu0
        %v1468 = vadd.f32 %v1176, %v1467
        %v1469 = vpop.f32.mrb[0].mxu0
        %v1470 = vpop.f32.mrb[0].mxu0
        %v1471 = vadd.f32 %v1179, %v1470
        %v1472 = vpop.f32.mrb[0].mxu0
        %1473 = vmatprep.mubr.bf16.mxu0 0
        %1474 = vmatmul.mubr.bf16.gmra.mrb[0].mxu0 %v1351
        %v1475 = vpop.f32.mrb[0].mxu0
        %v1476 = vadd.f32 %v1184, %v1475
        %v1477 = vpop.f32.mrb[0].mxu0
        %v1478 = vpop.f32.mrb[0].mxu0
        %v1479 = vadd.f32 %v1187, %v1478
        %v1480 = vpop.f32.mrb[0].mxu0
        %1481 = vmatprep.mubr.bf16.mxu0 0
        %1482 = vmatmul.mubr.bf16.gmra.mrb[0].mxu0 %v1354
        %v1483 = vpop.f32.mrb[0].mxu0
        %v1484 = vadd.f32 %v1192, %v1483
        %v1485 = vpop.f32.mrb[0].mxu0
        %v1486 = vpop.f32.mrb[0].mxu0
        %v1487 = vadd.f32 %v1195, %v1486
        %v1488 = vpop.f32.mrb[0].mxu0
        %1489 = vmatprep.mubr.bf16.mxu0 0
        %1490 = vmatmul.mubr.bf16.gmra.mrb[0].mxu0 %v1357
        %v1491 = vpop.f32.mrb[0].mxu0
        %v1492 = vadd.f32 %v1200, %v1491
        %v1493 = vpop.f32.mrb[0].mxu0
        %v1494 = vpop.f32.mrb[0].mxu0
        %v1495 = vadd.f32 %v1203, %v1494
        %v1496 = vpop.f32.mrb[0].mxu0
        %1497 = vmatprep.mubr.bf16.mxu0 0
        %1498 = vmatmul.mubr.bf16.gmra.mrb[0].mxu0 %v1360
        %v1499 = vpop.f32.mrb[0].mxu0
        %v1500 = vadd.f32 %v1208, %v1499
        %v1501 = vpop.f32.mrb[0].mxu0
        %v1502 = vpop.f32.mrb[0].mxu0
        %v1503 = vadd.f32 %v1211, %v1502
        %v1504 = vpop.f32.mrb[0].mxu0
        %1505 = vmatprep.mubr.bf16.mxu0 0
        %1506 = vmatmul.mubr.bf16.gmra.mrb[0].mxu0 %v1363
        %v1507 = vpop.f32.mrb[0].mxu0
        %v1508 = vadd.f32 %v1216, %v1507
        %v1509 = vpop.f32.mrb[0].mxu0
        %v1510 = vpop.f32.mrb[0].mxu0
        %v1511 = vadd.f32 %v1219, %v1510
        %v1512 = vpop.f32.mrb[0].mxu0
        %1513 = vmatprep.mubr.bf16.mxu0 0
        %1514 = vmatmul.mubr.bf16.gmra.mrb[0].mxu0 %v1366
        %v1515 = vpop.f32.mrb[0].mxu0
        %v1516 = vadd.f32 %v1224, %v1515
        %v1517 = vpop.f32.mrb[0].mxu0
        %v1518 = vpop.f32.mrb[0].mxu0
        %v1519 = vadd.f32 %v1227, %v1518
        %v1520 = vpop.f32.mrb[0].mxu0
        %1521 = vmatprep.mubr.bf16.mxu0 0
        %1522 = vmatmul.mubr.bf16.gmra.mrb[0].mxu0 %v1369
        %v1523 = vpop.f32.mrb[0].mxu0
        %v1524 = vadd.f32 %v1232, %v1523
        %v1525 = vpop.f32.mrb[0].mxu0
        %v1526 = vpop.f32.mrb[0].mxu0
        %v1527 = vadd.f32 %v1235, %v1526
        %v1528 = vpop.f32.mrb[0].mxu0
        %1529 = vmatprep.mubr.bf16.mxu0 0
        %1530 = vmatmul.mubr.bf16.gmra.mrb[0].mxu0 %v1372
        %v1531 = vpop.f32.mrb[0].mxu0
        %v1532 = vadd.f32 %v1240, %v1531
        %v1533 = vpop.f32.mrb[0].mxu0
        %v1534 = vpop.f32.mrb[0].mxu0
        %v1535 = vadd.f32 %v1243, %v1534
        %v1536 = vpop.f32.mrb[0].mxu0
        %1537 = vdwg.mxu0
        %v1538 = vld [vmem:[%s167] sm:$0xe]
        %v1539 = vadd.s32 %v556, 1
        %v1540 = vadd.s32 %v557, 1
        %v1541 = vadd.s32 %v558, 1
        %v1542 = vadd.s32 %v559, 1
        %v1543 = vadd.s32 %v560, 1
        %v1544 = vadd.s32 %v561, 1
        %v1545 = vadd.s32 %v562, 1
        %v1546 = vadd.s32 %v563, 1
        %v1547 = vadd.s32 %v564, 1
        %v1548 = vadd.s32 %v565, 1
        %v1549 = vadd.s32 %v566, 1
        %v1550 = vadd.s32 %v567, 1
        %v1551 = vadd.s32 %v568, 1
        %v1552 = vadd.s32 %v569, 1
        %v1553 = vadd.s32 %v570, 1
        %v1554 = vadd.s32 %v571, 1
        %v1555 = vadd.s32 %v572, 1
        %v1556 = vadd.s32 %v573, 1
        %v1557 = vadd.s32 %v574, 1
        %v1558 = vadd.s32 %v575, 1
        %v1559 = vadd.s32 %v576, 1
        %v1560 = vadd.s32 %v577, 1
        %v1561 = vadd.s32 %v578, 1
        %v1562 = vadd.s32 %v579, 1
        %v1563 = vadd.s32 %v580, 1
        %v1564 = vadd.s32 %v581, 1
        %v1565 = vadd.s32 %v582, 1
        %v1566 = vadd.s32 %v583, 1
        %v1567 = vadd.s32 %v584, 1
        %v1568 = vadd.s32 %v585, 1
        %v1569 = vadd.s32 %v586, 1
        %v1570 = vadd.s32 %v587, 1
        %vm1571 = vcmp.ge.s32.totalorder %v1539, 0
        %vm1572 = vcmp.ge.s32.totalorder %v1540, 0
        %vm1573 = vcmp.ge.s32.totalorder %v1541, 0
        %vm1574 = vcmp.ge.s32.totalorder %v1542, 0
        %vm1575 = vcmp.ge.s32.totalorder %v1543, 0
        %vm1576 = vcmp.ge.s32.totalorder %v1544, 0
        %vm1577 = vcmp.ge.s32.totalorder %v1545, 0
        %vm1578 = vcmp.ge.s32.totalorder %v1546, 0
        %vm1579 = vcmp.ge.s32.totalorder %v1547, 0
        %vm1580 = vcmp.ge.s32.totalorder %v1548, 0
        %vm1581 = vcmp.ge.s32.totalorder %v1549, 0
        %vm1582 = vcmp.ge.s32.totalorder %v1550, 0
        %vm1583 = vcmp.ge.s32.totalorder %v1551, 0
        %vm1584 = vcmp.ge.s32.totalorder %v1552, 0
        %vm1585 = vcmp.ge.s32.totalorder %v1553, 0
        %vm1586 = vcmp.ge.s32.totalorder %v1554, 0
        %vm1587 = vcmp.ge.s32.totalorder %v1555, 0
        %vm1588 = vcmp.ge.s32.totalorder %v1556, 0
        %vm1589 = vcmp.ge.s32.totalorder %v1557, 0
        %vm1590 = vcmp.ge.s32.totalorder %v1558, 0
        %vm1591 = vcmp.ge.s32.totalorder %v1559, 0
        %vm1592 = vcmp.ge.s32.totalorder %v1560, 0
        %vm1593 = vcmp.ge.s32.totalorder %v1561, 0
        %vm1594 = vcmp.ge.s32.totalorder %v1562, 0
        %vm1595 = vcmp.ge.s32.totalorder %v1563, 0
        %vm1596 = vcmp.ge.s32.totalorder %v1564, 0
        %vm1597 = vcmp.ge.s32.totalorder %v1565, 0
        %vm1598 = vcmp.ge.s32.totalorder %v1566, 0
        %vm1599 = vcmp.ge.s32.totalorder %v1567, 0
        %vm1600 = vcmp.ge.s32.totalorder %v1568, 0
        %vm1601 = vcmp.ge.s32.totalorder %v1569, 0
        %vm1602 = vcmp.ge.s32.totalorder %v1570, 0
        %vm1603 = vcmp.lt.s32.totalorder %v1539, 16
        %vm1604 = vcmp.lt.s32.totalorder %v1540, 16
        %vm1605 = vcmp.lt.s32.totalorder %v1541, 16
        %vm1606 = vcmp.lt.s32.totalorder %v1542, 16
        %vm1607 = vcmp.lt.s32.totalorder %v1543, 16
        %vm1608 = vcmp.lt.s32.totalorder %v1544, 16
        %vm1609 = vcmp.lt.s32.totalorder %v1545, 16
        %vm1610 = vcmp.lt.s32.totalorder %v1546, 16
        %vm1611 = vcmp.lt.s32.totalorder %v1547, 16
        %vm1612 = vcmp.lt.s32.totalorder %v1548, 16
        %vm1613 = vcmp.lt.s32.totalorder %v1549, 16
        %vm1614 = vcmp.lt.s32.totalorder %v1550, 16
        %vm1615 = vcmp.lt.s32.totalorder %v1551, 16
        %vm1616 = vcmp.lt.s32.totalorder %v1552, 16
        %vm1617 = vcmp.lt.s32.totalorder %v1553, 16
        %vm1618 = vcmp.lt.s32.totalorder %v1554, 16
        %vm1619 = vcmp.lt.s32.totalorder %v1555, 16
        %vm1620 = vcmp.lt.s32.totalorder %v1556, 16
        %vm1621 = vcmp.lt.s32.totalorder %v1557, 16
        %vm1622 = vcmp.lt.s32.totalorder %v1558, 16
        %vm1623 = vcmp.lt.s32.totalorder %v1559, 16
        %vm1624 = vcmp.lt.s32.totalorder %v1560, 16
        %vm1625 = vcmp.lt.s32.totalorder %v1561, 16
        %vm1626 = vcmp.lt.s32.totalorder %v1562, 16
        %vm1627 = vcmp.lt.s32.totalorder %v1563, 16
        %vm1628 = vcmp.lt.s32.totalorder %v1564, 16
        %vm1629 = vcmp.lt.s32.totalorder %v1565, 16
        %vm1630 = vcmp.lt.s32.totalorder %v1566, 16
        %vm1631 = vcmp.lt.s32.totalorder %v1567, 16
        %vm1632 = vcmp.lt.s32.totalorder %v1568, 16
        %vm1633 = vcmp.lt.s32.totalorder %v1569, 16
        %vm1634 = vcmp.lt.s32.totalorder %v1570, 16
        %vm1635 = vmand %vm1571, %vm1603
        %vm1636 = vmand %vm1572, %vm1604
        %vm1637 = vmand %vm1573, %vm1605
        %vm1638 = vmand %vm1574, %vm1606
        %vm1639 = vmand %vm1575, %vm1607
        %vm1640 = vmand %vm1576, %vm1608
        %vm1641 = vmand %vm1577, %vm1609
        %vm1642 = vmand %vm1578, %vm1610
        %vm1643 = vmand %vm1579, %vm1611
        %vm1644 = vmand %vm1580, %vm1612
        %vm1645 = vmand %vm1581, %vm1613
        %vm1646 = vmand %vm1582, %vm1614
        %vm1647 = vmand %vm1583, %vm1615
        %vm1648 = vmand %vm1584, %vm1616
        %vm1649 = vmand %vm1585, %vm1617
        %vm1650 = vmand %vm1586, %vm1618
        %vm1651 = vmand %vm1587, %vm1619
        %vm1652 = vmand %vm1588, %vm1620
        %vm1653 = vmand %vm1589, %vm1621
        %vm1654 = vmand %vm1590, %vm1622
        %vm1655 = vmand %vm1591, %vm1623
        %vm1656 = vmand %vm1592, %vm1624
        %vm1657 = vmand %vm1593, %vm1625
        %vm1658 = vmand %vm1594, %vm1626
        %vm1659 = vmand %vm1595, %vm1627
        %vm1660 = vmand %vm1596, %vm1628
        %vm1661 = vmand %vm1597, %vm1629
        %vm1662 = vmand %vm1598, %vm1630
        %vm1663 = vmand %vm1599, %vm1631
        %vm1664 = vmand %vm1600, %vm1632
        %vm1665 = vmand %vm1601, %vm1633
        %vm1666 = vmand %vm1602, %vm1634
        %vm1667 = vmpackc.low %vm1635, %vm1635
        %vm1668 = vmpackc.low %vm1636, %vm1636
        %vm1669 = vmpackc.low %vm1637, %vm1637
        %vm1670 = vmpackc.low %vm1638, %vm1638
        %vm1671 = vmpackc.low %vm1639, %vm1639
        %vm1672 = vmpackc.low %vm1640, %vm1640
        %vm1673 = vmpackc.low %vm1641, %vm1641
        %vm1674 = vmpackc.low %vm1642, %vm1642
        %vm1675 = vmpackc.low %vm1643, %vm1643
        %vm1676 = vmpackc.low %vm1644, %vm1644
        %vm1677 = vmpackc.low %vm1645, %vm1645
        %vm1678 = vmpackc.low %vm1646, %vm1646
        %vm1679 = vmpackc.low %vm1647, %vm1647
        %vm1680 = vmpackc.low %vm1648, %vm1648
        %vm1681 = vmpackc.low %vm1649, %vm1649
        %vm1682 = vmpackc.low %vm1650, %vm1650
        %vm1683 = vmpackc.low %vm1651, %vm1651
        %vm1684 = vmpackc.low %vm1652, %vm1652
        %vm1685 = vmpackc.low %vm1653, %vm1653
        %vm1686 = vmpackc.low %vm1654, %vm1654
        %vm1687 = vmpackc.low %vm1655, %vm1655
        %vm1688 = vmpackc.low %vm1656, %vm1656
        %vm1689 = vmpackc.low %vm1657, %vm1657
        %vm1690 = vmpackc.low %vm1658, %vm1658
        %vm1691 = vmpackc.low %vm1659, %vm1659
        %vm1692 = vmpackc.low %vm1660, %vm1660
        %vm1693 = vmpackc.low %vm1661, %vm1661
        %vm1694 = vmpackc.low %vm1662, %vm1662
        %vm1695 = vmpackc.low %vm1663, %vm1663
        %vm1696 = vmpackc.low %vm1664, %vm1664
        %vm1697 = vmpackc.low %vm1665, %vm1665
        %vm1698 = vmpackc.low %vm1666, %vm1666
        %v1699 = vsel %vm1667, 65537, 0
        %v1700 = vsel %vm1668, 65537, 0
        %v1701 = vsel %vm1669, 65537, 0
        %v1702 = vsel %vm1670, 65537, 0
        %v1703 = vsel %vm1671, 65537, 0
        %v1704 = vsel %vm1672, 65537, 0
        %v1705 = vsel %vm1673, 65537, 0
        %v1706 = vsel %vm1674, 65537, 0
        %v1707 = vsel %vm1675, 65537, 0
        %v1708 = vsel %vm1676, 65537, 0
        %v1709 = vsel %vm1677, 65537, 0
        %v1710 = vsel %vm1678, 65537, 0
        %v1711 = vsel %vm1679, 65537, 0
        %v1712 = vsel %vm1680, 65537, 0
        %v1713 = vsel %vm1681, 65537, 0
        %v1714 = vsel %vm1682, 65537, 0
        %v1715 = vsel %vm1683, 65537, 0
        %v1716 = vsel %vm1684, 65537, 0
        %v1717 = vsel %vm1685, 65537, 0
        %v1718 = vsel %vm1686, 65537, 0
        %v1719 = vsel %vm1687, 65537, 0
        %v1720 = vsel %vm1688, 65537, 0
        %v1721 = vsel %vm1689, 65537, 0
        %v1722 = vsel %vm1690, 65537, 0
        %v1723 = vsel %vm1691, 65537, 0
        %v1724 = vsel %vm1692, 65537, 0
        %v1725 = vsel %vm1693, 65537, 0
        %v1726 = vsel %vm1694, 65537, 0
        %v1727 = vsel %vm1695, 65537, 0
        %v1728 = vsel %vm1696, 65537, 0
        %v1729 = vsel %vm1697, 65537, 0
        %v1730 = vsel %vm1698, 65537, 0
        %vm1731 = vcmask 1040384
        %vm1732 = vcmask 1044484
        %vm1733 = vmor %vm1731, %vm1732
        %v1734 = vrot.slane %v1699, 7
        %v1735 = vrot.slane %v1734, 4
        %v1736 = vrot.slane %v1700, 7
        %v1737 = vsel %vm1733, %v1735, %v1736
        %v1738 = vrot.slane %v1736, 4
        %v1739 = vrot.slane %v1701, 7
        %v1740 = vsel %vm1733, %v1738, %v1739
        %v1741 = vrot.slane %v1739, 4
        %v1742 = vrot.slane %v1702, 7
        %v1743 = vsel %vm1733, %v1741, %v1742
        %v1744 = vrot.slane %v1742, 4
        %v1745 = vrot.slane %v1703, 7
        %v1746 = vsel %vm1733, %v1744, %v1745
        %v1747 = vrot.slane %v1745, 4
        %v1748 = vrot.slane %v1704, 7
        %v1749 = vsel %vm1733, %v1747, %v1748
        %v1750 = vrot.slane %v1748, 4
        %v1751 = vrot.slane %v1705, 7
        %v1752 = vsel %vm1733, %v1750, %v1751
        %v1753 = vrot.slane %v1751, 4
        %v1754 = vrot.slane %v1706, 7
        %v1755 = vsel %vm1733, %v1753, %v1754
        %v1756 = vrot.slane %v1754, 4
        %v1757 = vrot.slane %v1707, 7
        %v1758 = vsel %vm1733, %v1756, %v1757
        %v1759 = vrot.slane %v1757, 4
        %v1760 = vrot.slane %v1708, 7
        %v1761 = vsel %vm1733, %v1759, %v1760
        %v1762 = vrot.slane %v1760, 4
        %v1763 = vrot.slane %v1709, 7
        %v1764 = vsel %vm1733, %v1762, %v1763
        %v1765 = vrot.slane %v1763, 4
        %v1766 = vrot.slane %v1710, 7
        %v1767 = vsel %vm1733, %v1765, %v1766
        %v1768 = vrot.slane %v1766, 4
        %v1769 = vrot.slane %v1711, 7
        %v1770 = vsel %vm1733, %v1768, %v1769
        %v1771 = vrot.slane %v1769, 4
        %v1772 = vrot.slane %v1712, 7
        %v1773 = vsel %vm1733, %v1771, %v1772
        %v1774 = vrot.slane %v1772, 4
        %v1775 = vrot.slane %v1713, 7
        %v1776 = vsel %vm1733, %v1774, %v1775
        %v1777 = vrot.slane %v1775, 4
        %v1778 = vrot.slane %v1714, 7
        %v1779 = vsel %vm1733, %v1777, %v1778
        %v1780 = vrot.slane %v1778, 4
        %v1781 = vrot.slane %v1715, 7
        %v1782 = vsel %vm1733, %v1780, %v1781
        %v1783 = vrot.slane %v1781, 4
        %v1784 = vrot.slane %v1716, 7
        %v1785 = vsel %vm1733, %v1783, %v1784
        %v1786 = vrot.slane %v1784, 4
        %v1787 = vrot.slane %v1717, 7
        %v1788 = vsel %vm1733, %v1786, %v1787
        %v1789 = vrot.slane %v1787, 4
        %v1790 = vrot.slane %v1718, 7
        %v1791 = vsel %vm1733, %v1789, %v1790
        %v1792 = vrot.slane %v1790, 4
        %v1793 = vrot.slane %v1719, 7
        %v1794 = vsel %vm1733, %v1792, %v1793
        %v1795 = vrot.slane %v1793, 4
        %v1796 = vrot.slane %v1720, 7
        %v1797 = vsel %vm1733, %v1795, %v1796
        %v1798 = vrot.slane %v1796, 4
        %v1799 = vrot.slane %v1721, 7
        %v1800 = vsel %vm1733, %v1798, %v1799
        %v1801 = vrot.slane %v1799, 4
        %v1802 = vrot.slane %v1722, 7
        %v1803 = vsel %vm1733, %v1801, %v1802
        %v1804 = vrot.slane %v1802, 4
        %v1805 = vrot.slane %v1723, 7
        %v1806 = vsel %vm1733, %v1804, %v1805
        %v1807 = vrot.slane %v1805, 4
        %v1808 = vrot.slane %v1724, 7
        %v1809 = vsel %vm1733, %v1807, %v1808
        %v1810 = vrot.slane %v1808, 4
        %v1811 = vrot.slane %v1725, 7
        %v1812 = vsel %vm1733, %v1810, %v1811
        %v1813 = vrot.slane %v1811, 4
        %v1814 = vrot.slane %v1726, 7
        %v1815 = vsel %vm1733, %v1813, %v1814
        %v1816 = vrot.slane %v1814, 4
        %v1817 = vrot.slane %v1727, 7
        %v1818 = vsel %vm1733, %v1816, %v1817
        %v1819 = vrot.slane %v1817, 4
        %v1820 = vrot.slane %v1728, 7
        %v1821 = vsel %vm1733, %v1819, %v1820
        %v1822 = vrot.slane %v1820, 4
        %v1823 = vrot.slane %v1729, 7
        %v1824 = vsel %vm1733, %v1822, %v1823
        %v1825 = vrot.slane %v1823, 4
        %v1826 = vrot.slane %v1730, 7
        %v1827 = vsel %vm1733, %v1825, %v1826
        %v1828 = vrot.slane %v1826, 4
        %vm1829 = vcmp.ne.s16.totalorder %v1734, 0
        %vm1830 = vcmp.ne.s16.totalorder %v1737, 0
        %vm1831 = vcmp.ne.s16.totalorder %v1740, 0
        %vm1832 = vcmp.ne.s16.totalorder %v1743, 0
        %vm1833 = vcmp.ne.s16.totalorder %v1746, 0
        %vm1834 = vcmp.ne.s16.totalorder %v1749, 0
        %vm1835 = vcmp.ne.s16.totalorder %v1752, 0
        %vm1836 = vcmp.ne.s16.totalorder %v1755, 0
        %vm1837 = vcmp.ne.s16.totalorder %v1758, 0
        %vm1838 = vcmp.ne.s16.totalorder %v1761, 0
        %vm1839 = vcmp.ne.s16.totalorder %v1764, 0
        %vm1840 = vcmp.ne.s16.totalorder %v1767, 0
        %vm1841 = vcmp.ne.s16.totalorder %v1770, 0
        %vm1842 = vcmp.ne.s16.totalorder %v1773, 0
        %vm1843 = vcmp.ne.s16.totalorder %v1776, 0
        %vm1844 = vcmp.ne.s16.totalorder %v1779, 0
        %vm1845 = vcmp.ne.s16.totalorder %v1782, 0
        %vm1846 = vcmp.ne.s16.totalorder %v1785, 0
        %vm1847 = vcmp.ne.s16.totalorder %v1788, 0
        %vm1848 = vcmp.ne.s16.totalorder %v1791, 0
        %vm1849 = vcmp.ne.s16.totalorder %v1794, 0
        %vm1850 = vcmp.ne.s16.totalorder %v1797, 0
        %vm1851 = vcmp.ne.s16.totalorder %v1800, 0
        %vm1852 = vcmp.ne.s16.totalorder %v1803, 0
        %vm1853 = vcmp.ne.s16.totalorder %v1806, 0
        %vm1854 = vcmp.ne.s16.totalorder %v1809, 0
        %vm1855 = vcmp.ne.s16.totalorder %v1812, 0
        %vm1856 = vcmp.ne.s16.totalorder %v1815, 0
        %vm1857 = vcmp.ne.s16.totalorder %v1818, 0
        %vm1858 = vcmp.ne.s16.totalorder %v1821, 0
        %vm1859 = vcmp.ne.s16.totalorder %v1824, 0
        %vm1860 = vcmp.ne.s16.totalorder %v1827, 0
        %vm1861 = vcmp.ne.s16.totalorder %v1828, 0
        %v1862 = vsel %vm1829, %v1538, 0
        %v1863 = vsel %vm1830, %v589, 0
        %v1864 = vsel %vm1831, %v590, 0
        %v1865 = vsel %vm1832, %v591, 0
        %v1866 = vsel %vm1833, %v592, 0
        %v1867 = vsel %vm1834, %v593, 0
        %v1868 = vsel %vm1835, %v594, 0
        %v1869 = vsel %vm1836, %v595, 0
        %v1870 = vsel %vm1837, %v596, 0
        %v1871 = vsel %vm1838, %v597, 0
        %v1872 = vsel %vm1839, %v598, 0
        %v1873 = vsel %vm1840, %v599, 0
        %v1874 = vsel %vm1841, %v600, 0
        %v1875 = vsel %vm1842, %v601, 0
        %v1876 = vsel %vm1843, %v602, 0
        %v1877 = vsel %vm1844, %v603, 0
        %v1878 = vsel %vm1845, %v604, 0
        %v1879 = vsel %vm1846, %v605, 0
        %v1880 = vsel %vm1847, %v606, 0
        %v1881 = vsel %vm1848, %v607, 0
        %v1882 = vsel %vm1849, %v608, 0
        %v1883 = vsel %vm1850, %v609, 0
        %v1884 = vsel %vm1851, %v610, 0
        %v1885 = vsel %vm1852, %v611, 0
        %v1886 = vsel %vm1853, %v612, 0
        %v1887 = vsel %vm1854, %v613, 0
        %v1888 = vsel %vm1855, %v614, 0
        %v1889 = vsel %vm1856, %v615, 0
        %v1890 = vsel %vm1857, %v616, 0
        %v1891 = vsel %vm1858, %v617, 0
        %v1892 = vsel %vm1859, %v618, 0
        %v1893 = vsel %vm1860, %v619, 0
        %v1894 = vsel %vm1861, %v813, 0
        %s1895 = scalar_lea.vmem %s1, 8
        %v1896 = vld [vmem:[%s1895] sm:$0xf]
        %v1930 = vunpack.c.l.b16 %v1862
        %v1931 = vunpack.c.l.b16 %v1863
        %v1932 = vunpack.c.l.b16 %v1864
        %v1933 = vunpack.c.l.b16 %v1865
        %v1934 = vunpack.c.l.b16 %v1866
        %v1935 = vunpack.c.l.b16 %v1867
        %v1936 = vunpack.c.l.b16 %v1868
        %v1937 = vunpack.c.l.b16 %v1869
        %v1938 = vunpack.c.l.b16 %v1870
        %v1939 = vunpack.c.l.b16 %v1871
        %v1940 = vunpack.c.l.b16 %v1872
        %v1941 = vunpack.c.l.b16 %v1873
        %v1942 = vunpack.c.l.b16 %v1874
        %v1943 = vunpack.c.l.b16 %v1875
        %v1944 = vunpack.c.l.b16 %v1876
        %v1945 = vunpack.c.l.b16 %v1877
        %v1946 = vunpack.c.l.b16 %v1878
        %v1947 = vunpack.c.l.b16 %v1879
        %v1948 = vunpack.c.l.b16 %v1880
        %v1949 = vunpack.c.l.b16 %v1881
        %v1950 = vunpack.c.l.b16 %v1882
        %v1951 = vunpack.c.l.b16 %v1883
        %v1952 = vunpack.c.l.b16 %v1884
        %v1953 = vunpack.c.l.b16 %v1885
        %v1954 = vunpack.c.l.b16 %v1886
        %v1955 = vunpack.c.l.b16 %v1887
        %v1956 = vunpack.c.l.b16 %v1888
        %v1957 = vunpack.c.l.b16 %v1889
        %v1958 = vunpack.c.l.b16 %v1890
        %v1959 = vunpack.c.l.b16 %v1891
        %v1960 = vunpack.c.l.b16 %v1892
        %v1961 = vunpack.c.l.b16 %v1893
        %v1962 = vunpack.c.l.b16 %v1894
        %v1963 = vpack.c.b16 %v1931, %v1930
        %v1964 = vpack.c.b16 %v1933, %v1932
        %v1965 = vpack.c.b16 %v1935, %v1934
        %v1966 = vpack.c.b16 %v1937, %v1936
        %v1967 = vpack.c.b16 %v1939, %v1938
        %v1968 = vpack.c.b16 %v1941, %v1940
        %v1969 = vpack.c.b16 %v1943, %v1942
        %v1970 = vpack.c.b16 %v1945, %v1944
        %v1971 = vpack.c.b16 %v1947, %v1946
        %v1972 = vpack.c.b16 %v1949, %v1948
        %v1973 = vpack.c.b16 %v1951, %v1950
        %v1974 = vpack.c.b16 %v1953, %v1952
        %v1975 = vpack.c.b16 %v1955, %v1954
        %v1976 = vpack.c.b16 %v1957, %v1956
        %v1977 = vpack.c.b16 %v1959, %v1958
        %v1978 = vpack.c.b16 %v1961, %v1960
        %v1979 = vpack.c.b16 %v1962, %v1962
        %vm1980 = vcmask 1046528
        %v1981 = vrot.slane %v1963, 1
        %v1982 = vrot.slane %v1964, 1
        %v1983 = vsel %vm1980, %v1981, %v1982
        %v1984 = vrot.slane %v1965, 1
        %v1985 = vsel %vm1980, %v1982, %v1984
        %v1986 = vrot.slane %v1966, 1
        %v1987 = vsel %vm1980, %v1984, %v1986
        %v1988 = vrot.slane %v1967, 1
        %v1989 = vsel %vm1980, %v1986, %v1988
        %v1990 = vrot.slane %v1968, 1
        %v1991 = vsel %vm1980, %v1988, %v1990
        %v1992 = vrot.slane %v1969, 1
        %v1993 = vsel %vm1980, %v1990, %v1992
        %v1994 = vrot.slane %v1970, 1
        %v1995 = vsel %vm1980, %v1992, %v1994
        %v1996 = vrot.slane %v1971, 1
        %v1997 = vsel %vm1980, %v1994, %v1996
        %v1998 = vrot.slane %v1972, 1
        %v1999 = vsel %vm1980, %v1996, %v1998
        %v2000 = vrot.slane %v1973, 1
        %v2001 = vsel %vm1980, %v1998, %v2000
        %v2002 = vrot.slane %v1974, 1
        %v2003 = vsel %vm1980, %v2000, %v2002
        %v2004 = vrot.slane %v1975, 1
        %v2005 = vsel %vm1980, %v2002, %v2004
        %v2006 = vrot.slane %v1976, 1
        %v2007 = vsel %vm1980, %v2004, %v2006
        %v2008 = vrot.slane %v1977, 1
        %v2009 = vsel %vm1980, %v2006, %v2008
        %v2010 = vrot.slane %v1978, 1
        %v2011 = vsel %vm1980, %v2008, %v2010
        %v2012 = vrot.slane %v1979, 1
        %v2013 = vsel %vm1980, %v2010, %v2012
        %v2015 = vsel %vm1032, %v1983, 0
        %v2018 = vsel %vm1032, %v1985, 0
        %v2021 = vsel %vm1032, %v1987, 0
        %v2024 = vsel %vm1032, %v1989, 0
        %v2027 = vsel %vm1032, %v1991, 0
        %v2030 = vsel %vm1032, %v1993, 0
        %v2033 = vsel %vm1032, %v1995, 0
        %v2036 = vsel %vm1032, %v1997, 0
        %v2039 = vsel %vm1032, %v1999, 0
        %v2042 = vsel %vm1032, %v2001, 0
        %v2045 = vsel %vm1032, %v2003, 0
        %v2048 = vsel %vm1032, %v2005, 0
        %v2051 = vsel %vm1032, %v2007, 0
        %v2054 = vsel %vm1032, %v2009, 0
        %v2057 = vsel %vm1032, %v2011, 0
        %v2060 = vsel %vm1032, %v2013, 0
        %v2063 = vsel %vm1081, %v1896, 0
        %2065 = vmatprep.subr.bf16.mxu0 0
        %2066 = vmatpush1.bf16.msra.mxu0 %v2063
        %2067 = vmatprep.subr.bf16.mxu0 0
        %2068 = vmatpush1.bf16.msra.mxu0 0
        %2069 = vmatprep.subr.bf16.mxu0 0
        %2070 = vmatpush1.bf16.msra.mxu0 0
        %2071 = vmatprep.subr.bf16.mxu0 0
        %2072 = vmatpush1.bf16.msra.mxu0 0
        %2073 = vmatprep.subr.bf16.mxu0 0
        %2074 = vmatpush1.bf16.msra.mxu0 0
        %2075 = vmatprep.subr.bf16.mxu0 0
        %2076 = vmatpush1.bf16.msra.mxu0 0
        %2077 = vmatprep.subr.bf16.mxu0 0
        %2078 = vmatpush1.bf16.msra.mxu0 0
        %2079 = vmatprep.subr.bf16.mxu0 0
        %2080 = vmatpush1.bf16.msra.mxu0 0
        %2081 = vmatprep.subr.bf16.mxu0 0
        %2082 = vmatpush1.bf16.msra.mxu0 0
        %2083 = vmatprep.subr.bf16.mxu0 0
        %2084 = vmatpush1.bf16.msra.mxu0 0
        %2085 = vmatprep.subr.bf16.mxu0 0
        %2086 = vmatpush1.bf16.msra.mxu0 0
        %2087 = vmatprep.subr.bf16.mxu0 0
        %2088 = vmatpush1.bf16.msra.mxu0 0
        %2089 = vmatprep.subr.bf16.mxu0 0
        %2090 = vmatpush1.bf16.msra.mxu0 0
        %2091 = vmatprep.subr.bf16.mxu0 0
        %2092 = vmatpush1.bf16.msra.mxu0 0
        %2093 = vmatprep.subr.bf16.mxu0 0
        %2094 = vmatpush1.bf16.msra.mxu0 0
        %2095 = vmatprep.subr.bf16.mxu0 0
        %2096 = vmatpush1.bf16.msra.mxu0 0
        %2097 = vmatprep.mubr.bf16.mxu0 0
        %2098 = vmatmul.mubr.bf16.gmra.mrb[0].mxu0 %v2015
        %v2099 = vpop.f32.mrb[0].mxu0
        %v2100 = vadd.f32 0.0, %v2099
        %v2101 = vpop.f32.mrb[0].mxu0
        %v2102 = vpop.f32.mrb[0].mxu0
        %v2103 = vadd.f32 0.0, %v2102
        %v2104 = vpop.f32.mrb[0].mxu0
        %2105 = vmatprep.mubr.bf16.mxu0 0
        %2106 = vmatmul.mubr.bf16.gmra.mrb[0].mxu0 %v2018
        %v2107 = vpop.f32.mrb[0].mxu0
        %v2108 = vadd.f32 0.0, %v2107
        %v2109 = vpop.f32.mrb[0].mxu0
        %v2110 = vpop.f32.mrb[0].mxu0
        %v2111 = vadd.f32 0.0, %v2110
        %v2112 = vpop.f32.mrb[0].mxu0
        %2113 = vmatprep.mubr.bf16.mxu0 0
        %2114 = vmatmul.mubr.bf16.gmra.mrb[0].mxu0 %v2021
        %v2115 = vpop.f32.mrb[0].mxu0
        %v2116 = vadd.f32 0.0, %v2115
        %v2117 = vpop.f32.mrb[0].mxu0
        %v2118 = vpop.f32.mrb[0].mxu0
        %v2119 = vadd.f32 0.0, %v2118
        %v2120 = vpop.f32.mrb[0].mxu0
        %2121 = vmatprep.mubr.bf16.mxu0 0
        %2122 = vmatmul.mubr.bf16.gmra.mrb[0].mxu0 %v2024
        %v2123 = vpop.f32.mrb[0].mxu0
        %v2124 = vadd.f32 0.0, %v2123
        %v2125 = vpop.f32.mrb[0].mxu0
        %v2126 = vpop.f32.mrb[0].mxu0
        %v2127 = vadd.f32 0.0, %v2126
        %v2128 = vpop.f32.mrb[0].mxu0
        %2129 = vmatprep.mubr.bf16.mxu0 0
        %2130 = vmatmul.mubr.bf16.gmra.mrb[0].mxu0 %v2027
        %v2131 = vpop.f32.mrb[0].mxu0
        %v2132 = vadd.f32 0.0, %v2131
        %v2133 = vpop.f32.mrb[0].mxu0
        %v2134 = vpop.f32.mrb[0].mxu0
        %v2135 = vadd.f32 0.0, %v2134
        %v2136 = vpop.f32.mrb[0].mxu0
        %2137 = vmatprep.mubr.bf16.mxu0 0
        %2138 = vmatmul.mubr.bf16.gmra.mrb[0].mxu0 %v2030
        %v2139 = vpop.f32.mrb[0].mxu0
        %v2140 = vadd.f32 0.0, %v2139
        %v2141 = vpop.f32.mrb[0].mxu0
        %v2142 = vpop.f32.mrb[0].mxu0
        %v2143 = vadd.f32 0.0, %v2142
        %v2144 = vpop.f32.mrb[0].mxu0
        %2145 = vmatprep.mubr.bf16.mxu0 0
        %2146 = vmatmul.mubr.bf16.gmra.mrb[0].mxu0 %v2033
        %v2147 = vpop.f32.mrb[0].mxu0
        %v2148 = vadd.f32 0.0, %v2147
        %v2149 = vpop.f32.mrb[0].mxu0
        %v2150 = vpop.f32.mrb[0].mxu0
        %v2151 = vadd.f32 0.0, %v2150
        %v2152 = vpop.f32.mrb[0].mxu0
        %2153 = vmatprep.mubr.bf16.mxu0 0
        %2154 = vmatmul.mubr.bf16.gmra.mrb[0].mxu0 %v2036
        %v2155 = vpop.f32.mrb[0].mxu0
        %v2156 = vadd.f32 0.0, %v2155
        %v2157 = vpop.f32.mrb[0].mxu0
        %v2158 = vpop.f32.mrb[0].mxu0
        %v2159 = vadd.f32 0.0, %v2158
        %v2160 = vpop.f32.mrb[0].mxu0
        %2161 = vmatprep.mubr.bf16.mxu0 0
        %2162 = vmatmul.mubr.bf16.gmra.mrb[0].mxu0 %v2039
        %v2163 = vpop.f32.mrb[0].mxu0
        %v2164 = vadd.f32 0.0, %v2163
        %v2165 = vpop.f32.mrb[0].mxu0
        %v2166 = vpop.f32.mrb[0].mxu0
        %v2167 = vadd.f32 0.0, %v2166
        %v2168 = vpop.f32.mrb[0].mxu0
        %2169 = vmatprep.mubr.bf16.mxu0 0
        %2170 = vmatmul.mubr.bf16.gmra.mrb[0].mxu0 %v2042
        %v2171 = vpop.f32.mrb[0].mxu0
        %v2172 = vadd.f32 0.0, %v2171
        %v2173 = vpop.f32.mrb[0].mxu0
        %v2174 = vpop.f32.mrb[0].mxu0
        %v2175 = vadd.f32 0.0, %v2174
        %v2176 = vpop.f32.mrb[0].mxu0
        %2177 = vmatprep.mubr.bf16.mxu0 0
        %2178 = vmatmul.mubr.bf16.gmra.mrb[0].mxu0 %v2045
        %v2179 = vpop.f32.mrb[0].mxu0
        %v2180 = vadd.f32 0.0, %v2179
        %v2181 = vpop.f32.mrb[0].mxu0
        %v2182 = vpop.f32.mrb[0].mxu0
        %v2183 = vadd.f32 0.0, %v2182
        %v2184 = vpop.f32.mrb[0].mxu0
        %2185 = vmatprep.mubr.bf16.mxu0 0
        %2186 = vmatmul.mubr.bf16.gmra.mrb[0].mxu0 %v2048
        %v2187 = vpop.f32.mrb[0].mxu0
        %v2188 = vadd.f32 0.0, %v2187
        %v2189 = vpop.f32.mrb[0].mxu0
        %v2190 = vpop.f32.mrb[0].mxu0
        %v2191 = vadd.f32 0.0, %v2190
        %v2192 = vpop.f32.mrb[0].mxu0
        %2193 = vmatprep.mubr.bf16.mxu0 0
        %2194 = vmatmul.mubr.bf16.gmra.mrb[0].mxu0 %v2051
        %v2195 = vpop.f32.mrb[0].mxu0
        %v2196 = vadd.f32 0.0, %v2195
        %v2197 = vpop.f32.mrb[0].mxu0
        %v2198 = vpop.f32.mrb[0].mxu0
        %v2199 = vadd.f32 0.0, %v2198
        %v2200 = vpop.f32.mrb[0].mxu0
        %2201 = vmatprep.mubr.bf16.mxu0 0
        %2202 = vmatmul.mubr.bf16.gmra.mrb[0].mxu0 %v2054
        %v2203 = vpop.f32.mrb[0].mxu0
        %v2204 = vadd.f32 0.0, %v2203
        %v2205 = vpop.f32.mrb[0].mxu0
        %v2206 = vpop.f32.mrb[0].mxu0
        %v2207 = vadd.f32 0.0, %v2206
        %v2208 = vpop.f32.mrb[0].mxu0
        %2209 = vmatprep.mubr.bf16.mxu0 0
        %2210 = vmatmul.mubr.bf16.gmra.mrb[0].mxu0 %v2057
        %v2211 = vpop.f32.mrb[0].mxu0
        %v2212 = vadd.f32 0.0, %v2211
        %v2213 = vpop.f32.mrb[0].mxu0
        %v2214 = vpop.f32.mrb[0].mxu0
        %v2215 = vadd.f32 0.0, %v2214
        %v2216 = vpop.f32.mrb[0].mxu0
        %2217 = vmatprep.mubr.bf16.mxu0 0
        %2218 = vmatmul.mubr.bf16.gmra.mrb[0].mxu0 %v2060
        %v2219 = vpop.f32.mrb[0].mxu0
        %v2220 = vadd.f32 0.0, %v2219
        %v2221 = vpop.f32.mrb[0].mxu0
        %v2222 = vpop.f32.mrb[0].mxu0
        %v2223 = vadd.f32 0.0, %v2222
        %v2224 = vpop.f32.mrb[0].mxu0
        %2225 = vdwg.mxu0
        %v2226 = vadd.f32 %v1412, %v2100
        %v2227 = vadd.f32 %v1415, %v2103
        %v2228 = vadd.f32 %v1420, %v2108
        %v2229 = vadd.f32 %v1423, %v2111
        %v2230 = vadd.f32 %v1428, %v2116
        %v2231 = vadd.f32 %v1431, %v2119
        %v2232 = vadd.f32 %v1436, %v2124
        %v2233 = vadd.f32 %v1439, %v2127
        %v2234 = vadd.f32 %v1444, %v2132
        %v2235 = vadd.f32 %v1447, %v2135
        %v2236 = vadd.f32 %v1452, %v2140
        %v2237 = vadd.f32 %v1455, %v2143
        %v2238 = vadd.f32 %v1460, %v2148
        %v2239 = vadd.f32 %v1463, %v2151
        %v2240 = vadd.f32 %v1468, %v2156
        %v2241 = vadd.f32 %v1471, %v2159
        %v2242 = vadd.f32 %v1476, %v2164
        %v2243 = vadd.f32 %v1479, %v2167
        %v2244 = vadd.f32 %v1484, %v2172
        %v2245 = vadd.f32 %v1487, %v2175
        %v2246 = vadd.f32 %v1492, %v2180
        %v2247 = vadd.f32 %v1495, %v2183
        %v2248 = vadd.f32 %v1500, %v2188
        %v2249 = vadd.f32 %v1503, %v2191
        %v2250 = vadd.f32 %v1508, %v2196
        %v2251 = vadd.f32 %v1511, %v2199
        %v2252 = vadd.f32 %v1516, %v2204
        %v2253 = vadd.f32 %v1519, %v2207
        %v2254 = vadd.f32 %v1524, %v2212
        %v2255 = vadd.f32 %v1527, %v2215
        %v2256 = vadd.f32 %v1532, %v2220
        %v2257 = vadd.f32 %v1535, %v2223
        %v2258 = vld [vmem:[%s167 + $0x8] sm:$0xf]
        %v2259 = vld [vmem:[%s167 + $0xc] sm:$0xf]
        %v2260 = vld [vmem:[%s167 + $0x10] sm:$0xf]
        %v2261 = vld [vmem:[%s167 + $0x14] sm:$0xf]
        %v2262 = vld [vmem:[%s167 + $0x18] sm:$0xf]
        %v2263 = vld [vmem:[%s167 + $0x1c] sm:$0xf]
        %v2264 = vld [vmem:[%s167 + $0x20] sm:$0xf]
        %v2265 = vld [vmem:[%s167 + $0x24] sm:$0xf]
        %v2266 = vld [vmem:[%s167 + $0x28] sm:$0xf]
        %v2267 = vld [vmem:[%s167 + $0x2c] sm:$0xf]
        %v2268 = vld [vmem:[%s167 + $0x30] sm:$0xf]
        %v2269 = vld [vmem:[%s167 + $0x34] sm:$0xf]
        %v2270 = vld [vmem:[%s167 + $0x38] sm:$0xf]
        %v2271 = vld [vmem:[%s167 + $0x3c] sm:$0xf]
        %v2272 = vld [vmem:[%s167 + $0x40] sm:$0xf]
        %v2273 = vld [vmem:[%s167 + $0x44] sm:$0xf]
        %v2274 = vld [vmem:[%s167 + $0x48] sm:$0xf]
        %v2275 = vld [vmem:[%s167 + $0x4c] sm:$0xf]
        %v2276 = vld [vmem:[%s167 + $0x50] sm:$0xf]
        %v2277 = vld [vmem:[%s167 + $0x54] sm:$0xf]
        %v2278 = vld [vmem:[%s167 + $0x58] sm:$0xf]
        %v2279 = vld [vmem:[%s167 + $0x5c] sm:$0xf]
        %v2280 = vld [vmem:[%s167 + $0x60] sm:$0xf]
        %v2281 = vld [vmem:[%s167 + $0x64] sm:$0xf]
        %v2282 = vld [vmem:[%s167 + $0x68] sm:$0xf]
        %v2283 = vld [vmem:[%s167 + $0x6c] sm:$0xf]
        %v2284 = vld [vmem:[%s167 + $0x70] sm:$0xf]
        %v2285 = vld [vmem:[%s167 + $0x74] sm:$0xf]
        %v2286 = vld [vmem:[%s167 + $0x78] sm:$0xf]
        %v2287 = vld [vmem:[%s167 + $0x7c] sm:$0xf]
        %v2288 = vld [vmem:[%s167 + $0x80] sm:$0xf]
        %v2289 = vld [vmem:[%s167 + $0x84] sm:$0xf]
        %v2290 = vsel %vm748, %v2258, 0
        %v2291 = vsel %vm749, %v2259, 0
        %v2292 = vsel %vm750, %v2260, 0
        %v2293 = vsel %vm751, %v2261, 0
        %v2294 = vsel %vm752, %v2262, 0
        %v2295 = vsel %vm753, %v2263, 0
        %v2296 = vsel %vm754, %v2264, 0
        %v2297 = vsel %vm755, %v2265, 0
        %v2298 = vsel %vm756, %v2266, 0
        %v2299 = vsel %vm757, %v2267, 0
        %v2300 = vsel %vm758, %v2268, 0
        %v2301 = vsel %vm759, %v2269, 0
        %v2302 = vsel %vm760, %v2270, 0
        %v2303 = vsel %vm761, %v2271, 0
        %v2304 = vsel %vm762, %v2272, 0
        %v2305 = vsel %vm763, %v2273, 0
        %v2306 = vsel %vm764, %v2274, 0
        %v2307 = vsel %vm765, %v2275, 0
        %v2308 = vsel %vm766, %v2276, 0
        %v2309 = vsel %vm767, %v2277, 0
        %v2310 = vsel %vm768, %v2278, 0
        %v2311 = vsel %vm769, %v2279, 0
        %v2312 = vsel %vm770, %v2280, 0
        %v2313 = vsel %vm771, %v2281, 0
        %v2314 = vsel %vm772, %v2282, 0
        %v2315 = vsel %vm773, %v2283, 0
        %v2316 = vsel %vm774, %v2284, 0
        %v2317 = vsel %vm775, %v2285, 0
        %v2318 = vsel %vm776, %v2286, 0
        %v2319 = vsel %vm777, %v2287, 0
        %v2320 = vsel %vm778, %v2288, 0
        %v2321 = vsel %vm779, %v2289, 0
        %s2322 = scalar_lea.vmem %s1, 12
        %v2323 = vld [vmem:[%s2322] sm:$0xf]
        %v2356 = vunpack.c.l.b16 %v2290
        %v2357 = vunpack.c.l.b16 %v2291
        %v2358 = vunpack.c.l.b16 %v2292
        %v2359 = vunpack.c.l.b16 %v2293
        %v2360 = vunpack.c.l.b16 %v2294
        %v2361 = vunpack.c.l.b16 %v2295
        %v2362 = vunpack.c.l.b16 %v2296
        %v2363 = vunpack.c.l.b16 %v2297
        %v2364 = vunpack.c.l.b16 %v2298
        %v2365 = vunpack.c.l.b16 %v2299
        %v2366 = vunpack.c.l.b16 %v2300
        %v2367 = vunpack.c.l.b16 %v2301
        %v2368 = vunpack.c.l.b16 %v2302
        %v2369 = vunpack.c.l.b16 %v2303
        %v2370 = vunpack.c.l.b16 %v2304
        %v2371 = vunpack.c.l.b16 %v2305
        %v2372 = vunpack.c.l.b16 %v2306
        %v2373 = vunpack.c.l.b16 %v2307
        %v2374 = vunpack.c.l.b16 %v2308
        %v2375 = vunpack.c.l.b16 %v2309
        %v2376 = vunpack.c.l.b16 %v2310
        %v2377 = vunpack.c.l.b16 %v2311
        %v2378 = vunpack.c.l.b16 %v2312
        %v2379 = vunpack.c.l.b16 %v2313
        %v2380 = vunpack.c.l.b16 %v2314
        %v2381 = vunpack.c.l.b16 %v2315
        %v2382 = vunpack.c.l.b16 %v2316
        %v2383 = vunpack.c.l.b16 %v2317
        %v2384 = vunpack.c.l.b16 %v2318
        %v2385 = vunpack.c.l.b16 %v2319
        %v2386 = vunpack.c.l.b16 %v2320
        %v2387 = vunpack.c.l.b16 %v2321
        %v2388 = vpack.c.b16 %v2357, %v2356
        %v2389 = vpack.c.b16 %v2359, %v2358
        %v2390 = vpack.c.b16 %v2361, %v2360
        %v2391 = vpack.c.b16 %v2363, %v2362
        %v2392 = vpack.c.b16 %v2365, %v2364
        %v2393 = vpack.c.b16 %v2367, %v2366
        %v2394 = vpack.c.b16 %v2369, %v2368
        %v2395 = vpack.c.b16 %v2371, %v2370
        %v2396 = vpack.c.b16 %v2373, %v2372
        %v2397 = vpack.c.b16 %v2375, %v2374
        %v2398 = vpack.c.b16 %v2377, %v2376
        %v2399 = vpack.c.b16 %v2379, %v2378
        %v2400 = vpack.c.b16 %v2381, %v2380
        %v2401 = vpack.c.b16 %v2383, %v2382
        %v2402 = vpack.c.b16 %v2385, %v2384
        %v2403 = vpack.c.b16 %v2387, %v2386
        %v2405 = vsel %vm1032, %v2388, 0
        %v2408 = vsel %vm1032, %v2389, 0
        %v2411 = vsel %vm1032, %v2390, 0
        %v2414 = vsel %vm1032, %v2391, 0
        %v2417 = vsel %vm1032, %v2392, 0
        %v2420 = vsel %vm1032, %v2393, 0
        %v2423 = vsel %vm1032, %v2394, 0
        %v2426 = vsel %vm1032, %v2395, 0
        %v2429 = vsel %vm1032, %v2396, 0
        %v2432 = vsel %vm1032, %v2397, 0
        %v2435 = vsel %vm1032, %v2398, 0
        %v2438 = vsel %vm1032, %v2399, 0
        %v2441 = vsel %vm1032, %v2400, 0
        %v2444 = vsel %vm1032, %v2401, 0
        %v2447 = vsel %vm1032, %v2402, 0
        %v2450 = vsel %vm1032, %v2403, 0
        %v2453 = vsel %vm1081, %v2323, 0
        %2455 = vmatprep.subr.bf16.mxu0 0
        %2456 = vmatpush1.bf16.msra.mxu0 %v2453
        %2457 = vmatprep.subr.bf16.mxu0 0
        %2458 = vmatpush1.bf16.msra.mxu0 0
        %2459 = vmatprep.subr.bf16.mxu0 0
        %2460 = vmatpush1.bf16.msra.mxu0 0
        %2461 = vmatprep.subr.bf16.mxu0 0
        %2462 = vmatpush1.bf16.msra.mxu0 0
        %2463 = vmatprep.subr.bf16.mxu0 0
        %2464 = vmatpush1.bf16.msra.mxu0 0
        %2465 = vmatprep.subr.bf16.mxu0 0
        %2466 = vmatpush1.bf16.msra.mxu0 0
        %2467 = vmatprep.subr.bf16.mxu0 0
        %2468 = vmatpush1.bf16.msra.mxu0 0
        %2469 = vmatprep.subr.bf16.mxu0 0
        %2470 = vmatpush1.bf16.msra.mxu0 0
        %2471 = vmatprep.subr.bf16.mxu0 0
        %2472 = vmatpush1.bf16.msra.mxu0 0
        %2473 = vmatprep.subr.bf16.mxu0 0
        %2474 = vmatpush1.bf16.msra.mxu0 0
        %2475 = vmatprep.subr.bf16.mxu0 0
        %2476 = vmatpush1.bf16.msra.mxu0 0
        %2477 = vmatprep.subr.bf16.mxu0 0
        %2478 = vmatpush1.bf16.msra.mxu0 0
        %2479 = vmatprep.subr.bf16.mxu0 0
        %2480 = vmatpush1.bf16.msra.mxu0 0
        %2481 = vmatprep.subr.bf16.mxu0 0
        %2482 = vmatpush1.bf16.msra.mxu0 0
        %2483 = vmatprep.subr.bf16.mxu0 0
        %2484 = vmatpush1.bf16.msra.mxu0 0
        %2485 = vmatprep.subr.bf16.mxu0 0
        %2486 = vmatpush1.bf16.msra.mxu0 0
        %2487 = vmatprep.mubr.bf16.mxu0 0
        %2488 = vmatmul.mubr.bf16.gmra.mrb[0].mxu0 %v2405
        %v2489 = vpop.f32.mrb[0].mxu0
        %v2490 = vadd.f32 0.0, %v2489
        %v2491 = vpop.f32.mrb[0].mxu0
        %v2492 = vpop.f32.mrb[0].mxu0
        %v2493 = vadd.f32 0.0, %v2492
        %v2494 = vpop.f32.mrb[0].mxu0
        %2495 = vmatprep.mubr.bf16.mxu0 0
        %2496 = vmatmul.mubr.bf16.gmra.mrb[0].mxu0 %v2408
        %v2497 = vpop.f32.mrb[0].mxu0
        %v2498 = vadd.f32 0.0, %v2497
        %v2499 = vpop.f32.mrb[0].mxu0
        %v2500 = vpop.f32.mrb[0].mxu0
        %v2501 = vadd.f32 0.0, %v2500
        %v2502 = vpop.f32.mrb[0].mxu0
        %2503 = vmatprep.mubr.bf16.mxu0 0
        %2504 = vmatmul.mubr.bf16.gmra.mrb[0].mxu0 %v2411
        %v2505 = vpop.f32.mrb[0].mxu0
        %v2506 = vadd.f32 0.0, %v2505
        %v2507 = vpop.f32.mrb[0].mxu0
        %v2508 = vpop.f32.mrb[0].mxu0
        %v2509 = vadd.f32 0.0, %v2508
        %v2510 = vpop.f32.mrb[0].mxu0
        %2511 = vmatprep.mubr.bf16.mxu0 0
        %2512 = vmatmul.mubr.bf16.gmra.mrb[0].mxu0 %v2414
        %v2513 = vpop.f32.mrb[0].mxu0
        %v2514 = vadd.f32 0.0, %v2513
        %v2515 = vpop.f32.mrb[0].mxu0
        %v2516 = vpop.f32.mrb[0].mxu0
        %v2517 = vadd.f32 0.0, %v2516
        %v2518 = vpop.f32.mrb[0].mxu0
        %2519 = vmatprep.mubr.bf16.mxu0 0
        %2520 = vmatmul.mubr.bf16.gmra.mrb[0].mxu0 %v2417
        %v2521 = vpop.f32.mrb[0].mxu0
        %v2522 = vadd.f32 0.0, %v2521
        %v2523 = vpop.f32.mrb[0].mxu0
        %v2524 = vpop.f32.mrb[0].mxu0
        %v2525 = vadd.f32 0.0, %v2524
        %v2526 = vpop.f32.mrb[0].mxu0
        %2527 = vmatprep.mubr.bf16.mxu0 0
        %2528 = vmatmul.mubr.bf16.gmra.mrb[0].mxu0 %v2420
        %v2529 = vpop.f32.mrb[0].mxu0
        %v2530 = vadd.f32 0.0, %v2529
        %v2531 = vpop.f32.mrb[0].mxu0
        %v2532 = vpop.f32.mrb[0].mxu0
        %v2533 = vadd.f32 0.0, %v2532
        %v2534 = vpop.f32.mrb[0].mxu0
        %2535 = vmatprep.mubr.bf16.mxu0 0
        %2536 = vmatmul.mubr.bf16.gmra.mrb[0].mxu0 %v2423
        %v2537 = vpop.f32.mrb[0].mxu0
        %v2538 = vadd.f32 0.0, %v2537
        %v2539 = vpop.f32.mrb[0].mxu0
        %v2540 = vpop.f32.mrb[0].mxu0
        %v2541 = vadd.f32 0.0, %v2540
        %v2542 = vpop.f32.mrb[0].mxu0
        %2543 = vmatprep.mubr.bf16.mxu0 0
        %2544 = vmatmul.mubr.bf16.gmra.mrb[0].mxu0 %v2426
        %v2545 = vpop.f32.mrb[0].mxu0
        %v2546 = vadd.f32 0.0, %v2545
        %v2547 = vpop.f32.mrb[0].mxu0
        %v2548 = vpop.f32.mrb[0].mxu0
        %v2549 = vadd.f32 0.0, %v2548
        %v2550 = vpop.f32.mrb[0].mxu0
        %2551 = vmatprep.mubr.bf16.mxu0 0
        %2552 = vmatmul.mubr.bf16.gmra.mrb[0].mxu0 %v2429
        %v2553 = vpop.f32.mrb[0].mxu0
        %v2554 = vadd.f32 0.0, %v2553
        %v2555 = vpop.f32.mrb[0].mxu0
        %v2556 = vpop.f32.mrb[0].mxu0
        %v2557 = vadd.f32 0.0, %v2556
        %v2558 = vpop.f32.mrb[0].mxu0
        %2559 = vmatprep.mubr.bf16.mxu0 0
        %2560 = vmatmul.mubr.bf16.gmra.mrb[0].mxu0 %v2432
        %v2561 = vpop.f32.mrb[0].mxu0
        %v2562 = vadd.f32 0.0, %v2561
        %v2563 = vpop.f32.mrb[0].mxu0
        %v2564 = vpop.f32.mrb[0].mxu0
        %v2565 = vadd.f32 0.0, %v2564
        %v2566 = vpop.f32.mrb[0].mxu0
        %2567 = vmatprep.mubr.bf16.mxu0 0
        %2568 = vmatmul.mubr.bf16.gmra.mrb[0].mxu0 %v2435
        %v2569 = vpop.f32.mrb[0].mxu0
        %v2570 = vadd.f32 0.0, %v2569
        %v2571 = vpop.f32.mrb[0].mxu0
        %v2572 = vpop.f32.mrb[0].mxu0
        %v2573 = vadd.f32 0.0, %v2572
        %v2574 = vpop.f32.mrb[0].mxu0
        %2575 = vmatprep.mubr.bf16.mxu0 0
        %2576 = vmatmul.mubr.bf16.gmra.mrb[0].mxu0 %v2438
        %v2577 = vpop.f32.mrb[0].mxu0
        %v2578 = vadd.f32 0.0, %v2577
        %v2579 = vpop.f32.mrb[0].mxu0
        %v2580 = vpop.f32.mrb[0].mxu0
        %v2581 = vadd.f32 0.0, %v2580
        %v2582 = vpop.f32.mrb[0].mxu0
        %2583 = vmatprep.mubr.bf16.mxu0 0
        %2584 = vmatmul.mubr.bf16.gmra.mrb[0].mxu0 %v2441
        %v2585 = vpop.f32.mrb[0].mxu0
        %v2586 = vadd.f32 0.0, %v2585
        %v2587 = vpop.f32.mrb[0].mxu0
        %v2588 = vpop.f32.mrb[0].mxu0
        %v2589 = vadd.f32 0.0, %v2588
        %v2590 = vpop.f32.mrb[0].mxu0
        %2591 = vmatprep.mubr.bf16.mxu0 0
        %2592 = vmatmul.mubr.bf16.gmra.mrb[0].mxu0 %v2444
        %v2593 = vpop.f32.mrb[0].mxu0
        %v2594 = vadd.f32 0.0, %v2593
        %v2595 = vpop.f32.mrb[0].mxu0
        %v2596 = vpop.f32.mrb[0].mxu0
        %v2597 = vadd.f32 0.0, %v2596
        %v2598 = vpop.f32.mrb[0].mxu0
        %2599 = vmatprep.mubr.bf16.mxu0 0
        %2600 = vmatmul.mubr.bf16.gmra.mrb[0].mxu0 %v2447
        %v2601 = vpop.f32.mrb[0].mxu0
        %v2602 = vadd.f32 0.0, %v2601
        %v2603 = vpop.f32.mrb[0].mxu0
        %v2604 = vpop.f32.mrb[0].mxu0
        %v2605 = vadd.f32 0.0, %v2604
        %v2606 = vpop.f32.mrb[0].mxu0
        %2607 = vmatprep.mubr.bf16.mxu0 0
        %2608 = vmatmul.mubr.bf16.gmra.mrb[0].mxu0 %v2450
        %v2609 = vpop.f32.mrb[0].mxu0
        %v2610 = vadd.f32 0.0, %v2609
        %v2611 = vpop.f32.mrb[0].mxu0
        %v2612 = vpop.f32.mrb[0].mxu0
        %v2613 = vadd.f32 0.0, %v2612
        %v2614 = vpop.f32.mrb[0].mxu0
        %2615 = vdwg.mxu0
        %v2616 = vadd.f32 %v2226, %v2490
        %v2617 = vadd.f32 %v2227, %v2493
        %v2618 = vadd.f32 %v2228, %v2498
        %v2619 = vadd.f32 %v2229, %v2501
        %v2620 = vadd.f32 %v2230, %v2506
        %v2621 = vadd.f32 %v2231, %v2509
        %v2622 = vadd.f32 %v2232, %v2514
        %v2623 = vadd.f32 %v2233, %v2517
        %v2624 = vadd.f32 %v2234, %v2522
        %v2625 = vadd.f32 %v2235, %v2525
        %v2626 = vadd.f32 %v2236, %v2530
        %v2627 = vadd.f32 %v2237, %v2533
        %v2628 = vadd.f32 %v2238, %v2538
        %v2629 = vadd.f32 %v2239, %v2541
        %v2630 = vadd.f32 %v2240, %v2546
        %v2631 = vadd.f32 %v2241, %v2549
        %v2632 = vadd.f32 %v2242, %v2554
        %v2633 = vadd.f32 %v2243, %v2557
        %v2634 = vadd.f32 %v2244, %v2562
        %v2635 = vadd.f32 %v2245, %v2565
        %v2636 = vadd.f32 %v2246, %v2570
        %v2637 = vadd.f32 %v2247, %v2573
        %v2638 = vadd.f32 %v2248, %v2578
        %v2639 = vadd.f32 %v2249, %v2581
        %v2640 = vadd.f32 %v2250, %v2586
        %v2641 = vadd.f32 %v2251, %v2589
        %v2642 = vadd.f32 %v2252, %v2594
        %v2643 = vadd.f32 %v2253, %v2597
        %v2644 = vadd.f32 %v2254, %v2602
        %v2645 = vadd.f32 %v2255, %v2605
        %v2646 = vadd.f32 %v2256, %v2610
        %v2647 = vadd.f32 %v2257, %v2613
        %v2648 = vld [vmem:[%s167 + $0x8] sm:$0xf]
        %v2649 = vld [vmem:[%s167 + $0xc] sm:$0xf]
        %v2650 = vld [vmem:[%s167 + $0x10] sm:$0xf]
        %v2651 = vld [vmem:[%s167 + $0x14] sm:$0xf]
        %v2652 = vld [vmem:[%s167 + $0x18] sm:$0xf]
        %v2653 = vld [vmem:[%s167 + $0x1c] sm:$0xf]
        %v2654 = vld [vmem:[%s167 + $0x20] sm:$0xf]
        %v2655 = vld [vmem:[%s167 + $0x24] sm:$0xf]
        %v2656 = vld [vmem:[%s167 + $0x28] sm:$0xf]
        %v2657 = vld [vmem:[%s167 + $0x2c] sm:$0xf]
        %v2658 = vld [vmem:[%s167 + $0x30] sm:$0xf]
        %v2659 = vld [vmem:[%s167 + $0x34] sm:$0xf]
        %v2660 = vld [vmem:[%s167 + $0x38] sm:$0xf]
        %v2661 = vld [vmem:[%s167 + $0x3c] sm:$0xf]
        %v2662 = vld [vmem:[%s167 + $0x40] sm:$0xf]
        %v2663 = vld [vmem:[%s167 + $0x44] sm:$0xf]
        %v2664 = vld [vmem:[%s167 + $0x48] sm:$0xf]
        %v2665 = vld [vmem:[%s167 + $0x4c] sm:$0xf]
        %v2666 = vld [vmem:[%s167 + $0x50] sm:$0xf]
        %v2667 = vld [vmem:[%s167 + $0x54] sm:$0xf]
        %v2668 = vld [vmem:[%s167 + $0x58] sm:$0xf]
        %v2669 = vld [vmem:[%s167 + $0x5c] sm:$0xf]
        %v2670 = vld [vmem:[%s167 + $0x60] sm:$0xf]
        %v2671 = vld [vmem:[%s167 + $0x64] sm:$0xf]
        %v2672 = vld [vmem:[%s167 + $0x68] sm:$0xf]
        %v2673 = vld [vmem:[%s167 + $0x6c] sm:$0xf]
        %v2674 = vld [vmem:[%s167 + $0x70] sm:$0xf]
        %v2675 = vld [vmem:[%s167 + $0x74] sm:$0xf]
        %v2676 = vld [vmem:[%s167 + $0x78] sm:$0xf]
        %v2677 = vld [vmem:[%s167 + $0x7c] sm:$0xf]
        %v2678 = vld [vmem:[%s167 + $0x80] sm:$0xf]
        %v2679 = vld [vmem:[%s167 + $0x84] sm:$0xf]
        %v2680 = vld [vmem:[%s167 + $0x88] sm:$0x1]
        %s2681 = scalar_lea.vmem %s1, 16
        %v2682 = vld [vmem:[%s2681] sm:$0xf]
        %v2716 = vunpack.c.l.b16 %v2648
        %v2717 = vunpack.c.l.b16 %v2649
        %v2718 = vunpack.c.l.b16 %v2650
        %v2719 = vunpack.c.l.b16 %v2651
        %v2720 = vunpack.c.l.b16 %v2652
        %v2721 = vunpack.c.l.b16 %v2653
        %v2722 = vunpack.c.l.b16 %v2654
        %v2723 = vunpack.c.l.b16 %v2655
        %v2724 = vunpack.c.l.b16 %v2656
        %v2725 = vunpack.c.l.b16 %v2657
        %v2726 = vunpack.c.l.b16 %v2658
        %v2727 = vunpack.c.l.b16 %v2659
        %v2728 = vunpack.c.l.b16 %v2660
        %v2729 = vunpack.c.l.b16 %v2661
        %v2730 = vunpack.c.l.b16 %v2662
        %v2731 = vunpack.c.l.b16 %v2663
        %v2732 = vunpack.c.l.b16 %v2664
        %v2733 = vunpack.c.l.b16 %v2665
        %v2734 = vunpack.c.l.b16 %v2666
        %v2735 = vunpack.c.l.b16 %v2667
        %v2736 = vunpack.c.l.b16 %v2668
        %v2737 = vunpack.c.l.b16 %v2669
        %v2738 = vunpack.c.l.b16 %v2670
        %v2739 = vunpack.c.l.b16 %v2671
        %v2740 = vunpack.c.l.b16 %v2672
        %v2741 = vunpack.c.l.b16 %v2673
        %v2742 = vunpack.c.l.b16 %v2674
        %v2743 = vunpack.c.l.b16 %v2675
        %v2744 = vunpack.c.l.b16 %v2676
        %v2745 = vunpack.c.l.b16 %v2677
        %v2746 = vunpack.c.l.b16 %v2678
        %v2747 = vunpack.c.l.b16 %v2679
        %v2748 = vunpack.c.l.b16 %v2680
        %v2749 = vpack.c.b16 %v2717, %v2716
        %v2750 = vpack.c.b16 %v2719, %v2718
        %v2751 = vpack.c.b16 %v2721, %v2720
        %v2752 = vpack.c.b16 %v2723, %v2722
        %v2753 = vpack.c.b16 %v2725, %v2724
        %v2754 = vpack.c.b16 %v2727, %v2726
        %v2755 = vpack.c.b16 %v2729, %v2728
        %v2756 = vpack.c.b16 %v2731, %v2730
        %v2757 = vpack.c.b16 %v2733, %v2732
        %v2758 = vpack.c.b16 %v2735, %v2734
        %v2759 = vpack.c.b16 %v2737, %v2736
        %v2760 = vpack.c.b16 %v2739, %v2738
        %v2761 = vpack.c.b16 %v2741, %v2740
        %v2762 = vpack.c.b16 %v2743, %v2742
        %v2763 = vpack.c.b16 %v2745, %v2744
        %v2764 = vpack.c.b16 %v2747, %v2746
        %v2765 = vpack.c.b16 %v2748, %v2748
        %v2767 = vshrl.u32 %v2749, 16
        %v2769 = vshll.u32 %v2749, 16
        %v2771 = vrot.slane %v2769, 1
        %v2772 = vor.u32 %v2767, %v2771
        %v2774 = vshll.u32 %v2750, 16
        %v2776 = vrot.slane %v2774, 1
        %v2777 = vsel %vm899, %v2772, %v2776
        %v2778 = vshrl.u32 %v2750, 16
        %v2780 = vor.u32 %v2778, %v2776
        %v2782 = vshll.u32 %v2751, 16
        %v2784 = vrot.slane %v2782, 1
        %v2785 = vsel %vm899, %v2780, %v2784
        %v2786 = vshrl.u32 %v2751, 16
        %v2788 = vor.u32 %v2786, %v2784
        %v2790 = vshll.u32 %v2752, 16
        %v2792 = vrot.slane %v2790, 1
        %v2793 = vsel %vm899, %v2788, %v2792
        %v2794 = vshrl.u32 %v2752, 16
        %v2796 = vor.u32 %v2794, %v2792
        %v2798 = vshll.u32 %v2753, 16
        %v2800 = vrot.slane %v2798, 1
        %v2801 = vsel %vm899, %v2796, %v2800
        %v2802 = vshrl.u32 %v2753, 16
        %v2804 = vor.u32 %v2802, %v2800
        %v2806 = vshll.u32 %v2754, 16
        %v2808 = vrot.slane %v2806, 1
        %v2809 = vsel %vm899, %v2804, %v2808
        %v2810 = vshrl.u32 %v2754, 16
        %v2812 = vor.u32 %v2810, %v2808
        %v2814 = vshll.u32 %v2755, 16
        %v2816 = vrot.slane %v2814, 1
        %v2817 = vsel %vm899, %v2812, %v2816
        %v2818 = vshrl.u32 %v2755, 16
        %v2820 = vor.u32 %v2818, %v2816
        %v2822 = vshll.u32 %v2756, 16
        %v2824 = vrot.slane %v2822, 1
        %v2825 = vsel %vm899, %v2820, %v2824
        %v2826 = vshrl.u32 %v2756, 16
        %v2828 = vor.u32 %v2826, %v2824
        %v2830 = vshll.u32 %v2757, 16
        %v2832 = vrot.slane %v2830, 1
        %v2833 = vsel %vm899, %v2828, %v2832
        %v2834 = vshrl.u32 %v2757, 16
        %v2836 = vor.u32 %v2834, %v2832
        %v2838 = vshll.u32 %v2758, 16
        %v2840 = vrot.slane %v2838, 1
        %v2841 = vsel %vm899, %v2836, %v2840
        %v2842 = vshrl.u32 %v2758, 16
        %v2844 = vor.u32 %v2842, %v2840
        %v2846 = vshll.u32 %v2759, 16
        %v2848 = vrot.slane %v2846, 1
        %v2849 = vsel %vm899, %v2844, %v2848
        %v2850 = vshrl.u32 %v2759, 16
        %v2852 = vor.u32 %v2850, %v2848
        %v2854 = vshll.u32 %v2760, 16
        %v2856 = vrot.slane %v2854, 1
        %v2857 = vsel %vm899, %v2852, %v2856
        %v2858 = vshrl.u32 %v2760, 16
        %v2860 = vor.u32 %v2858, %v2856
        %v2862 = vshll.u32 %v2761, 16
        %v2864 = vrot.slane %v2862, 1
        %v2865 = vsel %vm899, %v2860, %v2864
        %v2866 = vshrl.u32 %v2761, 16
        %v2868 = vor.u32 %v2866, %v2864
        %v2870 = vshll.u32 %v2762, 16
        %v2872 = vrot.slane %v2870, 1
        %v2873 = vsel %vm899, %v2868, %v2872
        %v2874 = vshrl.u32 %v2762, 16
        %v2876 = vor.u32 %v2874, %v2872
        %v2878 = vshll.u32 %v2763, 16
        %v2880 = vrot.slane %v2878, 1
        %v2881 = vsel %vm899, %v2876, %v2880
        %v2882 = vshrl.u32 %v2763, 16
        %v2884 = vor.u32 %v2882, %v2880
        %v2886 = vshll.u32 %v2764, 16
        %v2888 = vrot.slane %v2886, 1
        %v2889 = vsel %vm899, %v2884, %v2888
        %v2890 = vshrl.u32 %v2764, 16
        %v2892 = vor.u32 %v2890, %v2888
        %v2894 = vshll.u32 %v2765, 16
        %v2896 = vrot.slane %v2894, 1
        %v2897 = vsel %vm899, %v2892, %v2896
        %v2899 = vsel %vm1032, %v2777, 0
        %v2902 = vsel %vm1032, %v2785, 0
        %v2905 = vsel %vm1032, %v2793, 0
        %v2908 = vsel %vm1032, %v2801, 0
        %v2911 = vsel %vm1032, %v2809, 0
        %v2914 = vsel %vm1032, %v2817, 0
        %v2917 = vsel %vm1032, %v2825, 0
        %v2920 = vsel %vm1032, %v2833, 0
        %v2923 = vsel %vm1032, %v2841, 0
        %v2926 = vsel %vm1032, %v2849, 0
        %v2929 = vsel %vm1032, %v2857, 0
        %v2932 = vsel %vm1032, %v2865, 0
        %v2935 = vsel %vm1032, %v2873, 0
        %v2938 = vsel %vm1032, %v2881, 0
        %v2941 = vsel %vm1032, %v2889, 0
        %v2944 = vsel %vm1032, %v2897, 0
        %v2947 = vsel %vm1081, %v2682, 0
        %2949 = vmatprep.subr.bf16.mxu0 0
        %2950 = vmatpush1.bf16.msra.mxu0 %v2947
        %2951 = vmatprep.subr.bf16.mxu0 0
        %2952 = vmatpush1.bf16.msra.mxu0 0
        %2953 = vmatprep.subr.bf16.mxu0 0
        %2954 = vmatpush1.bf16.msra.mxu0 0
        %2955 = vmatprep.subr.bf16.mxu0 0
        %2956 = vmatpush1.bf16.msra.mxu0 0
        %2957 = vmatprep.subr.bf16.mxu0 0
        %2958 = vmatpush1.bf16.msra.mxu0 0
        %2959 = vmatprep.subr.bf16.mxu0 0
        %2960 = vmatpush1.bf16.msra.mxu0 0
        %2961 = vmatprep.subr.bf16.mxu0 0
        %2962 = vmatpush1.bf16.msra.mxu0 0
        %2963 = vmatprep.subr.bf16.mxu0 0
        %2964 = vmatpush1.bf16.msra.mxu0 0
        %2965 = vmatprep.subr.bf16.mxu0 0
        %2966 = vmatpush1.bf16.msra.mxu0 0
        %2967 = vmatprep.subr.bf16.mxu0 0
        %2968 = vmatpush1.bf16.msra.mxu0 0
        %2969 = vmatprep.subr.bf16.mxu0 0
        %2970 = vmatpush1.bf16.msra.mxu0 0
        %2971 = vmatprep.subr.bf16.mxu0 0
        %2972 = vmatpush1.bf16.msra.mxu0 0
        %2973 = vmatprep.subr.bf16.mxu0 0
        %2974 = vmatpush1.bf16.msra.mxu0 0
        %2975 = vmatprep.subr.bf16.mxu0 0
        %2976 = vmatpush1.bf16.msra.mxu0 0
        %2977 = vmatprep.subr.bf16.mxu0 0
        %2978 = vmatpush1.bf16.msra.mxu0 0
        %2979 = vmatprep.subr.bf16.mxu0 0
        %2980 = vmatpush1.bf16.msra.mxu0 0
        %2981 = vmatprep.mubr.bf16.mxu0 0
        %2982 = vmatmul.mubr.bf16.gmra.mrb[0].mxu0 %v2899
        %v2983 = vpop.f32.mrb[0].mxu0
        %v2984 = vadd.f32 0.0, %v2983
        %v2985 = vpop.f32.mrb[0].mxu0
        %v2986 = vpop.f32.mrb[0].mxu0
        %v2987 = vadd.f32 0.0, %v2986
        %v2988 = vpop.f32.mrb[0].mxu0
        %2989 = vmatprep.mubr.bf16.mxu0 0
        %2990 = vmatmul.mubr.bf16.gmra.mrb[0].mxu0 %v2902
        %v2991 = vpop.f32.mrb[0].mxu0
        %v2992 = vadd.f32 0.0, %v2991
        %v2993 = vpop.f32.mrb[0].mxu0
        %v2994 = vpop.f32.mrb[0].mxu0
        %v2995 = vadd.f32 0.0, %v2994
        %v2996 = vpop.f32.mrb[0].mxu0
        %2997 = vmatprep.mubr.bf16.mxu0 0
        %2998 = vmatmul.mubr.bf16.gmra.mrb[0].mxu0 %v2905
        %v2999 = vpop.f32.mrb[0].mxu0
        %v3000 = vadd.f32 0.0, %v2999
        %v3001 = vpop.f32.mrb[0].mxu0
        %v3002 = vpop.f32.mrb[0].mxu0
        %v3003 = vadd.f32 0.0, %v3002
        %v3004 = vpop.f32.mrb[0].mxu0
        %3005 = vmatprep.mubr.bf16.mxu0 0
        %3006 = vmatmul.mubr.bf16.gmra.mrb[0].mxu0 %v2908
        %v3007 = vpop.f32.mrb[0].mxu0
        %v3008 = vadd.f32 0.0, %v3007
        %v3009 = vpop.f32.mrb[0].mxu0
        %v3010 = vpop.f32.mrb[0].mxu0
        %v3011 = vadd.f32 0.0, %v3010
        %v3012 = vpop.f32.mrb[0].mxu0
        %3013 = vmatprep.mubr.bf16.mxu0 0
        %3014 = vmatmul.mubr.bf16.gmra.mrb[0].mxu0 %v2911
        %v3015 = vpop.f32.mrb[0].mxu0
        %v3016 = vadd.f32 0.0, %v3015
        %v3017 = vpop.f32.mrb[0].mxu0
        %v3018 = vpop.f32.mrb[0].mxu0
        %v3019 = vadd.f32 0.0, %v3018
        %v3020 = vpop.f32.mrb[0].mxu0
        %3021 = vmatprep.mubr.bf16.mxu0 0
        %3022 = vmatmul.mubr.bf16.gmra.mrb[0].mxu0 %v2914
        %v3023 = vpop.f32.mrb[0].mxu0
        %v3024 = vadd.f32 0.0, %v3023
        %v3025 = vpop.f32.mrb[0].mxu0
        %v3026 = vpop.f32.mrb[0].mxu0
        %v3027 = vadd.f32 0.0, %v3026
        %v3028 = vpop.f32.mrb[0].mxu0
        %3029 = vmatprep.mubr.bf16.mxu0 0
        %3030 = vmatmul.mubr.bf16.gmra.mrb[0].mxu0 %v2917
        %v3031 = vpop.f32.mrb[0].mxu0
        %v3032 = vadd.f32 0.0, %v3031
        %v3033 = vpop.f32.mrb[0].mxu0
        %v3034 = vpop.f32.mrb[0].mxu0
        %v3035 = vadd.f32 0.0, %v3034
        %v3036 = vpop.f32.mrb[0].mxu0
        %3037 = vmatprep.mubr.bf16.mxu0 0
        %3038 = vmatmul.mubr.bf16.gmra.mrb[0].mxu0 %v2920
        %v3039 = vpop.f32.mrb[0].mxu0
        %v3040 = vadd.f32 0.0, %v3039
        %v3041 = vpop.f32.mrb[0].mxu0
        %v3042 = vpop.f32.mrb[0].mxu0
        %v3043 = vadd.f32 0.0, %v3042
        %v3044 = vpop.f32.mrb[0].mxu0
        %3045 = vmatprep.mubr.bf16.mxu0 0
        %3046 = vmatmul.mubr.bf16.gmra.mrb[0].mxu0 %v2923
        %v3047 = vpop.f32.mrb[0].mxu0
        %v3048 = vadd.f32 0.0, %v3047
        %v3049 = vpop.f32.mrb[0].mxu0
        %v3050 = vpop.f32.mrb[0].mxu0
        %v3051 = vadd.f32 0.0, %v3050
        %v3052 = vpop.f32.mrb[0].mxu0
        %3053 = vmatprep.mubr.bf16.mxu0 0
        %3054 = vmatmul.mubr.bf16.gmra.mrb[0].mxu0 %v2926
        %v3055 = vpop.f32.mrb[0].mxu0
        %v3056 = vadd.f32 0.0, %v3055
        %v3057 = vpop.f32.mrb[0].mxu0
        %v3058 = vpop.f32.mrb[0].mxu0
        %v3059 = vadd.f32 0.0, %v3058
        %v3060 = vpop.f32.mrb[0].mxu0
        %3061 = vmatprep.mubr.bf16.mxu0 0
        %3062 = vmatmul.mubr.bf16.gmra.mrb[0].mxu0 %v2929
        %v3063 = vpop.f32.mrb[0].mxu0
        %v3064 = vadd.f32 0.0, %v3063
        %v3065 = vpop.f32.mrb[0].mxu0
        %v3066 = vpop.f32.mrb[0].mxu0
        %v3067 = vadd.f32 0.0, %v3066
        %v3068 = vpop.f32.mrb[0].mxu0
        %3069 = vmatprep.mubr.bf16.mxu0 0
        %3070 = vmatmul.mubr.bf16.gmra.mrb[0].mxu0 %v2932
        %v3071 = vpop.f32.mrb[0].mxu0
        %v3072 = vadd.f32 0.0, %v3071
        %v3073 = vpop.f32.mrb[0].mxu0
        %v3074 = vpop.f32.mrb[0].mxu0
        %v3075 = vadd.f32 0.0, %v3074
        %v3076 = vpop.f32.mrb[0].mxu0
        %3077 = vmatprep.mubr.bf16.mxu0 0
        %3078 = vmatmul.mubr.bf16.gmra.mrb[0].mxu0 %v2935
        %v3079 = vpop.f32.mrb[0].mxu0
        %v3080 = vadd.f32 0.0, %v3079
        %v3081 = vpop.f32.mrb[0].mxu0
        %v3082 = vpop.f32.mrb[0].mxu0
        %v3083 = vadd.f32 0.0, %v3082
        %v3084 = vpop.f32.mrb[0].mxu0
        %3085 = vmatprep.mubr.bf16.mxu0 0
        %3086 = vmatmul.mubr.bf16.gmra.mrb[0].mxu0 %v2938
        %v3087 = vpop.f32.mrb[0].mxu0
        %v3088 = vadd.f32 0.0, %v3087
        %v3089 = vpop.f32.mrb[0].mxu0
        %v3090 = vpop.f32.mrb[0].mxu0
        %v3091 = vadd.f32 0.0, %v3090
        %v3092 = vpop.f32.mrb[0].mxu0
        %3093 = vmatprep.mubr.bf16.mxu0 0
        %3094 = vmatmul.mubr.bf16.gmra.mrb[0].mxu0 %v2941
        %v3095 = vpop.f32.mrb[0].mxu0
        %v3096 = vadd.f32 0.0, %v3095
        %v3097 = vpop.f32.mrb[0].mxu0
        %v3098 = vpop.f32.mrb[0].mxu0
        %v3099 = vadd.f32 0.0, %v3098
        %v3100 = vpop.f32.mrb[0].mxu0
        %3101 = vmatprep.mubr.bf16.mxu0 0
        %3102 = vmatmul.mubr.bf16.gmra.mrb[0].mxu0 %v2944
        %v3103 = vpop.f32.mrb[0].mxu0
        %v3104 = vadd.f32 0.0, %v3103
        %v3105 = vpop.f32.mrb[0].mxu0
        %v3106 = vpop.f32.mrb[0].mxu0
        %v3107 = vadd.f32 0.0, %v3106
        %v3108 = vpop.f32.mrb[0].mxu0
        %3109 = vdwg.mxu0
        %v3110 = vadd.f32 %v2616, %v2984
        %v3111 = vadd.f32 %v2617, %v2987
        %v3112 = vadd.f32 %v2618, %v2992
        %v3113 = vadd.f32 %v2619, %v2995
        %v3114 = vadd.f32 %v2620, %v3000
        %v3115 = vadd.f32 %v2621, %v3003
        %v3116 = vadd.f32 %v2622, %v3008
        %v3117 = vadd.f32 %v2623, %v3011
        %v3118 = vadd.f32 %v2624, %v3016
        %v3119 = vadd.f32 %v2625, %v3019
        %v3120 = vadd.f32 %v2626, %v3024
        %v3121 = vadd.f32 %v2627, %v3027
        %v3122 = vadd.f32 %v2628, %v3032
        %v3123 = vadd.f32 %v2629, %v3035
        %v3124 = vadd.f32 %v2630, %v3040
        %v3125 = vadd.f32 %v2631, %v3043
        %v3126 = vadd.f32 %v2632, %v3048
        %v3127 = vadd.f32 %v2633, %v3051
        %v3128 = vadd.f32 %v2634, %v3056
        %v3129 = vadd.f32 %v2635, %v3059
        %v3130 = vadd.f32 %v2636, %v3064
        %v3131 = vadd.f32 %v2637, %v3067
        %v3132 = vadd.f32 %v2638, %v3072
        %v3133 = vadd.f32 %v2639, %v3075
        %v3134 = vadd.f32 %v2640, %v3080
        %v3135 = vadd.f32 %v2641, %v3083
        %v3136 = vadd.f32 %v2642, %v3088
        %v3137 = vadd.f32 %v2643, %v3091
        %v3138 = vadd.f32 %v2644, %v3096
        %v3139 = vadd.f32 %v2645, %v3099
        %v3140 = vadd.f32 %v2646, %v3104
        %v3141 = vadd.f32 %v2647, %v3107
        %v3142 = vld [vmem:[%s167 + $0x8] sm:$0xe]
        %v3143 = vsel %vm1829, %v3142, 0
        %v3144 = vsel %vm1830, %v2649, 0
        %v3145 = vsel %vm1831, %v2650, 0
        %v3146 = vsel %vm1832, %v2651, 0
        %v3147 = vsel %vm1833, %v2652, 0
        %v3148 = vsel %vm1834, %v2653, 0
        %v3149 = vsel %vm1835, %v2654, 0
        %v3150 = vsel %vm1836, %v2655, 0
        %v3151 = vsel %vm1837, %v2656, 0
        %v3152 = vsel %vm1838, %v2657, 0
        %v3153 = vsel %vm1839, %v2658, 0
        %v3154 = vsel %vm1840, %v2659, 0
        %v3155 = vsel %vm1841, %v2660, 0
        %v3156 = vsel %vm1842, %v2661, 0
        %v3157 = vsel %vm1843, %v2662, 0
        %v3158 = vsel %vm1844, %v2663, 0
        %v3159 = vsel %vm1845, %v2664, 0
        %v3160 = vsel %vm1846, %v2665, 0
        %v3161 = vsel %vm1847, %v2666, 0
        %v3162 = vsel %vm1848, %v2667, 0
        %v3163 = vsel %vm1849, %v2668, 0
        %v3164 = vsel %vm1850, %v2669, 0
        %v3165 = vsel %vm1851, %v2670, 0
        %v3166 = vsel %vm1852, %v2671, 0
        %v3167 = vsel %vm1853, %v2672, 0
        %v3168 = vsel %vm1854, %v2673, 0
        %v3169 = vsel %vm1855, %v2674, 0
        %v3170 = vsel %vm1856, %v2675, 0
        %v3171 = vsel %vm1857, %v2676, 0
        %v3172 = vsel %vm1858, %v2677, 0
        %v3173 = vsel %vm1859, %v2678, 0
        %v3174 = vsel %vm1860, %v2679, 0
        %v3175 = vsel %vm1861, %v2680, 0
        %s3176 = scalar_lea.vmem %s1, 20
        %v3177 = vld [vmem:[%s3176] sm:$0xf]
        %v3211 = vunpack.c.l.b16 %v3143
        %v3212 = vunpack.c.l.b16 %v3144
        %v3213 = vunpack.c.l.b16 %v3145
        %v3214 = vunpack.c.l.b16 %v3146
        %v3215 = vunpack.c.l.b16 %v3147
        %v3216 = vunpack.c.l.b16 %v3148
        %v3217 = vunpack.c.l.b16 %v3149
        %v3218 = vunpack.c.l.b16 %v3150
        %v3219 = vunpack.c.l.b16 %v3151
        %v3220 = vunpack.c.l.b16 %v3152
        %v3221 = vunpack.c.l.b16 %v3153
        %v3222 = vunpack.c.l.b16 %v3154
        %v3223 = vunpack.c.l.b16 %v3155
        %v3224 = vunpack.c.l.b16 %v3156
        %v3225 = vunpack.c.l.b16 %v3157
        %v3226 = vunpack.c.l.b16 %v3158
        %v3227 = vunpack.c.l.b16 %v3159
        %v3228 = vunpack.c.l.b16 %v3160
        %v3229 = vunpack.c.l.b16 %v3161
        %v3230 = vunpack.c.l.b16 %v3162
        %v3231 = vunpack.c.l.b16 %v3163
        %v3232 = vunpack.c.l.b16 %v3164
        %v3233 = vunpack.c.l.b16 %v3165
        %v3234 = vunpack.c.l.b16 %v3166
        %v3235 = vunpack.c.l.b16 %v3167
        %v3236 = vunpack.c.l.b16 %v3168
        %v3237 = vunpack.c.l.b16 %v3169
        %v3238 = vunpack.c.l.b16 %v3170
        %v3239 = vunpack.c.l.b16 %v3171
        %v3240 = vunpack.c.l.b16 %v3172
        %v3241 = vunpack.c.l.b16 %v3173
        %v3242 = vunpack.c.l.b16 %v3174
        %v3243 = vunpack.c.l.b16 %v3175
        %v3244 = vpack.c.b16 %v3212, %v3211
        %v3245 = vpack.c.b16 %v3214, %v3213
        %v3246 = vpack.c.b16 %v3216, %v3215
        %v3247 = vpack.c.b16 %v3218, %v3217
        %v3248 = vpack.c.b16 %v3220, %v3219
        %v3249 = vpack.c.b16 %v3222, %v3221
        %v3250 = vpack.c.b16 %v3224, %v3223
        %v3251 = vpack.c.b16 %v3226, %v3225
        %v3252 = vpack.c.b16 %v3228, %v3227
        %v3253 = vpack.c.b16 %v3230, %v3229
        %v3254 = vpack.c.b16 %v3232, %v3231
        %v3255 = vpack.c.b16 %v3234, %v3233
        %v3256 = vpack.c.b16 %v3236, %v3235
        %v3257 = vpack.c.b16 %v3238, %v3237
        %v3258 = vpack.c.b16 %v3240, %v3239
        %v3259 = vpack.c.b16 %v3242, %v3241
        %v3260 = vpack.c.b16 %v3243, %v3243
        %v3261 = vrot.slane %v3244, 1
        %v3262 = vrot.slane %v3245, 1
        %v3263 = vsel %vm1980, %v3261, %v3262
        %v3264 = vrot.slane %v3246, 1
        %v3265 = vsel %vm1980, %v3262, %v3264
        %v3266 = vrot.slane %v3247, 1
        %v3267 = vsel %vm1980, %v3264, %v3266
        %v3268 = vrot.slane %v3248, 1
        %v3269 = vsel %vm1980, %v3266, %v3268
        %v3270 = vrot.slane %v3249, 1
        %v3271 = vsel %vm1980, %v3268, %v3270
        %v3272 = vrot.slane %v3250, 1
        %v3273 = vsel %vm1980, %v3270, %v3272
        %v3274 = vrot.slane %v3251, 1
        %v3275 = vsel %vm1980, %v3272, %v3274
        %v3276 = vrot.slane %v3252, 1
        %v3277 = vsel %vm1980, %v3274, %v3276
        %v3278 = vrot.slane %v3253, 1
        %v3279 = vsel %vm1980, %v3276, %v3278
        %v3280 = vrot.slane %v3254, 1
        %v3281 = vsel %vm1980, %v3278, %v3280
        %v3282 = vrot.slane %v3255, 1
        %v3283 = vsel %vm1980, %v3280, %v3282
        %v3284 = vrot.slane %v3256, 1
        %v3285 = vsel %vm1980, %v3282, %v3284
        %v3286 = vrot.slane %v3257, 1
        %v3287 = vsel %vm1980, %v3284, %v3286
        %v3288 = vrot.slane %v3258, 1
        %v3289 = vsel %vm1980, %v3286, %v3288
        %v3290 = vrot.slane %v3259, 1
        %v3291 = vsel %vm1980, %v3288, %v3290
        %v3292 = vrot.slane %v3260, 1
        %v3293 = vsel %vm1980, %v3290, %v3292
        %v3295 = vsel %vm1032, %v3263, 0
        %v3298 = vsel %vm1032, %v3265, 0
        %v3301 = vsel %vm1032, %v3267, 0
        %v3304 = vsel %vm1032, %v3269, 0
        %v3307 = vsel %vm1032, %v3271, 0
        %v3310 = vsel %vm1032, %v3273, 0
        %v3313 = vsel %vm1032, %v3275, 0
        %v3316 = vsel %vm1032, %v3277, 0
        %v3319 = vsel %vm1032, %v3279, 0
        %v3322 = vsel %vm1032, %v3281, 0
        %v3325 = vsel %vm1032, %v3283, 0
        %v3328 = vsel %vm1032, %v3285, 0
        %v3331 = vsel %vm1032, %v3287, 0
        %v3334 = vsel %vm1032, %v3289, 0
        %v3337 = vsel %vm1032, %v3291, 0
        %v3340 = vsel %vm1032, %v3293, 0
        %v3343 = vsel %vm1081, %v3177, 0
        %3345 = vmatprep.subr.bf16.mxu0 0
        %3346 = vmatpush1.bf16.msra.mxu0 %v3343
        %3347 = vmatprep.subr.bf16.mxu0 0
        %3348 = vmatpush1.bf16.msra.mxu0 0
        %3349 = vmatprep.subr.bf16.mxu0 0
        %3350 = vmatpush1.bf16.msra.mxu0 0
        %3351 = vmatprep.subr.bf16.mxu0 0
        %3352 = vmatpush1.bf16.msra.mxu0 0
        %3353 = vmatprep.subr.bf16.mxu0 0
        %3354 = vmatpush1.bf16.msra.mxu0 0
        %3355 = vmatprep.subr.bf16.mxu0 0
        %3356 = vmatpush1.bf16.msra.mxu0 0
        %3357 = vmatprep.subr.bf16.mxu0 0
        %3358 = vmatpush1.bf16.msra.mxu0 0
        %3359 = vmatprep.subr.bf16.mxu0 0
        %3360 = vmatpush1.bf16.msra.mxu0 0
        %3361 = vmatprep.subr.bf16.mxu0 0
        %3362 = vmatpush1.bf16.msra.mxu0 0
        %3363 = vmatprep.subr.bf16.mxu0 0
        %3364 = vmatpush1.bf16.msra.mxu0 0
        %3365 = vmatprep.subr.bf16.mxu0 0
        %3366 = vmatpush1.bf16.msra.mxu0 0
        %3367 = vmatprep.subr.bf16.mxu0 0
        %3368 = vmatpush1.bf16.msra.mxu0 0
        %3369 = vmatprep.subr.bf16.mxu0 0
        %3370 = vmatpush1.bf16.msra.mxu0 0
        %3371 = vmatprep.subr.bf16.mxu0 0
        %3372 = vmatpush1.bf16.msra.mxu0 0
        %3373 = vmatprep.subr.bf16.mxu0 0
        %3374 = vmatpush1.bf16.msra.mxu0 0
        %3375 = vmatprep.subr.bf16.mxu0 0
        %3376 = vmatpush1.bf16.msra.mxu0 0
        %3377 = vmatprep.mubr.bf16.mxu0 0
        %3378 = vmatmul.mubr.bf16.gmra.mrb[0].mxu0 %v3295
        %v3379 = vpop.f32.mrb[0].mxu0
        %v3380 = vadd.f32 0.0, %v3379
        %v3381 = vpop.f32.mrb[0].mxu0
        %v3382 = vpop.f32.mrb[0].mxu0
        %v3383 = vadd.f32 0.0, %v3382
        %v3384 = vpop.f32.mrb[0].mxu0
        %3385 = vmatprep.mubr.bf16.mxu0 0
        %3386 = vmatmul.mubr.bf16.gmra.mrb[0].mxu0 %v3298
        %v3387 = vpop.f32.mrb[0].mxu0
        %v3388 = vadd.f32 0.0, %v3387
        %v3389 = vpop.f32.mrb[0].mxu0
        %v3390 = vpop.f32.mrb[0].mxu0
        %v3391 = vadd.f32 0.0, %v3390
        %v3392 = vpop.f32.mrb[0].mxu0
        %3393 = vmatprep.mubr.bf16.mxu0 0
        %3394 = vmatmul.mubr.bf16.gmra.mrb[0].mxu0 %v3301
        %v3395 = vpop.f32.mrb[0].mxu0
        %v3396 = vadd.f32 0.0, %v3395
        %v3397 = vpop.f32.mrb[0].mxu0
        %v3398 = vpop.f32.mrb[0].mxu0
        %v3399 = vadd.f32 0.0, %v3398
        %v3400 = vpop.f32.mrb[0].mxu0
        %3401 = vmatprep.mubr.bf16.mxu0 0
        %3402 = vmatmul.mubr.bf16.gmra.mrb[0].mxu0 %v3304
        %v3403 = vpop.f32.mrb[0].mxu0
        %v3404 = vadd.f32 0.0, %v3403
        %v3405 = vpop.f32.mrb[0].mxu0
        %v3406 = vpop.f32.mrb[0].mxu0
        %v3407 = vadd.f32 0.0, %v3406
        %v3408 = vpop.f32.mrb[0].mxu0
        %3409 = vmatprep.mubr.bf16.mxu0 0
        %3410 = vmatmul.mubr.bf16.gmra.mrb[0].mxu0 %v3307
        %v3411 = vpop.f32.mrb[0].mxu0
        %v3412 = vadd.f32 0.0, %v3411
        %v3413 = vpop.f32.mrb[0].mxu0
        %v3414 = vpop.f32.mrb[0].mxu0
        %v3415 = vadd.f32 0.0, %v3414
        %v3416 = vpop.f32.mrb[0].mxu0
        %3417 = vmatprep.mubr.bf16.mxu0 0
        %3418 = vmatmul.mubr.bf16.gmra.mrb[0].mxu0 %v3310
        %v3419 = vpop.f32.mrb[0].mxu0
        %v3420 = vadd.f32 0.0, %v3419
        %v3421 = vpop.f32.mrb[0].mxu0
        %v3422 = vpop.f32.mrb[0].mxu0
        %v3423 = vadd.f32 0.0, %v3422
        %v3424 = vpop.f32.mrb[0].mxu0
        %3425 = vmatprep.mubr.bf16.mxu0 0
        %3426 = vmatmul.mubr.bf16.gmra.mrb[0].mxu0 %v3313
        %v3427 = vpop.f32.mrb[0].mxu0
        %v3428 = vadd.f32 0.0, %v3427
        %v3429 = vpop.f32.mrb[0].mxu0
        %v3430 = vpop.f32.mrb[0].mxu0
        %v3431 = vadd.f32 0.0, %v3430
        %v3432 = vpop.f32.mrb[0].mxu0
        %3433 = vmatprep.mubr.bf16.mxu0 0
        %3434 = vmatmul.mubr.bf16.gmra.mrb[0].mxu0 %v3316
        %v3435 = vpop.f32.mrb[0].mxu0
        %v3436 = vadd.f32 0.0, %v3435
        %v3437 = vpop.f32.mrb[0].mxu0
        %v3438 = vpop.f32.mrb[0].mxu0
        %v3439 = vadd.f32 0.0, %v3438
        %v3440 = vpop.f32.mrb[0].mxu0
        %3441 = vmatprep.mubr.bf16.mxu0 0
        %3442 = vmatmul.mubr.bf16.gmra.mrb[0].mxu0 %v3319
        %v3443 = vpop.f32.mrb[0].mxu0
        %v3444 = vadd.f32 0.0, %v3443
        %v3445 = vpop.f32.mrb[0].mxu0
        %v3446 = vpop.f32.mrb[0].mxu0
        %v3447 = vadd.f32 0.0, %v3446
        %v3448 = vpop.f32.mrb[0].mxu0
        %3449 = vmatprep.mubr.bf16.mxu0 0
        %3450 = vmatmul.mubr.bf16.gmra.mrb[0].mxu0 %v3322
        %v3451 = vpop.f32.mrb[0].mxu0
        %v3452 = vadd.f32 0.0, %v3451
        %v3453 = vpop.f32.mrb[0].mxu0
        %v3454 = vpop.f32.mrb[0].mxu0
        %v3455 = vadd.f32 0.0, %v3454
        %v3456 = vpop.f32.mrb[0].mxu0
        %3457 = vmatprep.mubr.bf16.mxu0 0
        %3458 = vmatmul.mubr.bf16.gmra.mrb[0].mxu0 %v3325
        %v3459 = vpop.f32.mrb[0].mxu0
        %v3460 = vadd.f32 0.0, %v3459
        %v3461 = vpop.f32.mrb[0].mxu0
        %v3462 = vpop.f32.mrb[0].mxu0
        %v3463 = vadd.f32 0.0, %v3462
        %v3464 = vpop.f32.mrb[0].mxu0
        %3465 = vmatprep.mubr.bf16.mxu0 0
        %3466 = vmatmul.mubr.bf16.gmra.mrb[0].mxu0 %v3328
        %v3467 = vpop.f32.mrb[0].mxu0
        %v3468 = vadd.f32 0.0, %v3467
        %v3469 = vpop.f32.mrb[0].mxu0
        %v3470 = vpop.f32.mrb[0].mxu0
        %v3471 = vadd.f32 0.0, %v3470
        %v3472 = vpop.f32.mrb[0].mxu0
        %3473 = vmatprep.mubr.bf16.mxu0 0
        %3474 = vmatmul.mubr.bf16.gmra.mrb[0].mxu0 %v3331
        %v3475 = vpop.f32.mrb[0].mxu0
        %v3476 = vadd.f32 0.0, %v3475
        %v3477 = vpop.f32.mrb[0].mxu0
        %v3478 = vpop.f32.mrb[0].mxu0
        %v3479 = vadd.f32 0.0, %v3478
        %v3480 = vpop.f32.mrb[0].mxu0
        %3481 = vmatprep.mubr.bf16.mxu0 0
        %3482 = vmatmul.mubr.bf16.gmra.mrb[0].mxu0 %v3334
        %v3483 = vpop.f32.mrb[0].mxu0
        %v3484 = vadd.f32 0.0, %v3483
        %v3485 = vpop.f32.mrb[0].mxu0
        %v3486 = vpop.f32.mrb[0].mxu0
        %v3487 = vadd.f32 0.0, %v3486
        %v3488 = vpop.f32.mrb[0].mxu0
        %3489 = vmatprep.mubr.bf16.mxu0 0
        %3490 = vmatmul.mubr.bf16.gmra.mrb[0].mxu0 %v3337
        %v3491 = vpop.f32.mrb[0].mxu0
        %v3492 = vadd.f32 0.0, %v3491
        %v3493 = vpop.f32.mrb[0].mxu0
        %v3494 = vpop.f32.mrb[0].mxu0
        %v3495 = vadd.f32 0.0, %v3494
        %v3496 = vpop.f32.mrb[0].mxu0
        %3497 = vmatprep.mubr.bf16.mxu0 0
        %3498 = vmatmul.mubr.bf16.gmra.mrb[0].mxu0 %v3340
        %v3499 = vpop.f32.mrb[0].mxu0
        %v3500 = vadd.f32 0.0, %v3499
        %v3501 = vpop.f32.mrb[0].mxu0
        %v3502 = vpop.f32.mrb[0].mxu0
        %v3503 = vadd.f32 0.0, %v3502
        %v3504 = vpop.f32.mrb[0].mxu0
        %3505 = vdwg.mxu0
        %v3506 = vadd.f32 %v3110, %v3380
        %v3507 = vadd.f32 %v3111, %v3383
        %v3508 = vadd.f32 %v3112, %v3388
        %v3509 = vadd.f32 %v3113, %v3391
        %v3510 = vadd.f32 %v3114, %v3396
        %v3511 = vadd.f32 %v3115, %v3399
        %v3512 = vadd.f32 %v3116, %v3404
        %v3513 = vadd.f32 %v3117, %v3407
        %v3514 = vadd.f32 %v3118, %v3412
        %v3515 = vadd.f32 %v3119, %v3415
        %v3516 = vadd.f32 %v3120, %v3420
        %v3517 = vadd.f32 %v3121, %v3423
        %v3518 = vadd.f32 %v3122, %v3428
        %v3519 = vadd.f32 %v3123, %v3431
        %v3520 = vadd.f32 %v3124, %v3436
        %v3521 = vadd.f32 %v3125, %v3439
        %v3522 = vadd.f32 %v3126, %v3444
        %v3523 = vadd.f32 %v3127, %v3447
        %v3524 = vadd.f32 %v3128, %v3452
        %v3525 = vadd.f32 %v3129, %v3455
        %v3526 = vadd.f32 %v3130, %v3460
        %v3527 = vadd.f32 %v3131, %v3463
        %v3528 = vadd.f32 %v3132, %v3468
        %v3529 = vadd.f32 %v3133, %v3471
        %v3530 = vadd.f32 %v3134, %v3476
        %v3531 = vadd.f32 %v3135, %v3479
        %v3532 = vadd.f32 %v3136, %v3484
        %v3533 = vadd.f32 %v3137, %v3487
        %v3534 = vadd.f32 %v3138, %v3492
        %v3535 = vadd.f32 %v3139, %v3495
        %v3536 = vadd.f32 %v3140, %v3500
        %v3537 = vadd.f32 %v3141, %v3503
        %v3538 = vld [vmem:[%s167 + $0x10] sm:$0xf]
        %v3539 = vld [vmem:[%s167 + $0x14] sm:$0xf]
        %v3540 = vld [vmem:[%s167 + $0x18] sm:$0xf]
        %v3541 = vld [vmem:[%s167 + $0x1c] sm:$0xf]
        %v3542 = vld [vmem:[%s167 + $0x20] sm:$0xf]
        %v3543 = vld [vmem:[%s167 + $0x24] sm:$0xf]
        %v3544 = vld [vmem:[%s167 + $0x28] sm:$0xf]
        %v3545 = vld [vmem:[%s167 + $0x2c] sm:$0xf]
        %v3546 = vld [vmem:[%s167 + $0x30] sm:$0xf]
        %v3547 = vld [vmem:[%s167 + $0x34] sm:$0xf]
        %v3548 = vld [vmem:[%s167 + $0x38] sm:$0xf]
        %v3549 = vld [vmem:[%s167 + $0x3c] sm:$0xf]
        %v3550 = vld [vmem:[%s167 + $0x40] sm:$0xf]
        %v3551 = vld [vmem:[%s167 + $0x44] sm:$0xf]
        %v3552 = vld [vmem:[%s167 + $0x48] sm:$0xf]
        %v3553 = vld [vmem:[%s167 + $0x4c] sm:$0xf]
        %v3554 = vld [vmem:[%s167 + $0x50] sm:$0xf]
        %v3555 = vld [vmem:[%s167 + $0x54] sm:$0xf]
        %v3556 = vld [vmem:[%s167 + $0x58] sm:$0xf]
        %v3557 = vld [vmem:[%s167 + $0x5c] sm:$0xf]
        %v3558 = vld [vmem:[%s167 + $0x60] sm:$0xf]
        %v3559 = vld [vmem:[%s167 + $0x64] sm:$0xf]
        %v3560 = vld [vmem:[%s167 + $0x68] sm:$0xf]
        %v3561 = vld [vmem:[%s167 + $0x6c] sm:$0xf]
        %v3562 = vld [vmem:[%s167 + $0x70] sm:$0xf]
        %v3563 = vld [vmem:[%s167 + $0x74] sm:$0xf]
        %v3564 = vld [vmem:[%s167 + $0x78] sm:$0xf]
        %v3565 = vld [vmem:[%s167 + $0x7c] sm:$0xf]
        %v3566 = vld [vmem:[%s167 + $0x80] sm:$0xf]
        %v3567 = vld [vmem:[%s167 + $0x84] sm:$0xf]
        %v3568 = vld [vmem:[%s167 + $0x88] sm:$0xf]
        %v3569 = vld [vmem:[%s167 + $0x8c] sm:$0xf]
        %v3570 = vsel %vm748, %v3538, 0
        %v3571 = vsel %vm749, %v3539, 0
        %v3572 = vsel %vm750, %v3540, 0
        %v3573 = vsel %vm751, %v3541, 0
        %v3574 = vsel %vm752, %v3542, 0
        %v3575 = vsel %vm753, %v3543, 0
        %v3576 = vsel %vm754, %v3544, 0
        %v3577 = vsel %vm755, %v3545, 0
        %v3578 = vsel %vm756, %v3546, 0
        %v3579 = vsel %vm757, %v3547, 0
        %v3580 = vsel %vm758, %v3548, 0
        %v3581 = vsel %vm759, %v3549, 0
        %v3582 = vsel %vm760, %v3550, 0
        %v3583 = vsel %vm761, %v3551, 0
        %v3584 = vsel %vm762, %v3552, 0
        %v3585 = vsel %vm763, %v3553, 0
        %v3586 = vsel %vm764, %v3554, 0
        %v3587 = vsel %vm765, %v3555, 0
        %v3588 = vsel %vm766, %v3556, 0
        %v3589 = vsel %vm767, %v3557, 0
        %v3590 = vsel %vm768, %v3558, 0
        %v3591 = vsel %vm769, %v3559, 0
        %v3592 = vsel %vm770, %v3560, 0
        %v3593 = vsel %vm771, %v3561, 0
        %v3594 = vsel %vm772, %v3562, 0
        %v3595 = vsel %vm773, %v3563, 0
        %v3596 = vsel %vm774, %v3564, 0
        %v3597 = vsel %vm775, %v3565, 0
        %v3598 = vsel %vm776, %v3566, 0
        %v3599 = vsel %vm777, %v3567, 0
        %v3600 = vsel %vm778, %v3568, 0
        %v3601 = vsel %vm779, %v3569, 0
        %s3602 = scalar_lea.vmem %s1, 24
        %v3603 = vld [vmem:[%s3602] sm:$0xf]
        %v3636 = vunpack.c.l.b16 %v3570
        %v3637 = vunpack.c.l.b16 %v3571
        %v3638 = vunpack.c.l.b16 %v3572
        %v3639 = vunpack.c.l.b16 %v3573
        %v3640 = vunpack.c.l.b16 %v3574
        %v3641 = vunpack.c.l.b16 %v3575
        %v3642 = vunpack.c.l.b16 %v3576
        %v3643 = vunpack.c.l.b16 %v3577
        %v3644 = vunpack.c.l.b16 %v3578
        %v3645 = vunpack.c.l.b16 %v3579
        %v3646 = vunpack.c.l.b16 %v3580
        %v3647 = vunpack.c.l.b16 %v3581
        %v3648 = vunpack.c.l.b16 %v3582
        %v3649 = vunpack.c.l.b16 %v3583
        %v3650 = vunpack.c.l.b16 %v3584
        %v3651 = vunpack.c.l.b16 %v3585
        %v3652 = vunpack.c.l.b16 %v3586
        %v3653 = vunpack.c.l.b16 %v3587
        %v3654 = vunpack.c.l.b16 %v3588
        %v3655 = vunpack.c.l.b16 %v3589
        %v3656 = vunpack.c.l.b16 %v3590
        %v3657 = vunpack.c.l.b16 %v3591
        %v3658 = vunpack.c.l.b16 %v3592
        %v3659 = vunpack.c.l.b16 %v3593
        %v3660 = vunpack.c.l.b16 %v3594
        %v3661 = vunpack.c.l.b16 %v3595
        %v3662 = vunpack.c.l.b16 %v3596
        %v3663 = vunpack.c.l.b16 %v3597
        %v3664 = vunpack.c.l.b16 %v3598
        %v3665 = vunpack.c.l.b16 %v3599
        %v3666 = vunpack.c.l.b16 %v3600
        %v3667 = vunpack.c.l.b16 %v3601
        %v3668 = vpack.c.b16 %v3637, %v3636
        %v3669 = vpack.c.b16 %v3639, %v3638
        %v3670 = vpack.c.b16 %v3641, %v3640
        %v3671 = vpack.c.b16 %v3643, %v3642
        %v3672 = vpack.c.b16 %v3645, %v3644
        %v3673 = vpack.c.b16 %v3647, %v3646
        %v3674 = vpack.c.b16 %v3649, %v3648
        %v3675 = vpack.c.b16 %v3651, %v3650
        %v3676 = vpack.c.b16 %v3653, %v3652
        %v3677 = vpack.c.b16 %v3655, %v3654
        %v3678 = vpack.c.b16 %v3657, %v3656
        %v3679 = vpack.c.b16 %v3659, %v3658
        %v3680 = vpack.c.b16 %v3661, %v3660
        %v3681 = vpack.c.b16 %v3663, %v3662
        %v3682 = vpack.c.b16 %v3665, %v3664
        %v3683 = vpack.c.b16 %v3667, %v3666
        %v3685 = vsel %vm1032, %v3668, 0
        %v3688 = vsel %vm1032, %v3669, 0
        %v3691 = vsel %vm1032, %v3670, 0
        %v3694 = vsel %vm1032, %v3671, 0
        %v3697 = vsel %vm1032, %v3672, 0
        %v3700 = vsel %vm1032, %v3673, 0
        %v3703 = vsel %vm1032, %v3674, 0
        %v3706 = vsel %vm1032, %v3675, 0
        %v3709 = vsel %vm1032, %v3676, 0
        %v3712 = vsel %vm1032, %v3677, 0
        %v3715 = vsel %vm1032, %v3678, 0
        %v3718 = vsel %vm1032, %v3679, 0
        %v3721 = vsel %vm1032, %v3680, 0
        %v3724 = vsel %vm1032, %v3681, 0
        %v3727 = vsel %vm1032, %v3682, 0
        %v3730 = vsel %vm1032, %v3683, 0
        %v3733 = vsel %vm1081, %v3603, 0
        %3735 = vmatprep.subr.bf16.mxu0 0
        %3736 = vmatpush1.bf16.msra.mxu0 %v3733
        %3737 = vmatprep.subr.bf16.mxu0 0
        %3738 = vmatpush1.bf16.msra.mxu0 0
        %3739 = vmatprep.subr.bf16.mxu0 0
        %3740 = vmatpush1.bf16.msra.mxu0 0
        %3741 = vmatprep.subr.bf16.mxu0 0
        %3742 = vmatpush1.bf16.msra.mxu0 0
        %3743 = vmatprep.subr.bf16.mxu0 0
        %3744 = vmatpush1.bf16.msra.mxu0 0
        %3745 = vmatprep.subr.bf16.mxu0 0
        %3746 = vmatpush1.bf16.msra.mxu0 0
        %3747 = vmatprep.subr.bf16.mxu0 0
        %3748 = vmatpush1.bf16.msra.mxu0 0
        %3749 = vmatprep.subr.bf16.mxu0 0
        %3750 = vmatpush1.bf16.msra.mxu0 0
        %3751 = vmatprep.subr.bf16.mxu0 0
        %3752 = vmatpush1.bf16.msra.mxu0 0
        %3753 = vmatprep.subr.bf16.mxu0 0
        %3754 = vmatpush1.bf16.msra.mxu0 0
        %3755 = vmatprep.subr.bf16.mxu0 0
        %3756 = vmatpush1.bf16.msra.mxu0 0
        %3757 = vmatprep.subr.bf16.mxu0 0
        %3758 = vmatpush1.bf16.msra.mxu0 0
        %3759 = vmatprep.subr.bf16.mxu0 0
        %3760 = vmatpush1.bf16.msra.mxu0 0
        %3761 = vmatprep.subr.bf16.mxu0 0
        %3762 = vmatpush1.bf16.msra.mxu0 0
        %3763 = vmatprep.subr.bf16.mxu0 0
        %3764 = vmatpush1.bf16.msra.mxu0 0
        %3765 = vmatprep.subr.bf16.mxu0 0
        %3766 = vmatpush1.bf16.msra.mxu0 0
        %3767 = vmatprep.mubr.bf16.mxu0 0
        %3768 = vmatmul.mubr.bf16.gmra.mrb[0].mxu0 %v3685
        %v3769 = vpop.f32.mrb[0].mxu0
        %v3770 = vadd.f32 0.0, %v3769
        %v3771 = vpop.f32.mrb[0].mxu0
        %v3772 = vpop.f32.mrb[0].mxu0
        %v3773 = vadd.f32 0.0, %v3772
        %v3774 = vpop.f32.mrb[0].mxu0
        %3775 = vmatprep.mubr.bf16.mxu0 0
        %3776 = vmatmul.mubr.bf16.gmra.mrb[0].mxu0 %v3688
        %v3777 = vpop.f32.mrb[0].mxu0
        %v3778 = vadd.f32 0.0, %v3777
        %v3779 = vpop.f32.mrb[0].mxu0
        %v3780 = vpop.f32.mrb[0].mxu0
        %v3781 = vadd.f32 0.0, %v3780
        %v3782 = vpop.f32.mrb[0].mxu0
        %3783 = vmatprep.mubr.bf16.mxu0 0
        %3784 = vmatmul.mubr.bf16.gmra.mrb[0].mxu0 %v3691
        %v3785 = vpop.f32.mrb[0].mxu0
        %v3786 = vadd.f32 0.0, %v3785
        %v3787 = vpop.f32.mrb[0].mxu0
        %v3788 = vpop.f32.mrb[0].mxu0
        %v3789 = vadd.f32 0.0, %v3788
        %v3790 = vpop.f32.mrb[0].mxu0
        %3791 = vmatprep.mubr.bf16.mxu0 0
        %3792 = vmatmul.mubr.bf16.gmra.mrb[0].mxu0 %v3694
        %v3793 = vpop.f32.mrb[0].mxu0
        %v3794 = vadd.f32 0.0, %v3793
        %v3795 = vpop.f32.mrb[0].mxu0
        %v3796 = vpop.f32.mrb[0].mxu0
        %v3797 = vadd.f32 0.0, %v3796
        %v3798 = vpop.f32.mrb[0].mxu0
        %3799 = vmatprep.mubr.bf16.mxu0 0
        %3800 = vmatmul.mubr.bf16.gmra.mrb[0].mxu0 %v3697
        %v3801 = vpop.f32.mrb[0].mxu0
        %v3802 = vadd.f32 0.0, %v3801
        %v3803 = vpop.f32.mrb[0].mxu0
        %v3804 = vpop.f32.mrb[0].mxu0
        %v3805 = vadd.f32 0.0, %v3804
        %v3806 = vpop.f32.mrb[0].mxu0
        %3807 = vmatprep.mubr.bf16.mxu0 0
        %3808 = vmatmul.mubr.bf16.gmra.mrb[0].mxu0 %v3700
        %v3809 = vpop.f32.mrb[0].mxu0
        %v3810 = vadd.f32 0.0, %v3809
        %v3811 = vpop.f32.mrb[0].mxu0
        %v3812 = vpop.f32.mrb[0].mxu0
        %v3813 = vadd.f32 0.0, %v3812
        %v3814 = vpop.f32.mrb[0].mxu0
        %3815 = vmatprep.mubr.bf16.mxu0 0
        %3816 = vmatmul.mubr.bf16.gmra.mrb[0].mxu0 %v3703
        %v3817 = vpop.f32.mrb[0].mxu0
        %v3818 = vadd.f32 0.0, %v3817
        %v3819 = vpop.f32.mrb[0].mxu0
        %v3820 = vpop.f32.mrb[0].mxu0
        %v3821 = vadd.f32 0.0, %v3820
        %v3822 = vpop.f32.mrb[0].mxu0
        %3823 = vmatprep.mubr.bf16.mxu0 0
        %3824 = vmatmul.mubr.bf16.gmra.mrb[0].mxu0 %v3706
        %v3825 = vpop.f32.mrb[0].mxu0
        %v3826 = vadd.f32 0.0, %v3825
        %v3827 = vpop.f32.mrb[0].mxu0
        %v3828 = vpop.f32.mrb[0].mxu0
        %v3829 = vadd.f32 0.0, %v3828
        %v3830 = vpop.f32.mrb[0].mxu0
        %3831 = vmatprep.mubr.bf16.mxu0 0
        %3832 = vmatmul.mubr.bf16.gmra.mrb[0].mxu0 %v3709
        %v3833 = vpop.f32.mrb[0].mxu0
        %v3834 = vadd.f32 0.0, %v3833
        %v3835 = vpop.f32.mrb[0].mxu0
        %v3836 = vpop.f32.mrb[0].mxu0
        %v3837 = vadd.f32 0.0, %v3836
        %v3838 = vpop.f32.mrb[0].mxu0
        %3839 = vmatprep.mubr.bf16.mxu0 0
        %3840 = vmatmul.mubr.bf16.gmra.mrb[0].mxu0 %v3712
        %v3841 = vpop.f32.mrb[0].mxu0
        %v3842 = vadd.f32 0.0, %v3841
        %v3843 = vpop.f32.mrb[0].mxu0
        %v3844 = vpop.f32.mrb[0].mxu0
        %v3845 = vadd.f32 0.0, %v3844
        %v3846 = vpop.f32.mrb[0].mxu0
        %3847 = vmatprep.mubr.bf16.mxu0 0
        %3848 = vmatmul.mubr.bf16.gmra.mrb[0].mxu0 %v3715
        %v3849 = vpop.f32.mrb[0].mxu0
        %v3850 = vadd.f32 0.0, %v3849
        %v3851 = vpop.f32.mrb[0].mxu0
        %v3852 = vpop.f32.mrb[0].mxu0
        %v3853 = vadd.f32 0.0, %v3852
        %v3854 = vpop.f32.mrb[0].mxu0
        %3855 = vmatprep.mubr.bf16.mxu0 0
        %3856 = vmatmul.mubr.bf16.gmra.mrb[0].mxu0 %v3718
        %v3857 = vpop.f32.mrb[0].mxu0
        %v3858 = vadd.f32 0.0, %v3857
        %v3859 = vpop.f32.mrb[0].mxu0
        %v3860 = vpop.f32.mrb[0].mxu0
        %v3861 = vadd.f32 0.0, %v3860
        %v3862 = vpop.f32.mrb[0].mxu0
        %3863 = vmatprep.mubr.bf16.mxu0 0
        %3864 = vmatmul.mubr.bf16.gmra.mrb[0].mxu0 %v3721
        %v3865 = vpop.f32.mrb[0].mxu0
        %v3866 = vadd.f32 0.0, %v3865
        %v3867 = vpop.f32.mrb[0].mxu0
        %v3868 = vpop.f32.mrb[0].mxu0
        %v3869 = vadd.f32 0.0, %v3868
        %v3870 = vpop.f32.mrb[0].mxu0
        %3871 = vmatprep.mubr.bf16.mxu0 0
        %3872 = vmatmul.mubr.bf16.gmra.mrb[0].mxu0 %v3724
        %v3873 = vpop.f32.mrb[0].mxu0
        %v3874 = vadd.f32 0.0, %v3873
        %v3875 = vpop.f32.mrb[0].mxu0
        %v3876 = vpop.f32.mrb[0].mxu0
        %v3877 = vadd.f32 0.0, %v3876
        %v3878 = vpop.f32.mrb[0].mxu0
        %3879 = vmatprep.mubr.bf16.mxu0 0
        %3880 = vmatmul.mubr.bf16.gmra.mrb[0].mxu0 %v3727
        %v3881 = vpop.f32.mrb[0].mxu0
        %v3882 = vadd.f32 0.0, %v3881
        %v3883 = vpop.f32.mrb[0].mxu0
        %v3884 = vpop.f32.mrb[0].mxu0
        %v3885 = vadd.f32 0.0, %v3884
        %v3886 = vpop.f32.mrb[0].mxu0
        %3887 = vmatprep.mubr.bf16.mxu0 0
        %3888 = vmatmul.mubr.bf16.gmra.mrb[0].mxu0 %v3730
        %v3889 = vpop.f32.mrb[0].mxu0
        %v3890 = vadd.f32 0.0, %v3889
        %v3891 = vpop.f32.mrb[0].mxu0
        %v3892 = vpop.f32.mrb[0].mxu0
        %v3893 = vadd.f32 0.0, %v3892
        %v3894 = vpop.f32.mrb[0].mxu0
        %3895 = vdwg.mxu0
        %v3896 = vadd.f32 %v3506, %v3770
        %v3897 = vadd.f32 %v3507, %v3773
        %v3898 = vadd.f32 %v3508, %v3778
        %v3899 = vadd.f32 %v3509, %v3781
        %v3900 = vadd.f32 %v3510, %v3786
        %v3901 = vadd.f32 %v3511, %v3789
        %v3902 = vadd.f32 %v3512, %v3794
        %v3903 = vadd.f32 %v3513, %v3797
        %v3904 = vadd.f32 %v3514, %v3802
        %v3905 = vadd.f32 %v3515, %v3805
        %v3906 = vadd.f32 %v3516, %v3810
        %v3907 = vadd.f32 %v3517, %v3813
        %v3908 = vadd.f32 %v3518, %v3818
        %v3909 = vadd.f32 %v3519, %v3821
        %v3910 = vadd.f32 %v3520, %v3826
        %v3911 = vadd.f32 %v3521, %v3829
        %v3912 = vadd.f32 %v3522, %v3834
        %v3913 = vadd.f32 %v3523, %v3837
        %v3914 = vadd.f32 %v3524, %v3842
        %v3915 = vadd.f32 %v3525, %v3845
        %v3916 = vadd.f32 %v3526, %v3850
        %v3917 = vadd.f32 %v3527, %v3853
        %v3918 = vadd.f32 %v3528, %v3858
        %v3919 = vadd.f32 %v3529, %v3861
        %v3920 = vadd.f32 %v3530, %v3866
        %v3921 = vadd.f32 %v3531, %v3869
        %v3922 = vadd.f32 %v3532, %v3874
        %v3923 = vadd.f32 %v3533, %v3877
        %v3924 = vadd.f32 %v3534, %v3882
        %v3925 = vadd.f32 %v3535, %v3885
        %v3926 = vadd.f32 %v3536, %v3890
        %v3927 = vadd.f32 %v3537, %v3893
        %v3928 = vld [vmem:[%s167 + $0x10] sm:$0xf]
        %v3929 = vld [vmem:[%s167 + $0x14] sm:$0xf]
        %v3930 = vld [vmem:[%s167 + $0x18] sm:$0xf]
        %v3931 = vld [vmem:[%s167 + $0x1c] sm:$0xf]
        %v3932 = vld [vmem:[%s167 + $0x20] sm:$0xf]
        %v3933 = vld [vmem:[%s167 + $0x24] sm:$0xf]
        %v3934 = vld [vmem:[%s167 + $0x28] sm:$0xf]
        %v3935 = vld [vmem:[%s167 + $0x2c] sm:$0xf]
        %v3936 = vld [vmem:[%s167 + $0x30] sm:$0xf]
        %v3937 = vld [vmem:[%s167 + $0x34] sm:$0xf]
        %v3938 = vld [vmem:[%s167 + $0x38] sm:$0xf]
        %v3939 = vld [vmem:[%s167 + $0x3c] sm:$0xf]
        %v3940 = vld [vmem:[%s167 + $0x40] sm:$0xf]
        %v3941 = vld [vmem:[%s167 + $0x44] sm:$0xf]
        %v3942 = vld [vmem:[%s167 + $0x48] sm:$0xf]
        %v3943 = vld [vmem:[%s167 + $0x4c] sm:$0xf]
        %v3944 = vld [vmem:[%s167 + $0x50] sm:$0xf]
        %v3945 = vld [vmem:[%s167 + $0x54] sm:$0xf]
        %v3946 = vld [vmem:[%s167 + $0x58] sm:$0xf]
        %v3947 = vld [vmem:[%s167 + $0x5c] sm:$0xf]
        %v3948 = vld [vmem:[%s167 + $0x60] sm:$0xf]
        %v3949 = vld [vmem:[%s167 + $0x64] sm:$0xf]
        %v3950 = vld [vmem:[%s167 + $0x68] sm:$0xf]
        %v3951 = vld [vmem:[%s167 + $0x6c] sm:$0xf]
        %v3952 = vld [vmem:[%s167 + $0x70] sm:$0xf]
        %v3953 = vld [vmem:[%s167 + $0x74] sm:$0xf]
        %v3954 = vld [vmem:[%s167 + $0x78] sm:$0xf]
        %v3955 = vld [vmem:[%s167 + $0x7c] sm:$0xf]
        %v3956 = vld [vmem:[%s167 + $0x80] sm:$0xf]
        %v3957 = vld [vmem:[%s167 + $0x84] sm:$0xf]
        %v3958 = vld [vmem:[%s167 + $0x88] sm:$0xf]
        %v3959 = vld [vmem:[%s167 + $0x8c] sm:$0xf]
        %v3960 = vld [vmem:[%s167 + $0x90] sm:$0x1]
        %s3961 = scalar_lea.vmem %s1, 28
        %v3962 = vld [vmem:[%s3961] sm:$0xf]
        %v3996 = vunpack.c.l.b16 %v3928
        %v3997 = vunpack.c.l.b16 %v3929
        %v3998 = vunpack.c.l.b16 %v3930
        %v3999 = vunpack.c.l.b16 %v3931
        %v4000 = vunpack.c.l.b16 %v3932
        %v4001 = vunpack.c.l.b16 %v3933
        %v4002 = vunpack.c.l.b16 %v3934
        %v4003 = vunpack.c.l.b16 %v3935
        %v4004 = vunpack.c.l.b16 %v3936
        %v4005 = vunpack.c.l.b16 %v3937
        %v4006 = vunpack.c.l.b16 %v3938
        %v4007 = vunpack.c.l.b16 %v3939
        %v4008 = vunpack.c.l.b16 %v3940
        %v4009 = vunpack.c.l.b16 %v3941
        %v4010 = vunpack.c.l.b16 %v3942
        %v4011 = vunpack.c.l.b16 %v3943
        %v4012 = vunpack.c.l.b16 %v3944
        %v4013 = vunpack.c.l.b16 %v3945
        %v4014 = vunpack.c.l.b16 %v3946
        %v4015 = vunpack.c.l.b16 %v3947
        %v4016 = vunpack.c.l.b16 %v3948
        %v4017 = vunpack.c.l.b16 %v3949
        %v4018 = vunpack.c.l.b16 %v3950
        %v4019 = vunpack.c.l.b16 %v3951
        %v4020 = vunpack.c.l.b16 %v3952
        %v4021 = vunpack.c.l.b16 %v3953
        %v4022 = vunpack.c.l.b16 %v3954
        %v4023 = vunpack.c.l.b16 %v3955
        %v4024 = vunpack.c.l.b16 %v3956
        %v4025 = vunpack.c.l.b16 %v3957
        %v4026 = vunpack.c.l.b16 %v3958
        %v4027 = vunpack.c.l.b16 %v3959
        %v4028 = vunpack.c.l.b16 %v3960
        %v4029 = vpack.c.b16 %v3997, %v3996
        %v4030 = vpack.c.b16 %v3999, %v3998
        %v4031 = vpack.c.b16 %v4001, %v4000
        %v4032 = vpack.c.b16 %v4003, %v4002
        %v4033 = vpack.c.b16 %v4005, %v4004
        %v4034 = vpack.c.b16 %v4007, %v4006
        %v4035 = vpack.c.b16 %v4009, %v4008
        %v4036 = vpack.c.b16 %v4011, %v4010
        %v4037 = vpack.c.b16 %v4013, %v4012
        %v4038 = vpack.c.b16 %v4015, %v4014
        %v4039 = vpack.c.b16 %v4017, %v4016
        %v4040 = vpack.c.b16 %v4019, %v4018
        %v4041 = vpack.c.b16 %v4021, %v4020
        %v4042 = vpack.c.b16 %v4023, %v4022
        %v4043 = vpack.c.b16 %v4025, %v4024
        %v4044 = vpack.c.b16 %v4027, %v4026
        %v4045 = vpack.c.b16 %v4028, %v4028
        %v4047 = vshrl.u32 %v4029, 16
        %v4049 = vshll.u32 %v4029, 16
        %v4051 = vrot.slane %v4049, 1
        %v4052 = vor.u32 %v4047, %v4051
        %v4054 = vshll.u32 %v4030, 16
        %v4056 = vrot.slane %v4054, 1
        %v4057 = vsel %vm899, %v4052, %v4056
        %v4058 = vshrl.u32 %v4030, 16
        %v4060 = vor.u32 %v4058, %v4056
        %v4062 = vshll.u32 %v4031, 16
        %v4064 = vrot.slane %v4062, 1
        %v4065 = vsel %vm899, %v4060, %v4064
        %v4066 = vshrl.u32 %v4031, 16
        %v4068 = vor.u32 %v4066, %v4064
        %v4070 = vshll.u32 %v4032, 16
        %v4072 = vrot.slane %v4070, 1
        %v4073 = vsel %vm899, %v4068, %v4072
        %v4074 = vshrl.u32 %v4032, 16
        %v4076 = vor.u32 %v4074, %v4072
        %v4078 = vshll.u32 %v4033, 16
        %v4080 = vrot.slane %v4078, 1
        %v4081 = vsel %vm899, %v4076, %v4080
        %v4082 = vshrl.u32 %v4033, 16
        %v4084 = vor.u32 %v4082, %v4080
        %v4086 = vshll.u32 %v4034, 16
        %v4088 = vrot.slane %v4086, 1
        %v4089 = vsel %vm899, %v4084, %v4088
        %v4090 = vshrl.u32 %v4034, 16
        %v4092 = vor.u32 %v4090, %v4088
        %v4094 = vshll.u32 %v4035, 16
        %v4096 = vrot.slane %v4094, 1
        %v4097 = vsel %vm899, %v4092, %v4096
        %v4098 = vshrl.u32 %v4035, 16
        %v4100 = vor.u32 %v4098, %v4096
        %v4102 = vshll.u32 %v4036, 16
        %v4104 = vrot.slane %v4102, 1
        %v4105 = vsel %vm899, %v4100, %v4104
        %v4106 = vshrl.u32 %v4036, 16
        %v4108 = vor.u32 %v4106, %v4104
        %v4110 = vshll.u32 %v4037, 16
        %v4112 = vrot.slane %v4110, 1
        %v4113 = vsel %vm899, %v4108, %v4112
        %v4114 = vshrl.u32 %v4037, 16
        %v4116 = vor.u32 %v4114, %v4112
        %v4118 = vshll.u32 %v4038, 16
        %v4120 = vrot.slane %v4118, 1
        %v4121 = vsel %vm899, %v4116, %v4120
        %v4122 = vshrl.u32 %v4038, 16
        %v4124 = vor.u32 %v4122, %v4120
        %v4126 = vshll.u32 %v4039, 16
        %v4128 = vrot.slane %v4126, 1
        %v4129 = vsel %vm899, %v4124, %v4128
        %v4130 = vshrl.u32 %v4039, 16
        %v4132 = vor.u32 %v4130, %v4128
        %v4134 = vshll.u32 %v4040, 16
        %v4136 = vrot.slane %v4134, 1
        %v4137 = vsel %vm899, %v4132, %v4136
        %v4138 = vshrl.u32 %v4040, 16
        %v4140 = vor.u32 %v4138, %v4136
        %v4142 = vshll.u32 %v4041, 16
        %v4144 = vrot.slane %v4142, 1
        %v4145 = vsel %vm899, %v4140, %v4144
        %v4146 = vshrl.u32 %v4041, 16
        %v4148 = vor.u32 %v4146, %v4144
        %v4150 = vshll.u32 %v4042, 16
        %v4152 = vrot.slane %v4150, 1
        %v4153 = vsel %vm899, %v4148, %v4152
        %v4154 = vshrl.u32 %v4042, 16
        %v4156 = vor.u32 %v4154, %v4152
        %v4158 = vshll.u32 %v4043, 16
        %v4160 = vrot.slane %v4158, 1
        %v4161 = vsel %vm899, %v4156, %v4160
        %v4162 = vshrl.u32 %v4043, 16
        %v4164 = vor.u32 %v4162, %v4160
        %v4166 = vshll.u32 %v4044, 16
        %v4168 = vrot.slane %v4166, 1
        %v4169 = vsel %vm899, %v4164, %v4168
        %v4170 = vshrl.u32 %v4044, 16
        %v4172 = vor.u32 %v4170, %v4168
        %v4174 = vshll.u32 %v4045, 16
        %v4176 = vrot.slane %v4174, 1
        %v4177 = vsel %vm899, %v4172, %v4176
        %v4179 = vsel %vm1032, %v4057, 0
        %v4182 = vsel %vm1032, %v4065, 0
        %v4185 = vsel %vm1032, %v4073, 0
        %v4188 = vsel %vm1032, %v4081, 0
        %v4191 = vsel %vm1032, %v4089, 0
        %v4194 = vsel %vm1032, %v4097, 0
        %v4197 = vsel %vm1032, %v4105, 0
        %v4200 = vsel %vm1032, %v4113, 0
        %v4203 = vsel %vm1032, %v4121, 0
        %v4206 = vsel %vm1032, %v4129, 0
        %v4209 = vsel %vm1032, %v4137, 0
        %v4212 = vsel %vm1032, %v4145, 0
        %v4215 = vsel %vm1032, %v4153, 0
        %v4218 = vsel %vm1032, %v4161, 0
        %v4221 = vsel %vm1032, %v4169, 0
        %v4224 = vsel %vm1032, %v4177, 0
        %v4227 = vsel %vm1081, %v3962, 0
        %4229 = vmatprep.subr.bf16.mxu0 0
        %4230 = vmatpush1.bf16.msra.mxu0 %v4227
        %4231 = vmatprep.subr.bf16.mxu0 0
        %4232 = vmatpush1.bf16.msra.mxu0 0
        %4233 = vmatprep.subr.bf16.mxu0 0
        %4234 = vmatpush1.bf16.msra.mxu0 0
        %4235 = vmatprep.subr.bf16.mxu0 0
        %4236 = vmatpush1.bf16.msra.mxu0 0
        %4237 = vmatprep.subr.bf16.mxu0 0
        %4238 = vmatpush1.bf16.msra.mxu0 0
        %4239 = vmatprep.subr.bf16.mxu0 0
        %4240 = vmatpush1.bf16.msra.mxu0 0
        %4241 = vmatprep.subr.bf16.mxu0 0
        %4242 = vmatpush1.bf16.msra.mxu0 0
        %4243 = vmatprep.subr.bf16.mxu0 0
        %4244 = vmatpush1.bf16.msra.mxu0 0
        %4245 = vmatprep.subr.bf16.mxu0 0
        %4246 = vmatpush1.bf16.msra.mxu0 0
        %4247 = vmatprep.subr.bf16.mxu0 0
        %4248 = vmatpush1.bf16.msra.mxu0 0
        %4249 = vmatprep.subr.bf16.mxu0 0
        %4250 = vmatpush1.bf16.msra.mxu0 0
        %4251 = vmatprep.subr.bf16.mxu0 0
        %4252 = vmatpush1.bf16.msra.mxu0 0
        %4253 = vmatprep.subr.bf16.mxu0 0
        %4254 = vmatpush1.bf16.msra.mxu0 0
        %4255 = vmatprep.subr.bf16.mxu0 0
        %4256 = vmatpush1.bf16.msra.mxu0 0
        %4257 = vmatprep.subr.bf16.mxu0 0
        %4258 = vmatpush1.bf16.msra.mxu0 0
        %4259 = vmatprep.subr.bf16.mxu0 0
        %4260 = vmatpush1.bf16.msra.mxu0 0
        %4261 = vmatprep.mubr.bf16.mxu0 0
        %4262 = vmatmul.mubr.bf16.gmra.mrb[0].mxu0 %v4179
        %v4263 = vpop.f32.mrb[0].mxu0
        %v4264 = vadd.f32 0.0, %v4263
        %v4265 = vpop.f32.mrb[0].mxu0
        %v4266 = vpop.f32.mrb[0].mxu0
        %v4267 = vadd.f32 0.0, %v4266
        %v4268 = vpop.f32.mrb[0].mxu0
        %4269 = vmatprep.mubr.bf16.mxu0 0
        %4270 = vmatmul.mubr.bf16.gmra.mrb[0].mxu0 %v4182
        %v4271 = vpop.f32.mrb[0].mxu0
        %v4272 = vadd.f32 0.0, %v4271
        %v4273 = vpop.f32.mrb[0].mxu0
        %v4274 = vpop.f32.mrb[0].mxu0
        %v4275 = vadd.f32 0.0, %v4274
        %v4276 = vpop.f32.mrb[0].mxu0
        %4277 = vmatprep.mubr.bf16.mxu0 0
        %4278 = vmatmul.mubr.bf16.gmra.mrb[0].mxu0 %v4185
        %v4279 = vpop.f32.mrb[0].mxu0
        %v4280 = vadd.f32 0.0, %v4279
        %v4281 = vpop.f32.mrb[0].mxu0
        %v4282 = vpop.f32.mrb[0].mxu0
        %v4283 = vadd.f32 0.0, %v4282
        %v4284 = vpop.f32.mrb[0].mxu0
        %4285 = vmatprep.mubr.bf16.mxu0 0
        %4286 = vmatmul.mubr.bf16.gmra.mrb[0].mxu0 %v4188
        %v4287 = vpop.f32.mrb[0].mxu0
        %v4288 = vadd.f32 0.0, %v4287
        %v4289 = vpop.f32.mrb[0].mxu0
        %v4290 = vpop.f32.mrb[0].mxu0
        %v4291 = vadd.f32 0.0, %v4290
        %v4292 = vpop.f32.mrb[0].mxu0
        %4293 = vmatprep.mubr.bf16.mxu0 0
        %4294 = vmatmul.mubr.bf16.gmra.mrb[0].mxu0 %v4191
        %v4295 = vpop.f32.mrb[0].mxu0
        %v4296 = vadd.f32 0.0, %v4295
        %v4297 = vpop.f32.mrb[0].mxu0
        %v4298 = vpop.f32.mrb[0].mxu0
        %v4299 = vadd.f32 0.0, %v4298
        %v4300 = vpop.f32.mrb[0].mxu0
        %4301 = vmatprep.mubr.bf16.mxu0 0
        %4302 = vmatmul.mubr.bf16.gmra.mrb[0].mxu0 %v4194
        %v4303 = vpop.f32.mrb[0].mxu0
        %v4304 = vadd.f32 0.0, %v4303
        %v4305 = vpop.f32.mrb[0].mxu0
        %v4306 = vpop.f32.mrb[0].mxu0
        %v4307 = vadd.f32 0.0, %v4306
        %v4308 = vpop.f32.mrb[0].mxu0
        %4309 = vmatprep.mubr.bf16.mxu0 0
        %4310 = vmatmul.mubr.bf16.gmra.mrb[0].mxu0 %v4197
        %v4311 = vpop.f32.mrb[0].mxu0
        %v4312 = vadd.f32 0.0, %v4311
        %v4313 = vpop.f32.mrb[0].mxu0
        %v4314 = vpop.f32.mrb[0].mxu0
        %v4315 = vadd.f32 0.0, %v4314
        %v4316 = vpop.f32.mrb[0].mxu0
        %4317 = vmatprep.mubr.bf16.mxu0 0
        %4318 = vmatmul.mubr.bf16.gmra.mrb[0].mxu0 %v4200
        %v4319 = vpop.f32.mrb[0].mxu0
        %v4320 = vadd.f32 0.0, %v4319
        %v4321 = vpop.f32.mrb[0].mxu0
        %v4322 = vpop.f32.mrb[0].mxu0
        %v4323 = vadd.f32 0.0, %v4322
        %v4324 = vpop.f32.mrb[0].mxu0
        %4325 = vmatprep.mubr.bf16.mxu0 0
        %4326 = vmatmul.mubr.bf16.gmra.mrb[0].mxu0 %v4203
        %v4327 = vpop.f32.mrb[0].mxu0
        %v4328 = vadd.f32 0.0, %v4327
        %v4329 = vpop.f32.mrb[0].mxu0
        %v4330 = vpop.f32.mrb[0].mxu0
        %v4331 = vadd.f32 0.0, %v4330
        %v4332 = vpop.f32.mrb[0].mxu0
        %4333 = vmatprep.mubr.bf16.mxu0 0
        %4334 = vmatmul.mubr.bf16.gmra.mrb[0].mxu0 %v4206
        %v4335 = vpop.f32.mrb[0].mxu0
        %v4336 = vadd.f32 0.0, %v4335
        %v4337 = vpop.f32.mrb[0].mxu0
        %v4338 = vpop.f32.mrb[0].mxu0
        %v4339 = vadd.f32 0.0, %v4338
        %v4340 = vpop.f32.mrb[0].mxu0
        %4341 = vmatprep.mubr.bf16.mxu0 0
        %4342 = vmatmul.mubr.bf16.gmra.mrb[0].mxu0 %v4209
        %v4343 = vpop.f32.mrb[0].mxu0
        %v4344 = vadd.f32 0.0, %v4343
        %v4345 = vpop.f32.mrb[0].mxu0
        %v4346 = vpop.f32.mrb[0].mxu0
        %v4347 = vadd.f32 0.0, %v4346
        %v4348 = vpop.f32.mrb[0].mxu0
        %4349 = vmatprep.mubr.bf16.mxu0 0
        %4350 = vmatmul.mubr.bf16.gmra.mrb[0].mxu0 %v4212
        %v4351 = vpop.f32.mrb[0].mxu0
        %v4352 = vadd.f32 0.0, %v4351
        %v4353 = vpop.f32.mrb[0].mxu0
        %v4354 = vpop.f32.mrb[0].mxu0
        %v4355 = vadd.f32 0.0, %v4354
        %v4356 = vpop.f32.mrb[0].mxu0
        %4357 = vmatprep.mubr.bf16.mxu0 0
        %4358 = vmatmul.mubr.bf16.gmra.mrb[0].mxu0 %v4215
        %v4359 = vpop.f32.mrb[0].mxu0
        %v4360 = vadd.f32 0.0, %v4359
        %v4361 = vpop.f32.mrb[0].mxu0
        %v4362 = vpop.f32.mrb[0].mxu0
        %v4363 = vadd.f32 0.0, %v4362
        %v4364 = vpop.f32.mrb[0].mxu0
        %4365 = vmatprep.mubr.bf16.mxu0 0
        %4366 = vmatmul.mubr.bf16.gmra.mrb[0].mxu0 %v4218
        %v4367 = vpop.f32.mrb[0].mxu0
        %v4368 = vadd.f32 0.0, %v4367
        %v4369 = vpop.f32.mrb[0].mxu0
        %v4370 = vpop.f32.mrb[0].mxu0
        %v4371 = vadd.f32 0.0, %v4370
        %v4372 = vpop.f32.mrb[0].mxu0
        %4373 = vmatprep.mubr.bf16.mxu0 0
        %4374 = vmatmul.mubr.bf16.gmra.mrb[0].mxu0 %v4221
        %v4375 = vpop.f32.mrb[0].mxu0
        %v4376 = vadd.f32 0.0, %v4375
        %v4377 = vpop.f32.mrb[0].mxu0
        %v4378 = vpop.f32.mrb[0].mxu0
        %v4379 = vadd.f32 0.0, %v4378
        %v4380 = vpop.f32.mrb[0].mxu0
        %4381 = vmatprep.mubr.bf16.mxu0 0
        %4382 = vmatmul.mubr.bf16.gmra.mrb[0].mxu0 %v4224
        %v4383 = vpop.f32.mrb[0].mxu0
        %v4384 = vadd.f32 0.0, %v4383
        %v4385 = vpop.f32.mrb[0].mxu0
        %v4386 = vpop.f32.mrb[0].mxu0
        %v4387 = vadd.f32 0.0, %v4386
        %v4388 = vpop.f32.mrb[0].mxu0
        %4389 = vdwg.mxu0
        %v4390 = vadd.f32 %v3896, %v4264
        %v4391 = vadd.f32 %v3897, %v4267
        %v4392 = vadd.f32 %v3898, %v4272
        %v4393 = vadd.f32 %v3899, %v4275
        %v4394 = vadd.f32 %v3900, %v4280
        %v4395 = vadd.f32 %v3901, %v4283
        %v4396 = vadd.f32 %v3902, %v4288
        %v4397 = vadd.f32 %v3903, %v4291
        %v4398 = vadd.f32 %v3904, %v4296
        %v4399 = vadd.f32 %v3905, %v4299
        %v4400 = vadd.f32 %v3906, %v4304
        %v4401 = vadd.f32 %v3907, %v4307
        %v4402 = vadd.f32 %v3908, %v4312
        %v4403 = vadd.f32 %v3909, %v4315
        %v4404 = vadd.f32 %v3910, %v4320
        %v4405 = vadd.f32 %v3911, %v4323
        %v4406 = vadd.f32 %v3912, %v4328
        %v4407 = vadd.f32 %v3913, %v4331
        %v4408 = vadd.f32 %v3914, %v4336
        %v4409 = vadd.f32 %v3915, %v4339
        %v4410 = vadd.f32 %v3916, %v4344
        %v4411 = vadd.f32 %v3917, %v4347
        %v4412 = vadd.f32 %v3918, %v4352
        %v4413 = vadd.f32 %v3919, %v4355
        %v4414 = vadd.f32 %v3920, %v4360
        %v4415 = vadd.f32 %v3921, %v4363
        %v4416 = vadd.f32 %v3922, %v4368
        %v4417 = vadd.f32 %v3923, %v4371
        %v4418 = vadd.f32 %v3924, %v4376
        %v4419 = vadd.f32 %v3925, %v4379
        %v4420 = vadd.f32 %v3926, %v4384
        %v4421 = vadd.f32 %v3927, %v4387
        %v4422 = vld [vmem:[%s167 + $0x10] sm:$0xe]
        %v4423 = vsel %vm1829, %v4422, 0
        %v4424 = vsel %vm1830, %v3929, 0
        %v4425 = vsel %vm1831, %v3930, 0
        %v4426 = vsel %vm1832, %v3931, 0
        %v4427 = vsel %vm1833, %v3932, 0
        %v4428 = vsel %vm1834, %v3933, 0
        %v4429 = vsel %vm1835, %v3934, 0
        %v4430 = vsel %vm1836, %v3935, 0
        %v4431 = vsel %vm1837, %v3936, 0
        %v4432 = vsel %vm1838, %v3937, 0
        %v4433 = vsel %vm1839, %v3938, 0
        %v4434 = vsel %vm1840, %v3939, 0
        %v4435 = vsel %vm1841, %v3940, 0
        %v4436 = vsel %vm1842, %v3941, 0
        %v4437 = vsel %vm1843, %v3942, 0
        %v4438 = vsel %vm1844, %v3943, 0
        %v4439 = vsel %vm1845, %v3944, 0
        %v4440 = vsel %vm1846, %v3945, 0
        %v4441 = vsel %vm1847, %v3946, 0
        %v4442 = vsel %vm1848, %v3947, 0
        %v4443 = vsel %vm1849, %v3948, 0
        %v4444 = vsel %vm1850, %v3949, 0
        %v4445 = vsel %vm1851, %v3950, 0
        %v4446 = vsel %vm1852, %v3951, 0
        %v4447 = vsel %vm1853, %v3952, 0
        %v4448 = vsel %vm1854, %v3953, 0
        %v4449 = vsel %vm1855, %v3954, 0
        %v4450 = vsel %vm1856, %v3955, 0
        %v4451 = vsel %vm1857, %v3956, 0
        %v4452 = vsel %vm1858, %v3957, 0
        %v4453 = vsel %vm1859, %v3958, 0
        %v4454 = vsel %vm1860, %v3959, 0
        %v4455 = vsel %vm1861, %v3960, 0
        %s4456 = scalar_lea.vmem %s1, 32
        %v4457 = vld [vmem:[%s4456] sm:$0xf]
        %v4491 = vunpack.c.l.b16 %v4423
        %v4492 = vunpack.c.l.b16 %v4424
        %v4493 = vunpack.c.l.b16 %v4425
        %v4494 = vunpack.c.l.b16 %v4426
        %v4495 = vunpack.c.l.b16 %v4427
        %v4496 = vunpack.c.l.b16 %v4428
        %v4497 = vunpack.c.l.b16 %v4429
        %v4498 = vunpack.c.l.b16 %v4430
        %v4499 = vunpack.c.l.b16 %v4431
        %v4500 = vunpack.c.l.b16 %v4432
        %v4501 = vunpack.c.l.b16 %v4433
        %v4502 = vunpack.c.l.b16 %v4434
        %v4503 = vunpack.c.l.b16 %v4435
        %v4504 = vunpack.c.l.b16 %v4436
        %v4505 = vunpack.c.l.b16 %v4437
        %v4506 = vunpack.c.l.b16 %v4438
        %v4507 = vunpack.c.l.b16 %v4439
        %v4508 = vunpack.c.l.b16 %v4440
        %v4509 = vunpack.c.l.b16 %v4441
        %v4510 = vunpack.c.l.b16 %v4442
        %v4511 = vunpack.c.l.b16 %v4443
        %v4512 = vunpack.c.l.b16 %v4444
        %v4513 = vunpack.c.l.b16 %v4445
        %v4514 = vunpack.c.l.b16 %v4446
        %v4515 = vunpack.c.l.b16 %v4447
        %v4516 = vunpack.c.l.b16 %v4448
        %v4517 = vunpack.c.l.b16 %v4449
        %v4518 = vunpack.c.l.b16 %v4450
        %v4519 = vunpack.c.l.b16 %v4451
        %v4520 = vunpack.c.l.b16 %v4452
        %v4521 = vunpack.c.l.b16 %v4453
        %v4522 = vunpack.c.l.b16 %v4454
        %v4523 = vunpack.c.l.b16 %v4455
        %v4524 = vpack.c.b16 %v4492, %v4491
        %v4525 = vpack.c.b16 %v4494, %v4493
        %v4526 = vpack.c.b16 %v4496, %v4495
        %v4527 = vpack.c.b16 %v4498, %v4497
        %v4528 = vpack.c.b16 %v4500, %v4499
        %v4529 = vpack.c.b16 %v4502, %v4501
        %v4530 = vpack.c.b16 %v4504, %v4503
        %v4531 = vpack.c.b16 %v4506, %v4505
        %v4532 = vpack.c.b16 %v4508, %v4507
        %v4533 = vpack.c.b16 %v4510, %v4509
        %v4534 = vpack.c.b16 %v4512, %v4511
        %v4535 = vpack.c.b16 %v4514, %v4513
        %v4536 = vpack.c.b16 %v4516, %v4515
        %v4537 = vpack.c.b16 %v4518, %v4517
        %v4538 = vpack.c.b16 %v4520, %v4519
        %v4539 = vpack.c.b16 %v4522, %v4521
        %v4540 = vpack.c.b16 %v4523, %v4523
        %v4541 = vrot.slane %v4524, 1
        %v4542 = vrot.slane %v4525, 1
        %v4543 = vsel %vm1980, %v4541, %v4542
        %v4544 = vrot.slane %v4526, 1
        %v4545 = vsel %vm1980, %v4542, %v4544
        %v4546 = vrot.slane %v4527, 1
        %v4547 = vsel %vm1980, %v4544, %v4546
        %v4548 = vrot.slane %v4528, 1
        %v4549 = vsel %vm1980, %v4546, %v4548
        %v4550 = vrot.slane %v4529, 1
        %v4551 = vsel %vm1980, %v4548, %v4550
        %v4552 = vrot.slane %v4530, 1
        %v4553 = vsel %vm1980, %v4550, %v4552
        %v4554 = vrot.slane %v4531, 1
        %v4555 = vsel %vm1980, %v4552, %v4554
        %v4556 = vrot.slane %v4532, 1
        %v4557 = vsel %vm1980, %v4554, %v4556
        %v4558 = vrot.slane %v4533, 1
        %v4559 = vsel %vm1980, %v4556, %v4558
        %v4560 = vrot.slane %v4534, 1
        %v4561 = vsel %vm1980, %v4558, %v4560
        %v4562 = vrot.slane %v4535, 1
        %v4563 = vsel %vm1980, %v4560, %v4562
        %v4564 = vrot.slane %v4536, 1
        %v4565 = vsel %vm1980, %v4562, %v4564
        %v4566 = vrot.slane %v4537, 1
        %v4567 = vsel %vm1980, %v4564, %v4566
        %v4568 = vrot.slane %v4538, 1
        %v4569 = vsel %vm1980, %v4566, %v4568
        %v4570 = vrot.slane %v4539, 1
        %v4571 = vsel %vm1980, %v4568, %v4570
        %v4572 = vrot.slane %v4540, 1
        %v4573 = vsel %vm1980, %v4570, %v4572
        %v4575 = vsel %vm1032, %v4543, 0
        %v4578 = vsel %vm1032, %v4545, 0
        %v4581 = vsel %vm1032, %v4547, 0
        %v4584 = vsel %vm1032, %v4549, 0
        %v4587 = vsel %vm1032, %v4551, 0
        %v4590 = vsel %vm1032, %v4553, 0
        %v4593 = vsel %vm1032, %v4555, 0
        %v4596 = vsel %vm1032, %v4557, 0
        %v4599 = vsel %vm1032, %v4559, 0
        %v4602 = vsel %vm1032, %v4561, 0
        %v4605 = vsel %vm1032, %v4563, 0
        %v4608 = vsel %vm1032, %v4565, 0
        %v4611 = vsel %vm1032, %v4567, 0
        %v4614 = vsel %vm1032, %v4569, 0
        %v4617 = vsel %vm1032, %v4571, 0
        %v4620 = vsel %vm1032, %v4573, 0
        %v4623 = vsel %vm1081, %v4457, 0
        %4625 = vmatprep.subr.bf16.mxu0 0
        %4626 = vmatpush1.bf16.msra.mxu0 %v4623
        %4627 = vmatprep.subr.bf16.mxu0 0
        %4628 = vmatpush1.bf16.msra.mxu0 0
        %4629 = vmatprep.subr.bf16.mxu0 0
        %4630 = vmatpush1.bf16.msra.mxu0 0
        %4631 = vmatprep.subr.bf16.mxu0 0
        %4632 = vmatpush1.bf16.msra.mxu0 0
        %4633 = vmatprep.subr.bf16.mxu0 0
        %4634 = vmatpush1.bf16.msra.mxu0 0
        %4635 = vmatprep.subr.bf16.mxu0 0
        %4636 = vmatpush1.bf16.msra.mxu0 0
        %4637 = vmatprep.subr.bf16.mxu0 0
        %4638 = vmatpush1.bf16.msra.mxu0 0
        %4639 = vmatprep.subr.bf16.mxu0 0
        %4640 = vmatpush1.bf16.msra.mxu0 0
        %4641 = vmatprep.subr.bf16.mxu0 0
        %4642 = vmatpush1.bf16.msra.mxu0 0
        %4643 = vmatprep.subr.bf16.mxu0 0
        %4644 = vmatpush1.bf16.msra.mxu0 0
        %4645 = vmatprep.subr.bf16.mxu0 0
        %4646 = vmatpush1.bf16.msra.mxu0 0
        %4647 = vmatprep.subr.bf16.mxu0 0
        %4648 = vmatpush1.bf16.msra.mxu0 0
        %4649 = vmatprep.subr.bf16.mxu0 0
        %4650 = vmatpush1.bf16.msra.mxu0 0
        %4651 = vmatprep.subr.bf16.mxu0 0
        %4652 = vmatpush1.bf16.msra.mxu0 0
        %4653 = vmatprep.subr.bf16.mxu0 0
        %4654 = vmatpush1.bf16.msra.mxu0 0
        %4655 = vmatprep.subr.bf16.mxu0 0
        %4656 = vmatpush1.bf16.msra.mxu0 0
        %4657 = vmatprep.mubr.bf16.mxu0 0
        %4658 = vmatmul.mubr.bf16.gmra.mrb[0].mxu0 %v4575
        %v4659 = vpop.f32.mrb[0].mxu0
        %v4660 = vadd.f32 0.0, %v4659
        %v4661 = vpop.f32.mrb[0].mxu0
        %v4662 = vpop.f32.mrb[0].mxu0
        %v4663 = vadd.f32 0.0, %v4662
        %v4664 = vpop.f32.mrb[0].mxu0
        %4665 = vmatprep.mubr.bf16.mxu0 0
        %4666 = vmatmul.mubr.bf16.gmra.mrb[0].mxu0 %v4578
        %v4667 = vpop.f32.mrb[0].mxu0
        %v4668 = vadd.f32 0.0, %v4667
        %v4669 = vpop.f32.mrb[0].mxu0
        %v4670 = vpop.f32.mrb[0].mxu0
        %v4671 = vadd.f32 0.0, %v4670
        %v4672 = vpop.f32.mrb[0].mxu0
        %4673 = vmatprep.mubr.bf16.mxu0 0
        %4674 = vmatmul.mubr.bf16.gmra.mrb[0].mxu0 %v4581
        %v4675 = vpop.f32.mrb[0].mxu0
        %v4676 = vadd.f32 0.0, %v4675
        %v4677 = vpop.f32.mrb[0].mxu0
        %v4678 = vpop.f32.mrb[0].mxu0
        %v4679 = vadd.f32 0.0, %v4678
        %v4680 = vpop.f32.mrb[0].mxu0
        %4681 = vmatprep.mubr.bf16.mxu0 0
        %4682 = vmatmul.mubr.bf16.gmra.mrb[0].mxu0 %v4584
        %v4683 = vpop.f32.mrb[0].mxu0
        %v4684 = vadd.f32 0.0, %v4683
        %v4685 = vpop.f32.mrb[0].mxu0
        %v4686 = vpop.f32.mrb[0].mxu0
        %v4687 = vadd.f32 0.0, %v4686
        %v4688 = vpop.f32.mrb[0].mxu0
        %4689 = vmatprep.mubr.bf16.mxu0 0
        %4690 = vmatmul.mubr.bf16.gmra.mrb[0].mxu0 %v4587
        %v4691 = vpop.f32.mrb[0].mxu0
        %v4692 = vadd.f32 0.0, %v4691
        %v4693 = vpop.f32.mrb[0].mxu0
        %v4694 = vpop.f32.mrb[0].mxu0
        %v4695 = vadd.f32 0.0, %v4694
        %v4696 = vpop.f32.mrb[0].mxu0
        %4697 = vmatprep.mubr.bf16.mxu0 0
        %4698 = vmatmul.mubr.bf16.gmra.mrb[0].mxu0 %v4590
        %v4699 = vpop.f32.mrb[0].mxu0
        %v4700 = vadd.f32 0.0, %v4699
        %v4701 = vpop.f32.mrb[0].mxu0
        %v4702 = vpop.f32.mrb[0].mxu0
        %v4703 = vadd.f32 0.0, %v4702
        %v4704 = vpop.f32.mrb[0].mxu0
        %4705 = vmatprep.mubr.bf16.mxu0 0
        %4706 = vmatmul.mubr.bf16.gmra.mrb[0].mxu0 %v4593
        %v4707 = vpop.f32.mrb[0].mxu0
        %v4708 = vadd.f32 0.0, %v4707
        %v4709 = vpop.f32.mrb[0].mxu0
        %v4710 = vpop.f32.mrb[0].mxu0
        %v4711 = vadd.f32 0.0, %v4710
        %v4712 = vpop.f32.mrb[0].mxu0
        %4713 = vmatprep.mubr.bf16.mxu0 0
        %4714 = vmatmul.mubr.bf16.gmra.mrb[0].mxu0 %v4596
        %v4715 = vpop.f32.mrb[0].mxu0
        %v4716 = vadd.f32 0.0, %v4715
        %v4717 = vpop.f32.mrb[0].mxu0
        %v4718 = vpop.f32.mrb[0].mxu0
        %v4719 = vadd.f32 0.0, %v4718
        %v4720 = vpop.f32.mrb[0].mxu0
        %4721 = vmatprep.mubr.bf16.mxu0 0
        %4722 = vmatmul.mubr.bf16.gmra.mrb[0].mxu0 %v4599
        %v4723 = vpop.f32.mrb[0].mxu0
        %v4724 = vadd.f32 0.0, %v4723
        %v4725 = vpop.f32.mrb[0].mxu0
        %v4726 = vpop.f32.mrb[0].mxu0
        %v4727 = vadd.f32 0.0, %v4726
        %v4728 = vpop.f32.mrb[0].mxu0
        %4729 = vmatprep.mubr.bf16.mxu0 0
        %4730 = vmatmul.mubr.bf16.gmra.mrb[0].mxu0 %v4602
        %v4731 = vpop.f32.mrb[0].mxu0
        %v4732 = vadd.f32 0.0, %v4731
        %v4733 = vpop.f32.mrb[0].mxu0
        %v4734 = vpop.f32.mrb[0].mxu0
        %v4735 = vadd.f32 0.0, %v4734
        %v4736 = vpop.f32.mrb[0].mxu0
        %4737 = vmatprep.mubr.bf16.mxu0 0
        %4738 = vmatmul.mubr.bf16.gmra.mrb[0].mxu0 %v4605
        %v4739 = vpop.f32.mrb[0].mxu0
        %v4740 = vadd.f32 0.0, %v4739
        %v4741 = vpop.f32.mrb[0].mxu0
        %v4742 = vpop.f32.mrb[0].mxu0
        %v4743 = vadd.f32 0.0, %v4742
        %v4744 = vpop.f32.mrb[0].mxu0
        %4745 = vmatprep.mubr.bf16.mxu0 0
        %4746 = vmatmul.mubr.bf16.gmra.mrb[0].mxu0 %v4608
        %v4747 = vpop.f32.mrb[0].mxu0
        %v4748 = vadd.f32 0.0, %v4747
        %v4749 = vpop.f32.mrb[0].mxu0
        %v4750 = vpop.f32.mrb[0].mxu0
        %v4751 = vadd.f32 0.0, %v4750
        %v4752 = vpop.f32.mrb[0].mxu0
        %4753 = vmatprep.mubr.bf16.mxu0 0
        %4754 = vmatmul.mubr.bf16.gmra.mrb[0].mxu0 %v4611
        %v4755 = vpop.f32.mrb[0].mxu0
        %v4756 = vadd.f32 0.0, %v4755
        %v4757 = vpop.f32.mrb[0].mxu0
        %v4758 = vpop.f32.mrb[0].mxu0
        %v4759 = vadd.f32 0.0, %v4758
        %v4760 = vpop.f32.mrb[0].mxu0
        %4761 = vmatprep.mubr.bf16.mxu0 0
        %4762 = vmatmul.mubr.bf16.gmra.mrb[0].mxu0 %v4614
        %v4763 = vpop.f32.mrb[0].mxu0
        %v4764 = vadd.f32 0.0, %v4763
        %v4765 = vpop.f32.mrb[0].mxu0
        %v4766 = vpop.f32.mrb[0].mxu0
        %v4767 = vadd.f32 0.0, %v4766
        %v4768 = vpop.f32.mrb[0].mxu0
        %4769 = vmatprep.mubr.bf16.mxu0 0
        %4770 = vmatmul.mubr.bf16.gmra.mrb[0].mxu0 %v4617
        %v4771 = vpop.f32.mrb[0].mxu0
        %v4772 = vadd.f32 0.0, %v4771
        %v4773 = vpop.f32.mrb[0].mxu0
        %v4774 = vpop.f32.mrb[0].mxu0
        %v4775 = vadd.f32 0.0, %v4774
        %v4776 = vpop.f32.mrb[0].mxu0
        %4777 = vmatprep.mubr.bf16.mxu0 0
        %4778 = vmatmul.mubr.bf16.gmra.mrb[0].mxu0 %v4620
        %v4779 = vpop.f32.mrb[0].mxu0
        %v4780 = vadd.f32 0.0, %v4779
        %v4781 = vpop.f32.mrb[0].mxu0
        %v4782 = vpop.f32.mrb[0].mxu0
        %v4783 = vadd.f32 0.0, %v4782
        %v4784 = vpop.f32.mrb[0].mxu0
        %4785 = vdwg.mxu0
        %v4786 = vadd.f32 %v4390, %v4660
        %v4787 = vadd.f32 %v4391, %v4663
        %v4788 = vadd.f32 %v4392, %v4668
        %v4789 = vadd.f32 %v4393, %v4671
        %v4790 = vadd.f32 %v4394, %v4676
        %v4791 = vadd.f32 %v4395, %v4679
        %v4792 = vadd.f32 %v4396, %v4684
        %v4793 = vadd.f32 %v4397, %v4687
        %v4794 = vadd.f32 %v4398, %v4692
        %v4795 = vadd.f32 %v4399, %v4695
        %v4796 = vadd.f32 %v4400, %v4700
        %v4797 = vadd.f32 %v4401, %v4703
        %v4798 = vadd.f32 %v4402, %v4708
        %v4799 = vadd.f32 %v4403, %v4711
        %v4800 = vadd.f32 %v4404, %v4716
        %v4801 = vadd.f32 %v4405, %v4719
        %v4802 = vadd.f32 %v4406, %v4724
        %v4803 = vadd.f32 %v4407, %v4727
        %v4804 = vadd.f32 %v4408, %v4732
        %v4805 = vadd.f32 %v4409, %v4735
        %v4806 = vadd.f32 %v4410, %v4740
        %v4807 = vadd.f32 %v4411, %v4743
        %v4808 = vadd.f32 %v4412, %v4748
        %v4809 = vadd.f32 %v4413, %v4751
        %v4810 = vadd.f32 %v4414, %v4756
        %v4811 = vadd.f32 %v4415, %v4759
        %v4812 = vadd.f32 %v4416, %v4764
        %v4813 = vadd.f32 %v4417, %v4767
        %v4814 = vadd.f32 %v4418, %v4772
        %v4815 = vadd.f32 %v4419, %v4775
        %v4816 = vadd.f32 %v4420, %v4780
        %v4817 = vadd.f32 %v4421, %v4783
        %v4818 = vld [vmem:[%s2] sm:$0x1]
        %v4820 = vlaneseq
        %v4821 = vshrl.u32 %v4820, 7
        %v4822 = vsub.s32 0, %v4821
        %v4823 = vrot.slane %v4818, %v4822
        %v4825 = vadd.f32 %v4786, %v4823
        %v4826 = vadd.f32 %v4787, %v4823
        %v4827 = vadd.f32 %v4788, %v4823
        %v4828 = vadd.f32 %v4789, %v4823
        %v4829 = vadd.f32 %v4790, %v4823
        %v4830 = vadd.f32 %v4791, %v4823
        %v4831 = vadd.f32 %v4792, %v4823
        %v4832 = vadd.f32 %v4793, %v4823
        %v4833 = vadd.f32 %v4794, %v4823
        %v4834 = vadd.f32 %v4795, %v4823
        %v4835 = vadd.f32 %v4796, %v4823
        %v4836 = vadd.f32 %v4797, %v4823
        %v4837 = vadd.f32 %v4798, %v4823
        %v4838 = vadd.f32 %v4799, %v4823
        %v4839 = vadd.f32 %v4800, %v4823
        %v4840 = vadd.f32 %v4801, %v4823
        %v4841 = vadd.f32 %v4802, %v4823
        %v4842 = vadd.f32 %v4803, %v4823
        %v4843 = vadd.f32 %v4804, %v4823
        %v4844 = vadd.f32 %v4805, %v4823
        %v4845 = vadd.f32 %v4806, %v4823
        %v4846 = vadd.f32 %v4807, %v4823
        %v4847 = vadd.f32 %v4808, %v4823
        %v4848 = vadd.f32 %v4809, %v4823
        %v4849 = vadd.f32 %v4810, %v4823
        %v4850 = vadd.f32 %v4811, %v4823
        %v4851 = vadd.f32 %v4812, %v4823
        %v4852 = vadd.f32 %v4813, %v4823
        %v4853 = vadd.f32 %v4814, %v4823
        %v4854 = vadd.f32 %v4815, %v4823
        %v4855 = vadd.f32 %v4816, %v4823
        %v4856 = vadd.f32 %v4817, %v4823
        %v4857 = vmax.f32 %v4825, 0.0
        %v4858 = vmax.f32 %v4826, 0.0
        %v4859 = vmax.f32 %v4827, 0.0
        %v4860 = vmax.f32 %v4828, 0.0
        %v4861 = vmax.f32 %v4829, 0.0
        %v4862 = vmax.f32 %v4830, 0.0
        %v4863 = vmax.f32 %v4831, 0.0
        %v4864 = vmax.f32 %v4832, 0.0
        %v4865 = vmax.f32 %v4833, 0.0
        %v4866 = vmax.f32 %v4834, 0.0
        %v4867 = vmax.f32 %v4835, 0.0
        %v4868 = vmax.f32 %v4836, 0.0
        %v4869 = vmax.f32 %v4837, 0.0
        %v4870 = vmax.f32 %v4838, 0.0
        %v4871 = vmax.f32 %v4839, 0.0
        %v4872 = vmax.f32 %v4840, 0.0
        %v4873 = vmax.f32 %v4841, 0.0
        %v4874 = vmax.f32 %v4842, 0.0
        %v4875 = vmax.f32 %v4843, 0.0
        %v4876 = vmax.f32 %v4844, 0.0
        %v4877 = vmax.f32 %v4845, 0.0
        %v4878 = vmax.f32 %v4846, 0.0
        %v4879 = vmax.f32 %v4847, 0.0
        %v4880 = vmax.f32 %v4848, 0.0
        %v4881 = vmax.f32 %v4849, 0.0
        %v4882 = vmax.f32 %v4850, 0.0
        %v4883 = vmax.f32 %v4851, 0.0
        %v4884 = vmax.f32 %v4852, 0.0
        %v4885 = vmax.f32 %v4853, 0.0
        %v4886 = vmax.f32 %v4854, 0.0
        %v4887 = vmax.f32 %v4855, 0.0
        %v4888 = vmax.f32 %v4856, 0.0
        %v4889 = vadd.f32 %v4857, %v4858
        %v4890 = vadd.f32 %v4889, %v4859
        %v4891 = vadd.f32 %v4890, %v4860
        %v4892 = vadd.f32 %v4891, %v4861
        %v4893 = vadd.f32 %v4892, %v4862
        %v4894 = vadd.f32 %v4893, %v4863
        %v4895 = vadd.f32 %v4894, %v4864
        %v4896 = vadd.f32 %v4895, %v4865
        %v4897 = vadd.f32 %v4896, %v4866
        %v4898 = vadd.f32 %v4897, %v4867
        %v4899 = vadd.f32 %v4898, %v4868
        %v4900 = vadd.f32 %v4899, %v4869
        %v4901 = vadd.f32 %v4900, %v4870
        %v4902 = vadd.f32 %v4901, %v4871
        %v4903 = vadd.f32 %v4902, %v4872
        %v4904 = vadd.f32 %v4903, %v4873
        %v4905 = vadd.f32 %v4904, %v4874
        %v4906 = vadd.f32 %v4905, %v4875
        %v4907 = vadd.f32 %v4906, %v4876
        %v4908 = vadd.f32 %v4907, %v4877
        %v4909 = vadd.f32 %v4908, %v4878
        %v4910 = vadd.f32 %v4909, %v4879
        %v4911 = vadd.f32 %v4910, %v4880
        %v4912 = vadd.f32 %v4911, %v4881
        %v4913 = vadd.f32 %v4912, %v4882
        %v4914 = vadd.f32 %v4913, %v4883
        %v4915 = vadd.f32 %v4914, %v4884
        %v4916 = vadd.f32 %v4915, %v4885
        %v4917 = vadd.f32 %v4916, %v4886
        %v4918 = vadd.f32 %v4917, %v4887
        %v4919 = vadd.f32 %v4918, %v4888
        %v4920 = vrot.slane %v4919, 4
        %v4921 = vadd.f32 %v4919, %v4920
        %v4922 = vrot.slane %v4921, 2
        %v4923 = vadd.f32 %v4921, %v4922
        %v4924 = vrot.slane %v4923, 1
        %v4925 = vadd.f32 %v4923, %v4924
        %v4926 = vmul.f32 %v4925, 0.00390625
        %4927 = vst [vmem:[%s162] sm:$0x1] %v4926
        %s4928 = sand.u32 %s93, 1
        %s4929 = scalar_lea.sflag [#allocation3], %s4928
        %s4930 = sand.u32 %s93, 1
        %s4931 = scalar_lea.vmem [#allocation2], %s4930
        // Predicated region
        $region33: #{tpu_custom_call.1} parent=31 // pred_check
          %p4932 = pneg %p103
        $region34: #{tpu_custom_call.1} parent=31 // pred_check_branch
          %4934 = sbr.rel (%p4932) target = $region36
        $region35: #{tpu_custom_call.1} parent=31 // pred_region
          %s4936 = ssub.s32 16, 16
          %4937 = vsyncadd %s4929, %s4936
          %s4938 = smul.addr %s17, 16
          %s4939 = scalar_lea.hbm %s3, %s4938
          %s4941 = sshll.u32 %s4931, 4
          %s4942 = int_to_ptr.vmem [resolvable:$true] %s4941
          %4944 = dma.vmem_to_hbm [thread:$0]  %s4942, 16, %s4939, %s4929
        $region36: #{tpu_custom_call.1} parent=31 // pred_fallthru
          _
      $region32: #{tpu_custom_call.1} parent=5 // pred_fallthru
        _
      %p4945 = scmp.le.s32.totalorder 2, %s12
      // Predicated region
      $region37: #{tpu_custom_call.1} parent=5 // pred_check
        %p4946 = pneg %p4945
      $region38: #{tpu_custom_call.1} parent=5 // pred_check_branch
        %4948 = sbr.rel (%p4946) target = $region40
      $region39: #{tpu_custom_call.1} parent=5 // pred_region
        %s4949 = ssub.s32 %s12, 2
        // Predicated region
        $region41: #{tpu_custom_call.1} parent=39 // pred_check
          %p4950 = pneg %p109
        $region42: #{tpu_custom_call.1} parent=39 // pred_check_branch
          %4952 = sbr.rel (%p4950) target = $region44
        $region43: #{tpu_custom_call.1} parent=39 // pred_region
          %s4953 = sand.u32 %s94, 1
          %s4954 = scalar_lea.sflag [#allocation3], %s4953
          %s4955 = sand.u32 %s94, 1
          %s4956 = scalar_lea.vmem [#allocation2], %s4955
          %4957 = dma.done %s4954, 16
        $region44: #{tpu_custom_call.1} parent=39 // pred_fallthru
          _
      $region40: #{tpu_custom_call.1} parent=5 // pred_fallthru
        _
    $region6: #{tpu_custom_call.1} parent=1 // loop_footer
      %s16 = sadd.s32 1, %s12
    $region7: #{tpu_custom_call.1} parent=1 // loop_footer_branch
      %11 = sbr.rel target = $region3
    $region8: #{tpu_custom_call.1} parent=1 // loop_exit
      _
    %4958 = vsyncpa [#allocation3], 1
    %s4959 = scalar_lea.sflag [#allocation3], 1
    %4960 = vsyncpa %s4959, 1

</llo_original>
